<compile_context>
chip_gen: v5e
topology: v5e:2x2
jax: 0.10.0
libtpu: 0.0.40
codegen_flags: <defaults>
</compile_context>

<pallas_src>
import jax
import jax.numpy as jnp
from jax import lax
from jax.experimental import pallas as pl
from jax.experimental.pallas import tpu as pltpu


_VMEM = pl.BlockSpec(memory_space=pltpu.MemorySpace.VMEM)
_COMPUTE_DTYPE = jnp.bfloat16   # streamed activations & matmul weights; math stays f32


# ----------------------------------------------------------------------------
# In-kernel helpers
# ----------------------------------------------------------------------------
def _lstm_gates(gates, c_prev, H):
    """PyTorch gate order (i, f, g, o). `gates`: (B, 4H) f32 pre-activations.

    sigmoid / tanh are evaluated on the full (B, 4H) block (2 EUP pushes) and
    the needed quarters sliced afterwards, instead of four sliced pushes.
    """
    sig = jax.nn.sigmoid(gates)
    tnh = jnp.tanh(gates)
    i_g = sig[:, 0 * H:1 * H]
    f_g = sig[:, 1 * H:2 * H]
    o_g = sig[:, 3 * H:4 * H]
    g_g = tnh[:, 2 * H:3 * H]
    c_new = f_g * c_prev + i_g * g_g
    h_new = o_g * jnp.tanh(c_new)
    return h_new, c_new


def _input_projection(x2d, w_ih_t, b, xp_sc):
    """Hoisted input projection: one large MXU matmul for the whole sequence.

    x2d: (seq*B, in_dim) bf16 value; w_ih_t: (in_dim, 4H) bf16; b: (1, 4H) f32;
    xp_sc: (seq, B, 4H) f32 scratch ref. Bias is folded in here so the serial
    recurrence has no per-step bias broadcast.
    """
    seq, B, _ = xp_sc.shape
    proj = jnp.dot(x2d, w_ih_t, preferred_element_type=jnp.float32) + b
    # Distribute rows into the per-timestep scratch with static slices
    # (done once per kernel; avoids an in-kernel reshape of the matmul result).
    for t in range(seq):
        xp_sc[t] = proj[t * B:(t + 1) * B, :]


def _bilstm_recurrence(xpf_sc, xpb_sc, whh_f, whh_b,
                       hf_sc, cf_sc, hb_sc, cb_sc, out_seq_ref=None):
    """Fused fwd+bwd recurrence over the precomputed input projections.

    If out_seq_ref is given, hidden states are written directly into the
    (seq, B, 2H) concat layout (fwd -> lanes [0:H], bwd -> lanes [H:2H]);
    the backward direction is reversed purely by indexing (t -> seq-1-t).
    """
    seq, B, fourH = xpf_sc.shape
    H = fourH // 4

    hf_sc[...] = jnp.zeros_like(hf_sc)
    cf_sc[...] = jnp.zeros_like(cf_sc)
    hb_sc[...] = jnp.zeros_like(hb_sc)
    cb_sc[...] = jnp.zeros_like(cb_sc)

    def step(t, carry):
        tb = seq - 1 - t
        # forward direction @ time t  (only h @ W_hh on the serial path)
        gates_f = xpf_sc[t] + jnp.dot(hf_sc[...].astype(whh_f.dtype), whh_f,
                                      preferred_element_type=jnp.float32)
        h_f, c_f = _lstm_gates(gates_f, cf_sc[...], H)
        hf_sc[...] = h_f
        cf_sc[...] = c_f
        # backward direction @ time tb (reversal via indexing, no [::-1] copies)
        gates_b = xpb_sc[tb] + jnp.dot(hb_sc[...].astype(whh_b.dtype), whh_b,
                                       preferred_element_type=jnp.float32)
        h_b, c_b = _lstm_gates(gates_b, cb_sc[...], H)
        hb_sc[...] = h_b
        cb_sc[...] = c_b
        if out_seq_ref is not None:
            out_seq_ref[t, :, pl.ds(0, H)] = h_f.astype(out_seq_ref.dtype)
            out_seq_ref[tb, :, pl.ds(H, H)] = h_b.astype(out_seq_ref.dtype)
        return carry

    # Short static trip count -> fully unroll for LLO scheduling visibility.
    lax.fori_loop(0, seq, step, 0, unroll=True)


# ----------------------------------------------------------------------------
# Pallas kernels
# ----------------------------------------------------------------------------
def bilstm_layer_kernel(x2d_ref, wihf_ref, whhf_ref, bf_ref,
                        wihb_ref, whhb_ref, bb_ref,
                        out_seq_ref, hfinal_ref,
                        xpf_sc, xpb_sc, hf_sc, cf_sc, hb_sc, cb_sc):
    """One bidirectional LSTM layer (both directions fused)."""
    H = hf_sc.shape[1]
    x2d = x2d_ref[...]
    # Phase 1: hoisted input projections (one big MXU matmul per direction).
    _input_projection(x2d, wihf_ref[...], bf_ref[...], xpf_sc)
    _input_projection(x2d, wihb_ref[...], bb_ref[...], xpb_sc)
    # Phase 2: fused fwd+bwd recurrence; outputs written into the 2H concat slab.
    _bilstm_recurrence(xpf_sc, xpb_sc, whhf_ref[...], whhb_ref[...],
                       hf_sc, cf_sc, hb_sc, cb_sc, out_seq_ref=out_seq_ref)
    # Final hidden states written directly into the (B, 2H) concat slab.
    hfinal_ref[:, pl.ds(0, H)] = hf_sc[...]
    hfinal_ref[:, pl.ds(H, H)] = hb_sc[...]


def bilstm_layer_head_kernel(x2d_ref, hfin0_ref,
                             wihf_ref, whhf_ref, bf_ref,
                             wihb_ref, whhb_ref, bb_ref,
                             wlab_t_ref, blab_ref,
                             probs_ref,
                             xpf_sc, xpb_sc, hf_sc, cf_sc, hb_sc, cb_sc):
    """Second bidirectional LSTM layer with the Linear+softmax head fused into
    the finalize phase (the layer-1 output sequence is never needed/stored)."""
    x2d = x2d_ref[...]
    _input_projection(x2d, wihf_ref[...], bf_ref[...], xpf_sc)
    _input_projection(x2d, wihb_ref[...], bb_ref[...], xpb_sc)
    _bilstm_recurrence(xpf_sc, xpb_sc, whhf_ref[...], whhb_ref[...],
                       hf_sc, cf_sc, hb_sc, cb_sc, out_seq_ref=None)
    # final = [h_l0_fwd | h_l0_bwd | h_l1_fwd | h_l1_bwd]   (B, 4H), f32
    final = jnp.concatenate([hfin0_ref[...], hf_sc[...], hb_sc[...]], axis=1)
    logits = (jnp.dot(final, wlab_t_ref[...], preferred_element_type=jnp.float32)
              + blab_ref[...])
    m = jnp.max(logits, axis=1, keepdims=True)
    e = jnp.exp(logits - m)
    probs_ref[...] = (e / jnp.sum(e, axis=1, keepdims=True)).astype(probs_ref.dtype)


# ----------------------------------------------------------------------------
# Wrappers
# ----------------------------------------------------------------------------
def _direction_weights(params, tag, dtype):
    w_ih_t = jnp.transpose(params[f"wih_{tag}"]).astype(dtype)       # (in_dim, 4H)
    w_hh_t = jnp.transpose(params[f"whh_{tag}"]).astype(dtype)       # (H, 4H)
    b = (params[f"bih_{tag}"] + params[f"bhh_{tag}"]).reshape(1, -1).astype(jnp.float32)
    return w_ih_t, w_hh_t, b


def _lstm_scratch(seq, B, H):
    f32 = jnp.float32
    return [pltpu.VMEM((seq, B, 4 * H), f32),                 # x-projection, fwd
            pltpu.VMEM((seq, B, 4 * H), f32),                 # x-projection, bwd
            pltpu.VMEM((B, H), f32), pltpu.VMEM((B, H), f32),  # h, c fwd
            pltpu.VMEM((B, H), f32), pltpu.VMEM((B, H), f32)]  # h, c bwd


def bilstm_layer0(xs, params):
    seq, B, emb = xs.shape
    H = params["whh_l0"].shape[1]
    wf, uf, bf = _direction_weights(params, "l0", _COMPUTE_DTYPE)
    wb, ub, bb = _direction_weights(params, "l0r", _COMPUTE_DTYPE)
    x2d = xs.reshape(seq * B, emb).astype(_COMPUTE_DTYPE)
    return pl.pallas_call(
        bilstm_layer_kernel,
        out_shape=(jax.ShapeDtypeStruct((seq, B, 2 * H), _COMPUTE_DTYPE),
                   jax.ShapeDtypeStruct((B, 2 * H), jnp.float32)),
        in_specs=[_VMEM] * 7,
        out_specs=(_VMEM, _VMEM),
        scratch_shapes=_lstm_scratch(seq, B, H),
    )(x2d, wf, uf, bf, wb, ub, bb)


def bilstm_layer1_with_head(out_seq0, hfinal0, params):
    seq, B, twoH = out_seq0.shape
    H = twoH // 2
    out_size = params["w_label"].shape[0]
    wf, uf, bf = _direction_weights(params, "l1", _COMPUTE_DTYPE)
    wb, ub, bb = _direction_weights(params, "l1r", _COMPUTE_DTYPE)
    x2d = out_seq0.reshape(seq * B, twoH)                      # free metadata reshape
    wlab_t = jnp.transpose(params["w_label"]).astype(jnp.float32)   # (4H, out)
    blab = params["b_label"].reshape(1, out_size).astype(jnp.float32)
    return pl.pallas_call(
        bilstm_layer_head_kernel,
        out_shape=jax.ShapeDtypeStruct((B, out_size), jnp.float32),
        in_specs=[_VMEM] * 10,
        out_specs=_VMEM,
        scratch_shapes=_lstm_scratch(seq, B, H),
    )(x2d, hfinal0, wf, uf, bf, wb, ub, bb, wlab_t, blab)


@jax.jit
def lstm_classifier_forward(x, params):
    # x: (batch, seq, embedding_length) -> time-major, matching permute(1, 0, 2).
    xs = jnp.transpose(x, (1, 0, 2))
    out_seq0, hfinal0 = bilstm_layer0(xs, params)
    # TODO(synk): nn.LSTM inter-layer dropout(p=0.5) is training-only; eval forward is a no-op.
    # TODO(synk): at larger seq/batch, add seq-chunk pipelining (grid/BlockSpec or manual
    # double-buffered DMA) and a v7x two-TensorCore split of the directions; whole-array
    # VMEM residency is fine at these toy shapes.
    return bilstm_layer1_with_head(out_seq0, hfinal0, params)


# ----------------------------------------------------------------------------
# Pure-JAX f32 reference (for correctness check)
# ----------------------------------------------------------------------------
def _lstm_dir_ref(x, w_ih, w_hh, b_ih, b_hh, reverse):
    seq, B, _ = x.shape
    H = w_hh.shape[1]
    h = jnp.zeros((B, H), jnp.float32)
    c = jnp.zeros((B, H), jnp.float32)
    order = range(seq - 1, -1, -1) if reverse else range(seq)
    outs = [None] * seq
    for t in order:
        g = x[t] @ w_ih.T + h @ w_hh.T + b_ih + b_hh
        i = jax.nn.sigmoid(g[:, 0 * H:1 * H])
        f = jax.nn.sigmoid(g[:, 1 * H:2 * H])
        gg = jnp.tanh(g[:, 2 * H:3 * H])
        o = jax.nn.sigmoid(g[:, 3 * H:4 * H])
        c = f * c + i * gg
        h = o * jnp.tanh(c)
        outs[t] = h
    return jnp.stack(outs), h


def lstm_classifier_reference(x, p):
    xs = jnp.transpose(x, (1, 0, 2))
    of, h0f = _lstm_dir_ref(xs, p["wih_l0"], p["whh_l0"], p["bih_l0"], p["bhh_l0"], False)
    ob, h0b = _lstm_dir_ref(xs, p["wih_l0r"], p["whh_l0r"], p["bih_l0r"], p["bhh_l0r"], True)
    x1 = jnp.concatenate([of, ob], axis=-1)
    _, h1f = _lstm_dir_ref(x1, p["wih_l1"], p["whh_l1"], p["bih_l1"], p["bhh_l1"], False)
    _, h1b = _lstm_dir_ref(x1, p["wih_l1r"], p["whh_l1r"], p["bih_l1r"], p["bhh_l1r"], True)
    final = jnp.concatenate([h0f, h0b, h1f, h1b], axis=1)
    logits = final @ p["w_label"].T + p["b_label"]
    return jax.nn.softmax(logits, axis=1)


# ----------------------------------------------------------------------------
# Deterministic parameter init (PyTorch-style U(-1/sqrt(H), 1/sqrt(H))).
# ----------------------------------------------------------------------------
def init_params(key, embedding_length, hidden_size, output_size):
    H = hidden_size
    bound = 1.0 / jnp.sqrt(jnp.float32(H))
    keys = jax.random.split(key, 18)

    def u(k, shape, b=bound):
        return jax.random.uniform(k, shape, jnp.float32, -b, b)

    params = {}
    # layer 0: input = embedding_length
    params["wih_l0"] = u(keys[0], (4 * H, embedding_length))
    params["whh_l0"] = u(keys[1], (4 * H, H))
    params["bih_l0"] = u(keys[2], (4 * H,))
    params["bhh_l0"] = u(keys[3], (4 * H,))
    params["wih_l0r"] = u(keys[4], (4 * H, embedding_length))
    params["whh_l0r"] = u(keys[5], (4 * H, H))
    params["bih_l0r"] = u(keys[6], (4 * H,))
    params["bhh_l0r"] = u(keys[7], (4 * H,))
    # layer 1: input = 2H (bidirectional)
    params["wih_l1"] = u(keys[8], (4 * H, 2 * H))
    params["whh_l1"] = u(keys[9], (4 * H, H))
    params["bih_l1"] = u(keys[10], (4 * H,))
    params["bhh_l1"] = u(keys[11], (4 * H,))
    params["wih_l1r"] = u(keys[12], (4 * H, 2 * H))
    params["whh_l1r"] = u(keys[13], (4 * H, H))
    params["bih_l1r"] = u(keys[14], (4 * H,))
    params["bhh_l1r"] = u(keys[15], (4 * H,))
    # label head: Linear(4H -> output_size)
    lb = 1.0 / jnp.sqrt(jnp.float32(4 * H))
    params["w_label"] = u(keys[16], (output_size, 4 * H), lb)
    params["b_label"] = u(keys[17], (output_size,), lb)
    return params


if __name__ == "__main__":
    batch_size = 2
    seq_len = 8
    embedding_length = 16
    hidden_size = 32
    output_size = 4
    vocab_size = 100  # unused in the traced forward path (inputs are embeddings)

    key = jax.random.PRNGKey(0)
    k_x, k_p = jax.random.split(key)
    x = jax.random.normal(k_x, (batch_size, seq_len, embedding_length), jnp.float32)
    params = init_params(k_p, embedding_length, hidden_size, output_size)

    probs = lstm_classifier_forward(x, params)
    probs = jax.block_until_ready(probs)

    assert probs.shape == (batch_size, output_size)
    assert bool(jnp.all(jnp.isfinite(probs)))
    # softmax rows sum to 1
    assert bool(jnp.allclose(jnp.sum(probs, axis=1), 1.0, atol=1e-5))
    # matches the f32 pure-JAX reference (tolerance covers bf16 streamed activations)
    ref = lstm_classifier_reference(x, params)
    assert bool(jnp.allclose(probs, ref, atol=2e-2))

    print("KERNEL_OK")
</pallas_src>

<mosaic_0001>
module attributes {stable_mosaic.version = 11 : i64} {
  func.func @bilstm_layer_kernel(%arg0: memref<16x16xbf16, #tpu.memory_space<vmem>>, %arg1: memref<16x128xbf16, #tpu.memory_space<vmem>>, %arg2: memref<32x128xbf16, #tpu.memory_space<vmem>>, %arg3: memref<1x128xf32, #tpu.memory_space<vmem>>, %arg4: memref<16x128xbf16, #tpu.memory_space<vmem>>, %arg5: memref<32x128xbf16, #tpu.memory_space<vmem>>, %arg6: memref<1x128xf32, #tpu.memory_space<vmem>>, %arg7: memref<8x2x64xbf16, #tpu.memory_space<vmem>>, %arg8: memref<2x64xf32, #tpu.memory_space<vmem>>, %arg9: memref<8x2x128xf32, #tpu.memory_space<vmem>>, %arg10: memref<8x2x128xf32, #tpu.memory_space<vmem>>, %arg11: memref<2x32xf32, #tpu.memory_space<vmem>>, %arg12: memref<2x32xf32, #tpu.memory_space<vmem>>, %arg13: memref<2x32xf32, #tpu.memory_space<vmem>>, %arg14: memref<2x32xf32, #tpu.memory_space<vmem>>) attributes {dimension_semantics = [], scalar_prefetch = 0 : i64, scratch_operands = 6 : i64, tpu.core_type = #tpu.core_type<tc>} {
    %c0 = arith.constant 0 : index
    %c0_0 = arith.constant 0 : index
    %0 = vector.load %arg0[%c0, %c0_0] : memref<16x16xbf16, #tpu.memory_space<vmem>>, vector<16x16xbf16>
    %c0_1 = arith.constant 0 : index
    %c0_2 = arith.constant 0 : index
    %1 = vector.load %arg1[%c0_1, %c0_2] : memref<16x128xbf16, #tpu.memory_space<vmem>>, vector<16x128xbf16>
    %c0_3 = arith.constant 0 : index
    %c0_4 = arith.constant 0 : index
    %2 = vector.load %arg3[%c0_3, %c0_4] : memref<1x128xf32, #tpu.memory_space<vmem>>, vector<1x128xf32>
    %cst = arith.constant dense<0.000000e+00> : vector<16x128xf32>
    %3 = tpu.matmul %0, %1, %cst {dimension_numbers = #tpu.dot_dimension_numbers<[1], [0], [0], [1], [0, 0, 1, 1], [], []>} : vector<16x16xbf16>, vector<16x128xbf16>, vector<16x128xf32> -> vector<16x128xf32>
    %4 = vector.broadcast %2 : vector<1x128xf32> to vector<16x128xf32>
    %5 = arith.addf %3, %4 : vector<16x128xf32>
    %6 = vector.extract_strided_slice %5 {offsets = [0, 0], sizes = [2, 128], strides = [1, 1]} : vector<16x128xf32> to vector<2x128xf32>
    %c0_5 = arith.constant 0 : index
    %c0_6 = arith.constant 0 : index
    %c0_7 = arith.constant 0 : index
    %7 = vector.load %arg9[%c0_5, %c0_6, %c0_7] : memref<8x2x128xf32, #tpu.memory_space<vmem>>, vector<1x2x128xf32>
    %8 = vector.shape_cast %7 : vector<1x2x128xf32> to vector<2x128xf32>
    %9 = vector.shape_cast %6 : vector<2x128xf32> to vector<1x2x128xf32>
    tpu.vector_store %arg9[%c0_5, %c0_6, %c0_7], %9 {strides = array<i32>} : memref<8x2x128xf32, #tpu.memory_space<vmem>>, vector<1x2x128xf32>,
    %10 = vector.extract_strided_slice %5 {offsets = [2, 0], sizes = [2, 128], strides = [1, 1]} : vector<16x128xf32> to vector<2x128xf32>
    %c1 = arith.constant 1 : index
    %c0_8 = arith.constant 0 : index
    %c0_9 = arith.constant 0 : index
    %11 = vector.load %arg9[%c1, %c0_8, %c0_9] : memref<8x2x128xf32, #tpu.memory_space<vmem>>, vector<1x2x128xf32>
    %12 = vector.shape_cast %11 : vector<1x2x128xf32> to vector<2x128xf32>
    %13 = vector.shape_cast %10 : vector<2x128xf32> to vector<1x2x128xf32>
    tpu.vector_store %arg9[%c1, %c0_8, %c0_9], %13 {strides = array<i32>} : memref<8x2x128xf32, #tpu.memory_space<vmem>>, vector<1x2x128xf32>,
    %14 = vector.extract_strided_slice %5 {offsets = [4, 0], sizes = [2, 128], strides = [1, 1]} : vector<16x128xf32> to vector<2x128xf32>
    %c2 = arith.constant 2 : index
    %c0_10 = arith.constant 0 : index
    %c0_11 = arith.constant 0 : index
    %15 = vector.load %arg9[%c2, %c0_10, %c0_11] : memref<8x2x128xf32, #tpu.memory_space<vmem>>, vector<1x2x128xf32>
    %16 = vector.shape_cast %15 : vector<1x2x128xf32> to vector<2x128xf32>
    %17 = vector.shape_cast %14 : vector<2x128xf32> to vector<1x2x128xf32>
    tpu.vector_store %arg9[%c2, %c0_10, %c0_11], %17 {strides = array<i32>} : memref<8x2x128xf32, #tpu.memory_space<vmem>>, vector<1x2x128xf32>,
    %18 = vector.extract_strided_slice %5 {offsets = [6, 0], sizes = [2, 128], strides = [1, 1]} : vector<16x128xf32> to vector<2x128xf32>
    %c3 = arith.constant 3 : index
    %c0_12 = arith.constant 0 : index
    %c0_13 = arith.constant 0 : index
    %19 = vector.load %arg9[%c3, %c0_12, %c0_13] : memref<8x2x128xf32, #tpu.memory_space<vmem>>, vector<1x2x128xf32>
    %20 = vector.shape_cast %19 : vector<1x2x128xf32> to vector<2x128xf32>
    %21 = vector.shape_cast %18 : vector<2x128xf32> to vector<1x2x128xf32>
    tpu.vector_store %arg9[%c3, %c0_12, %c0_13], %21 {strides = array<i32>} : memref<8x2x128xf32, #tpu.memory_space<vmem>>, vector<1x2x128xf32>,
    %22 = vector.extract_strided_slice %5 {offsets = [8, 0], sizes = [2, 128], strides = [1, 1]} : vector<16x128xf32> to vector<2x128xf32>
    %c4 = arith.constant 4 : index
    %c0_14 = arith.constant 0 : index
    %c0_15 = arith.constant 0 : index
    %23 = vector.load %arg9[%c4, %c0_14, %c0_15] : memref<8x2x128xf32, #tpu.memory_space<vmem>>, vector<1x2x128xf32>
    %24 = vector.shape_cast %23 : vector<1x2x128xf32> to vector<2x128xf32>
    %25 = vector.shape_cast %22 : vector<2x128xf32> to vector<1x2x128xf32>
    tpu.vector_store %arg9[%c4, %c0_14, %c0_15], %25 {strides = array<i32>} : memref<8x2x128xf32, #tpu.memory_space<vmem>>, vector<1x2x128xf32>,
    %26 = vector.extract_strided_slice %5 {offsets = [10, 0], sizes = [2, 128], strides = [1, 1]} : vector<16x128xf32> to vector<2x128xf32>
    %c5 = arith.constant 5 : index
    %c0_16 = arith.constant 0 : index
    %c0_17 = arith.constant 0 : index
    %27 = vector.load %arg9[%c5, %c0_16, %c0_17] : memref<8x2x128xf32, #tpu.memory_space<vmem>>, vector<1x2x128xf32>
    %28 = vector.shape_cast %27 : vector<1x2x128xf32> to vector<2x128xf32>
    %29 = vector.shape_cast %26 : vector<2x128xf32> to vector<1x2x128xf32>
    tpu.vector_store %arg9[%c5, %c0_16, %c0_17], %29 {strides = array<i32>} : memref<8x2x128xf32, #tpu.memory_space<vmem>>, vector<1x2x128xf32>,
    %30 = vector.extract_strided_slice %5 {offsets = [12, 0], sizes = [2, 128], strides = [1, 1]} : vector<16x128xf32> to vector<2x128xf32>
    %c6 = arith.constant 6 : index
    %c0_18 = arith.constant 0 : index
    %c0_19 = arith.constant 0 : index
    %31 = vector.load %arg9[%c6, %c0_18, %c0_19] : memref<8x2x128xf32, #tpu.memory_space<vmem>>, vector<1x2x128xf32>
    %32 = vector.shape_cast %31 : vector<1x2x128xf32> to vector<2x128xf32>
    %33 = vector.shape_cast %30 : vector<2x128xf32> to vector<1x2x128xf32>
    tpu.vector_store %arg9[%c6, %c0_18, %c0_19], %33 {strides = array<i32>} : memref<8x2x128xf32, #tpu.memory_space<vmem>>, vector<1x2x128xf32>,
    %34 = vector.extract_strided_slice %5 {offsets = [14, 0], sizes = [2, 128], strides = [1, 1]} : vector<16x128xf32> to vector<2x128xf32>
    %c7 = arith.constant 7 : index
    %c0_20 = arith.constant 0 : index
    %c0_21 = arith.constant 0 : index
    %35 = vector.load %arg9[%c7, %c0_20, %c0_21] : memref<8x2x128xf32, #tpu.memory_space<vmem>>, vector<1x2x128xf32>
    %36 = vector.shape_cast %35 : vector<1x2x128xf32> to vector<2x128xf32>
    %37 = vector.shape_cast %34 : vector<2x128xf32> to vector<1x2x128xf32>
    tpu.vector_store %arg9[%c7, %c0_20, %c0_21], %37 {strides = array<i32>} : memref<8x2x128xf32, #tpu.memory_space<vmem>>, vector<1x2x128xf32>,
    %c0_22 = arith.constant 0 : index
    %c0_23 = arith.constant 0 : index
    %38 = vector.load %arg4[%c0_22, %c0_23] : memref<16x128xbf16, #tpu.memory_space<vmem>>, vector<16x128xbf16>
    %c0_24 = arith.constant 0 : index
    %c0_25 = arith.constant 0 : index
    %39 = vector.load %arg6[%c0_24, %c0_25] : memref<1x128xf32, #tpu.memory_space<vmem>>, vector<1x128xf32>
    %cst_26 = arith.constant dense<0.000000e+00> : vector<16x128xf32>
    %40 = tpu.matmul %0, %38, %cst_26 {dimension_numbers = #tpu.dot_dimension_numbers<[1], [0], [0], [1], [0, 0, 1, 1], [], []>} : vector<16x16xbf16>, vector<16x128xbf16>, vector<16x128xf32> -> vector<16x128xf32>
    %41 = vector.broadcast %39 : vector<1x128xf32> to vector<16x128xf32>
    %42 = arith.addf %40, %41 : vector<16x128xf32>
    %43 = vector.extract_strided_slice %42 {offsets = [0, 0], sizes = [2, 128], strides = [1, 1]} : vector<16x128xf32> to vector<2x128xf32>
    %c0_27 = arith.constant 0 : index
    %c0_28 = arith.constant 0 : index
    %c0_29 = arith.constant 0 : index
    %44 = vector.load %arg10[%c0_27, %c0_28, %c0_29] : memref<8x2x128xf32, #tpu.memory_space<vmem>>, vector<1x2x128xf32>
    %45 = vector.shape_cast %44 : vector<1x2x128xf32> to vector<2x128xf32>
    %46 = vector.shape_cast %43 : vector<2x128xf32> to vector<1x2x128xf32>
    tpu.vector_store %arg10[%c0_27, %c0_28, %c0_29], %46 {strides = array<i32>} : memref<8x2x128xf32, #tpu.memory_space<vmem>>, vector<1x2x128xf32>,
    %47 = vector.extract_strided_slice %42 {offsets = [2, 0], sizes = [2, 128], strides = [1, 1]} : vector<16x128xf32> to vector<2x128xf32>
    %c1_30 = arith.constant 1 : index
    %c0_31 = arith.constant 0 : index
    %c0_32 = arith.constant 0 : index
    %48 = vector.load %arg10[%c1_30, %c0_31, %c0_32] : memref<8x2x128xf32, #tpu.memory_space<vmem>>, vector<1x2x128xf32>
    %49 = vector.shape_cast %48 : vector<1x2x128xf32> to vector<2x128xf32>
    %50 = vector.shape_cast %47 : vector<2x128xf32> to vector<1x2x128xf32>
    tpu.vector_store %arg10[%c1_30, %c0_31, %c0_32], %50 {strides = array<i32>} : memref<8x2x128xf32, #tpu.memory_space<vmem>>, vector<1x2x128xf32>,
    %51 = vector.extract_strided_slice %42 {offsets = [4, 0], sizes = [2, 128], strides = [1, 1]} : vector<16x128xf32> to vector<2x128xf32>
    %c2_33 = arith.constant 2 : index
    %c0_34 = arith.constant 0 : index
    %c0_35 = arith.constant 0 : index
    %52 = vector.load %arg10[%c2_33, %c0_34, %c0_35] : memref<8x2x128xf32, #tpu.memory_space<vmem>>, vector<1x2x128xf32>
    %53 = vector.shape_cast %52 : vector<1x2x128xf32> to vector<2x128xf32>
    %54 = vector.shape_cast %51 : vector<2x128xf32> to vector<1x2x128xf32>
    tpu.vector_store %arg10[%c2_33, %c0_34, %c0_35], %54 {strides = array<i32>} : memref<8x2x128xf32, #tpu.memory_space<vmem>>, vector<1x2x128xf32>,
    %55 = vector.extract_strided_slice %42 {offsets = [6, 0], sizes = [2, 128], strides = [1, 1]} : vector<16x128xf32> to vector<2x128xf32>
    %c3_36 = arith.constant 3 : index
    %c0_37 = arith.constant 0 : index
    %c0_38 = arith.constant 0 : index
    %56 = vector.load %arg10[%c3_36, %c0_37, %c0_38] : memref<8x2x128xf32, #tpu.memory_space<vmem>>, vector<1x2x128xf32>
    %57 = vector.shape_cast %56 : vector<1x2x128xf32> to vector<2x128xf32>
    %58 = vector.shape_cast %55 : vector<2x128xf32> to vector<1x2x128xf32>
    tpu.vector_store %arg10[%c3_36, %c0_37, %c0_38], %58 {strides = array<i32>} : memref<8x2x128xf32, #tpu.memory_space<vmem>>, vector<1x2x128xf32>,
    %59 = vector.extract_strided_slice %42 {offsets = [8, 0], sizes = [2, 128], strides = [1, 1]} : vector<16x128xf32> to vector<2x128xf32>
    %c4_39 = arith.constant 4 : index
    %c0_40 = arith.constant 0 : index
    %c0_41 = arith.constant 0 : index
    %60 = vector.load %arg10[%c4_39, %c0_40, %c0_41] : memref<8x2x128xf32, #tpu.memory_space<vmem>>, vector<1x2x128xf32>
    %61 = vector.shape_cast %60 : vector<1x2x128xf32> to vector<2x128xf32>
    %62 = vector.shape_cast %59 : vector<2x128xf32> to vector<1x2x128xf32>
    tpu.vector_store %arg10[%c4_39, %c0_40, %c0_41], %62 {strides = array<i32>} : memref<8x2x128xf32, #tpu.memory_space<vmem>>, vector<1x2x128xf32>,
    %63 = vector.extract_strided_slice %42 {offsets = [10, 0], sizes = [2, 128], strides = [1, 1]} : vector<16x128xf32> to vector<2x128xf32>
    %c5_42 = arith.constant 5 : index
    %c0_43 = arith.constant 0 : index
    %c0_44 = arith.constant 0 : index
    %64 = vector.load %arg10[%c5_42, %c0_43, %c0_44] : memref<8x2x128xf32, #tpu.memory_space<vmem>>, vector<1x2x128xf32>
    %65 = vector.shape_cast %64 : vector<1x2x128xf32> to vector<2x128xf32>
    %66 = vector.shape_cast %63 : vector<2x128xf32> to vector<1x2x128xf32>
    tpu.vector_store %arg10[%c5_42, %c0_43, %c0_44], %66 {strides = array<i32>} : memref<8x2x128xf32, #tpu.memory_space<vmem>>, vector<1x2x128xf32>,
    %67 = vector.extract_strided_slice %42 {offsets = [12, 0], sizes = [2, 128], strides = [1, 1]} : vector<16x128xf32> to vector<2x128xf32>
    %c6_45 = arith.constant 6 : index
    %c0_46 = arith.constant 0 : index
    %c0_47 = arith.constant 0 : index
    %68 = vector.load %arg10[%c6_45, %c0_46, %c0_47] : memref<8x2x128xf32, #tpu.memory_space<vmem>>, vector<1x2x128xf32>
    %69 = vector.shape_cast %68 : vector<1x2x128xf32> to vector<2x128xf32>
    %70 = vector.shape_cast %67 : vector<2x128xf32> to vector<1x2x128xf32>
    tpu.vector_store %arg10[%c6_45, %c0_46, %c0_47], %70 {strides = array<i32>} : memref<8x2x128xf32, #tpu.memory_space<vmem>>, vector<1x2x128xf32>,
    %71 = vector.extract_strided_slice %42 {offsets = [14, 0], sizes = [2, 128], strides = [1, 1]} : vector<16x128xf32> to vector<2x128xf32>
    %c7_48 = arith.constant 7 : index
    %c0_49 = arith.constant 0 : index
    %c0_50 = arith.constant 0 : index
    %72 = vector.load %arg10[%c7_48, %c0_49, %c0_50] : memref<8x2x128xf32, #tpu.memory_space<vmem>>, vector<1x2x128xf32>
    %73 = vector.shape_cast %72 : vector<1x2x128xf32> to vector<2x128xf32>
    %74 = vector.shape_cast %71 : vector<2x128xf32> to vector<1x2x128xf32>
    tpu.vector_store %arg10[%c7_48, %c0_49, %c0_50], %74 {strides = array<i32>} : memref<8x2x128xf32, #tpu.memory_space<vmem>>, vector<1x2x128xf32>,
    %c0_51 = arith.constant 0 : index
    %c0_52 = arith.constant 0 : index
    %75 = vector.load %arg2[%c0_51, %c0_52] : memref<32x128xbf16, #tpu.memory_space<vmem>>, vector<32x128xbf16>
    %c0_53 = arith.constant 0 : index
    %c0_54 = arith.constant 0 : index
    %76 = vector.load %arg5[%c0_53, %c0_54] : memref<32x128xbf16, #tpu.memory_space<vmem>>, vector<32x128xbf16>
    %cst_55 = arith.constant 0.000000e+00 : f32
    %77 = vector.broadcast %cst_55 : f32 to vector<2x32xf32>
    %c0_56 = arith.constant 0 : index
    %c0_57 = arith.constant 0 : index
    %78 = vector.load %arg11[%c0_56, %c0_57] : memref<2x32xf32, #tpu.memory_space<vmem>>, vector<2x32xf32>
    tpu.vector_store %arg11[%c0_56, %c0_57], %77 {strides = array<i32>} : memref<2x32xf32, #tpu.memory_space<vmem>>, vector<2x32xf32>,
    %cst_58 = arith.constant 0.000000e+00 : f32
    %79 = vector.broadcast %cst_58 : f32 to vector<2x32xf32>
    %c0_59 = arith.constant 0 : index
    %c0_60 = arith.constant 0 : index
    %80 = vector.load %arg12[%c0_59, %c0_60] : memref<2x32xf32, #tpu.memory_space<vmem>>, vector<2x32xf32>
    tpu.vector_store %arg12[%c0_59, %c0_60], %79 {strides = array<i32>} : memref<2x32xf32, #tpu.memory_space<vmem>>, vector<2x32xf32>,
    %cst_61 = arith.constant 0.000000e+00 : f32
    %81 = vector.broadcast %cst_61 : f32 to vector<2x32xf32>
    %c0_62 = arith.constant 0 : index
    %c0_63 = arith.constant 0 : index
    %82 = vector.load %arg13[%c0_62, %c0_63] : memref<2x32xf32, #tpu.memory_space<vmem>>, vector<2x32xf32>
    tpu.vector_store %arg13[%c0_62, %c0_63], %81 {strides = array<i32>} : memref<2x32xf32, #tpu.memory_space<vmem>>, vector<2x32xf32>,
    %cst_64 = arith.constant 0.000000e+00 : f32
    %83 = vector.broadcast %cst_64 : f32 to vector<2x32xf32>
    %c0_65 = arith.constant 0 : index
    %c0_66 = arith.constant 0 : index
    %84 = vector.load %arg14[%c0_65, %c0_66] : memref<2x32xf32, #tpu.memory_space<vmem>>, vector<2x32xf32>
    tpu.vector_store %arg14[%c0_65, %c0_66], %83 {strides = array<i32>} : memref<2x32xf32, #tpu.memory_space<vmem>>, vector<2x32xf32>,
    %c0_i32 = arith.constant 0 : i32
    %c7_i32 = arith.constant 7 : i32
    %85 = arith.subi %c7_i32, %c0_i32 : i32
    %86 = arith.index_cast %c0_i32 : i32 to index
    %c0_67 = arith.constant 0 : index
    %c0_68 = arith.constant 0 : index
    %87 = vector.load %arg9[%86, %c0_67, %c0_68] : memref<8x2x128xf32, #tpu.memory_space<vmem>>, vector<1x2x128xf32>
    %88 = vector.shape_cast %87 : vector<1x2x128xf32> to vector<2x128xf32>
    %c0_69 = arith.constant 0 : index
    %c0_70 = arith.constant 0 : index
    %89 = vector.load %arg11[%c0_69, %c0_70] : memref<2x32xf32, #tpu.memory_space<vmem>>, vector<2x32xf32>
    %90 = arith.truncf %89 : vector<2x32xf32> to vector<2x32xbf16>
    %cst_71 = arith.constant dense<0.000000e+00> : vector<2x128xf32>
    %91 = tpu.matmul %90, %75, %cst_71 {dimension_numbers = #tpu.dot_dimension_numbers<[1], [0], [0], [1], [0, 0, 1, 1], [], []>} : vector<2x32xbf16>, vector<32x128xbf16>, vector<2x128xf32> -> vector<2x128xf32>
    %92 = arith.addf %88, %91 : vector<2x128xf32>
    %c0_72 = arith.constant 0 : index
    %c0_73 = arith.constant 0 : index
    %93 = vector.load %arg12[%c0_72, %c0_73] : memref<2x32xf32, #tpu.memory_space<vmem>>, vector<2x32xf32>
    %94 = arith.negf %92 : vector<2x128xf32>
    %95 = math.exp %94 : vector<2x128xf32>
    %cst_74 = arith.constant 1.000000e+00 : f32
    %96 = vector.broadcast %cst_74 : f32 to vector<2x128xf32>
    %97 = arith.addf %96, %95 : vector<2x128xf32>
    %98 = arith.divf %96, %97 : vector<2x128xf32>
    %99 = math.tanh %92 : vector<2x128xf32>
    %100 = vector.extract_strided_slice %98 {offsets = [0, 0], sizes = [2, 32], strides = [1, 1]} : vector<2x128xf32> to vector<2x32xf32>
    %101 = vector.extract_strided_slice %98 {offsets = [0, 32], sizes = [2, 32], strides = [1, 1]} : vector<2x128xf32> to vector<2x32xf32>
    %102 = vector.extract_strided_slice %98 {offsets = [0, 96], sizes = [2, 32], strides = [1, 1]} : vector<2x128xf32> to vector<2x32xf32>
    %103 = vector.extract_strided_slice %99 {offsets = [0, 64], sizes = [2, 32], strides = [1, 1]} : vector<2x128xf32> to vector<2x32xf32>
    %104 = arith.mulf %101, %93 : vector<2x32xf32>
    %105 = arith.mulf %100, %103 : vector<2x32xf32>
    %106 = arith.addf %104, %105 : vector<2x32xf32>
    %107 = math.tanh %106 : vector<2x32xf32>
    %108 = arith.mulf %102, %107 : vector<2x32xf32>
    %c0_75 = arith.constant 0 : index
    %c0_76 = arith.constant 0 : index
    %109 = vector.load %arg11[%c0_75, %c0_76] : memref<2x32xf32, #tpu.memory_space<vmem>>, vector<2x32xf32>
    tpu.vector_store %arg11[%c0_75, %c0_76], %108 {strides = array<i32>} : memref<2x32xf32, #tpu.memory_space<vmem>>, vector<2x32xf32>,
    %c0_77 = arith.constant 0 : index
    %c0_78 = arith.constant 0 : index
    %110 = vector.load %arg12[%c0_77, %c0_78] : memref<2x32xf32, #tpu.memory_space<vmem>>, vector<2x32xf32>
    tpu.vector_store %arg12[%c0_77, %c0_78], %106 {strides = array<i32>} : memref<2x32xf32, #tpu.memory_space<vmem>>, vector<2x32xf32>,
    %111 = arith.index_cast %85 : i32 to index
    %c0_79 = arith.constant 0 : index
    %c0_80 = arith.constant 0 : index
    %112 = vector.load %arg10[%111, %c0_79, %c0_80] : memref<8x2x128xf32, #tpu.memory_space<vmem>>, vector<1x2x128xf32>
    %113 = vector.shape_cast %112 : vector<1x2x128xf32> to vector<2x128xf32>
    %c0_81 = arith.constant 0 : index
    %c0_82 = arith.constant 0 : index
    %114 = vector.load %arg13[%c0_81, %c0_82] : memref<2x32xf32, #tpu.memory_space<vmem>>, vector<2x32xf32>
    %115 = arith.truncf %114 : vector<2x32xf32> to vector<2x32xbf16>
    %cst_83 = arith.constant dense<0.000000e+00> : vector<2x128xf32>
    %116 = tpu.matmul %115, %76, %cst_83 {dimension_numbers = #tpu.dot_dimension_numbers<[1], [0], [0], [1], [0, 0, 1, 1], [], []>} : vector<2x32xbf16>, vector<32x128xbf16>, vector<2x128xf32> -> vector<2x128xf32>
    %117 = arith.addf %113, %116 : vector<2x128xf32>
    %c0_84 = arith.constant 0 : index
    %c0_85 = arith.constant 0 : index
    %118 = vector.load %arg14[%c0_84, %c0_85] : memref<2x32xf32, #tpu.memory_space<vmem>>, vector<2x32xf32>
    %119 = arith.negf %117 : vector<2x128xf32>
    %120 = math.exp %119 : vector<2x128xf32>
    %cst_86 = arith.constant 1.000000e+00 : f32
    %121 = vector.broadcast %cst_86 : f32 to vector<2x128xf32>
    %122 = arith.addf %121, %120 : vector<2x128xf32>
    %123 = arith.divf %121, %122 : vector<2x128xf32>
    %124 = math.tanh %117 : vector<2x128xf32>
    %125 = vector.extract_strided_slice %123 {offsets = [0, 0], sizes = [2, 32], strides = [1, 1]} : vector<2x128xf32> to vector<2x32xf32>
    %126 = vector.extract_strided_slice %123 {offsets = [0, 32], sizes = [2, 32], strides = [1, 1]} : vector<2x128xf32> to vector<2x32xf32>
    %127 = vector.extract_strided_slice %123 {offsets = [0, 96], sizes = [2, 32], strides = [1, 1]} : vector<2x128xf32> to vector<2x32xf32>
    %128 = vector.extract_strided_slice %124 {offsets = [0, 64], sizes = [2, 32], strides = [1, 1]} : vector<2x128xf32> to vector<2x32xf32>
    %129 = arith.mulf %126, %118 : vector<2x32xf32>
    %130 = arith.mulf %125, %128 : vector<2x32xf32>
    %131 = arith.addf %129, %130 : vector<2x32xf32>
    %132 = math.tanh %131 : vector<2x32xf32>
    %133 = arith.mulf %127, %132 : vector<2x32xf32>
    %c0_87 = arith.constant 0 : index
    %c0_88 = arith.constant 0 : index
    %134 = vector.load %arg13[%c0_87, %c0_88] : memref<2x32xf32, #tpu.memory_space<vmem>>, vector<2x32xf32>
    tpu.vector_store %arg13[%c0_87, %c0_88], %133 {strides = array<i32>} : memref<2x32xf32, #tpu.memory_space<vmem>>, vector<2x32xf32>,
    %c0_89 = arith.constant 0 : index
    %c0_90 = arith.constant 0 : index
    %135 = vector.load %arg14[%c0_89, %c0_90] : memref<2x32xf32, #tpu.memory_space<vmem>>, vector<2x32xf32>
    tpu.vector_store %arg14[%c0_89, %c0_90], %131 {strides = array<i32>} : memref<2x32xf32, #tpu.memory_space<vmem>>, vector<2x32xf32>,
    %136 = arith.truncf %108 : vector<2x32xf32> to vector<2x32xbf16>
    %137 = arith.index_cast %c0_i32 : i32 to index
    %c0_91 = arith.constant 0 : index
    %c0_92 = arith.constant 0 : index
    %138 = vector.load %arg7[%137, %c0_91, %c0_92] : memref<8x2x64xbf16, #tpu.memory_space<vmem>>, vector<1x2x32xbf16>
    %139 = vector.shape_cast %138 : vector<1x2x32xbf16> to vector<2x32xbf16>
    %140 = vector.shape_cast %136 : vector<2x32xbf16> to vector<1x2x32xbf16>
    tpu.vector_store %arg7[%137, %c0_91, %c0_92], %140 {strides = array<i32>} : memref<8x2x64xbf16, #tpu.memory_space<vmem>>, vector<1x2x32xbf16>,
    %141 = arith.truncf %133 : vector<2x32xf32> to vector<2x32xbf16>
    %142 = arith.index_cast %85 : i32 to index
    %c0_93 = arith.constant 0 : index
    %c32 = arith.constant 32 : index
    %143 = vector.load %arg7[%142, %c0_93, %c32] : memref<8x2x64xbf16, #tpu.memory_space<vmem>>, vector<1x2x32xbf16>
    %144 = vector.shape_cast %143 : vector<1x2x32xbf16> to vector<2x32xbf16>
    %145 = vector.shape_cast %141 : vector<2x32xbf16> to vector<1x2x32xbf16>
    tpu.vector_store %arg7[%142, %c0_93, %c32], %145 {strides = array<i32>} : memref<8x2x64xbf16, #tpu.memory_space<vmem>>, vector<1x2x32xbf16>,
    %c1_i32 = arith.constant 1 : i32
    %c7_i32_94 = arith.constant 7 : i32
    %146 = arith.subi %c7_i32_94, %c1_i32 : i32
    %147 = arith.index_cast %c1_i32 : i32 to index
    %c0_95 = arith.constant 0 : index
    %c0_96 = arith.constant 0 : index
    %148 = vector.load %arg9[%147, %c0_95, %c0_96] : memref<8x2x128xf32, #tpu.memory_space<vmem>>, vector<1x2x128xf32>
    %149 = vector.shape_cast %148 : vector<1x2x128xf32> to vector<2x128xf32>
    %c0_97 = arith.constant 0 : index
    %c0_98 = arith.constant 0 : index
    %150 = vector.load %arg11[%c0_97, %c0_98] : memref<2x32xf32, #tpu.memory_space<vmem>>, vector<2x32xf32>
    %151 = arith.truncf %150 : vector<2x32xf32> to vector<2x32xbf16>
    %cst_99 = arith.constant dense<0.000000e+00> : vector<2x128xf32>
    %152 = tpu.matmul %151, %75, %cst_99 {dimension_numbers = #tpu.dot_dimension_numbers<[1], [0], [0], [1], [0, 0, 1, 1], [], []>} : vector<2x32xbf16>, vector<32x128xbf16>, vector<2x128xf32> -> vector<2x128xf32>
    %153 = arith.addf %149, %152 : vector<2x128xf32>
    %c0_100 = arith.constant 0 : index
    %c0_101 = arith.constant 0 : index
    %154 = vector.load %arg12[%c0_100, %c0_101] : memref<2x32xf32, #tpu.memory_space<vmem>>, vector<2x32xf32>
    %155 = arith.negf %153 : vector<2x128xf32>
    %156 = math.exp %155 : vector<2x128xf32>
    %cst_102 = arith.constant 1.000000e+00 : f32
    %157 = vector.broadcast %cst_102 : f32 to vector<2x128xf32>
    %158 = arith.addf %157, %156 : vector<2x128xf32>
    %159 = arith.divf %157, %158 : vector<2x128xf32>
    %160 = math.tanh %153 : vector<2x128xf32>
    %161 = vector.extract_strided_slice %159 {offsets = [0, 0], sizes = [2, 32], strides = [1, 1]} : vector<2x128xf32> to vector<2x32xf32>
    %162 = vector.extract_strided_slice %159 {offsets = [0, 32], sizes = [2, 32], strides = [1, 1]} : vector<2x128xf32> to vector<2x32xf32>
    %163 = vector.extract_strided_slice %159 {offsets = [0, 96], sizes = [2, 32], strides = [1, 1]} : vector<2x128xf32> to vector<2x32xf32>
    %164 = vector.extract_strided_slice %160 {offsets = [0, 64], sizes = [2, 32], strides = [1, 1]} : vector<2x128xf32> to vector<2x32xf32>
    %165 = arith.mulf %162, %154 : vector<2x32xf32>
    %166 = arith.mulf %161, %164 : vector<2x32xf32>
    %167 = arith.addf %165, %166 : vector<2x32xf32>
    %168 = math.tanh %167 : vector<2x32xf32>
    %169 = arith.mulf %163, %168 : vector<2x32xf32>
    %c0_103 = arith.constant 0 : index
    %c0_104 = arith.constant 0 : index
    %170 = vector.load %arg11[%c0_103, %c0_104] : memref<2x32xf32, #tpu.memory_space<vmem>>, vector<2x32xf32>
    tpu.vector_store %arg11[%c0_103, %c0_104], %169 {strides = array<i32>} : memref<2x32xf32, #tpu.memory_space<vmem>>, vector<2x32xf32>,
    %c0_105 = arith.constant 0 : index
    %c0_106 = arith.constant 0 : index
    %171 = vector.load %arg12[%c0_105, %c0_106] : memref<2x32xf32, #tpu.memory_space<vmem>>, vector<2x32xf32>
    tpu.vector_store %arg12[%c0_105, %c0_106], %167 {strides = array<i32>} : memref<2x32xf32, #tpu.memory_space<vmem>>, vector<2x32xf32>,
    %172 = arith.index_cast %146 : i32 to index
    %c0_107 = arith.constant 0 : index
    %c0_108 = arith.constant 0 : index
    %173 = vector.load %arg10[%172, %c0_107, %c0_108] : memref<8x2x128xf32, #tpu.memory_space<vmem>>, vector<1x2x128xf32>
    %174 = vector.shape_cast %173 : vector<1x2x128xf32> to vector<2x128xf32>
    %c0_109 = arith.constant 0 : index
    %c0_110 = arith.constant 0 : index
    %175 = vector.load %arg13[%c0_109, %c0_110] : memref<2x32xf32, #tpu.memory_space<vmem>>, vector<2x32xf32>
    %176 = arith.truncf %175 : vector<2x32xf32> to vector<2x32xbf16>
    %cst_111 = arith.constant dense<0.000000e+00> : vector<2x128xf32>
    %177 = tpu.matmul %176, %76, %cst_111 {dimension_numbers = #tpu.dot_dimension_numbers<[1], [0], [0], [1], [0, 0, 1, 1], [], []>} : vector<2x32xbf16>, vector<32x128xbf16>, vector<2x128xf32> -> vector<2x128xf32>
    %178 = arith.addf %174, %177 : vector<2x128xf32>
    %c0_112 = arith.constant 0 : index
    %c0_113 = arith.constant 0 : index
    %179 = vector.load %arg14[%c0_112, %c0_113] : memref<2x32xf32, #tpu.memory_space<vmem>>, vector<2x32xf32>
    %180 = arith.negf %178 : vector<2x128xf32>
    %181 = math.exp %180 : vector<2x128xf32>
    %cst_114 = arith.constant 1.000000e+00 : f32
    %182 = vector.broadcast %cst_114 : f32 to vector<2x128xf32>
    %183 = arith.addf %182, %181 : vector<2x128xf32>
    %184 = arith.divf %182, %183 : vector<2x128xf32>
    %185 = math.tanh %178 : vector<2x128xf32>
    %186 = vector.extract_strided_slice %184 {offsets = [0, 0], sizes = [2, 32], strides = [1, 1]} : vector<2x128xf32> to vector<2x32xf32>
    %187 = vector.extract_strided_slice %184 {offsets = [0, 32], sizes = [2, 32], strides = [1, 1]} : vector<2x128xf32> to vector<2x32xf32>
    %188 = vector.extract_strided_slice %184 {offsets = [0, 96], sizes = [2, 32], strides = [1, 1]} : vector<2x128xf32> to vector<2x32xf32>
    %189 = vector.extract_strided_slice %185 {offsets = [0, 64], sizes = [2, 32], strides = [1, 1]} : vector<2x128xf32> to vector<2x32xf32>
    %190 = arith.mulf %187, %179 : vector<2x32xf32>
    %191 = arith.mulf %186, %189 : vector<2x32xf32>
    %192 = arith.addf %190, %191 : vector<2x32xf32>
    %193 = math.tanh %192 : vector<2x32xf32>
    %194 = arith.mulf %188, %193 : vector<2x32xf32>
    %c0_115 = arith.constant 0 : index
    %c0_116 = arith.constant 0 : index
    %195 = vector.load %arg13[%c0_115, %c0_116] : memref<2x32xf32, #tpu.memory_space<vmem>>, vector<2x32xf32>
    tpu.vector_store %arg13[%c0_115, %c0_116], %194 {strides = array<i32>} : memref<2x32xf32, #tpu.memory_space<vmem>>, vector<2x32xf32>,
    %c0_117 = arith.constant 0 : index
    %c0_118 = arith.constant 0 : index
    %196 = vector.load %arg14[%c0_117, %c0_118] : memref<2x32xf32, #tpu.memory_space<vmem>>, vector<2x32xf32>
    tpu.vector_store %arg14[%c0_117, %c0_118], %192 {strides = array<i32>} : memref<2x32xf32, #tpu.memory_space<vmem>>, vector<2x32xf32>,
    %197 = arith.truncf %169 : vector<2x32xf32> to vector<2x32xbf16>
    %198 = arith.index_cast %c1_i32 : i32 to index
    %c0_119 = arith.constant 0 : index
    %c0_120 = arith.constant 0 : index
    %199 = vector.load %arg7[%198, %c0_119, %c0_120] : memref<8x2x64xbf16, #tpu.memory_space<vmem>>, vector<1x2x32xbf16>
    %200 = vector.shape_cast %199 : vector<1x2x32xbf16> to vector<2x32xbf16>
    %201 = vector.shape_cast %197 : vector<2x32xbf16> to vector<1x2x32xbf16>
    tpu.vector_store %arg7[%198, %c0_119, %c0_120], %201 {strides = array<i32>} : memref<8x2x64xbf16, #tpu.memory_space<vmem>>, vector<1x2x32xbf16>,
    %202 = arith.truncf %194 : vector<2x32xf32> to vector<2x32xbf16>
    %203 = arith.index_cast %146 : i32 to index
    %c0_121 = arith.constant 0 : index
    %c32_122 = arith.constant 32 : index
    %204 = vector.load %arg7[%203, %c0_121, %c32_122] : memref<8x2x64xbf16, #tpu.memory_space<vmem>>, vector<1x2x32xbf16>
    %205 = vector.shape_cast %204 : vector<1x2x32xbf16> to vector<2x32xbf16>
    %206 = vector.shape_cast %202 : vector<2x32xbf16> to vector<1x2x32xbf16>
    tpu.vector_store %arg7[%203, %c0_121, %c32_122], %206 {strides = array<i32>} : memref<8x2x64xbf16, #tpu.memory_space<vmem>>, vector<1x2x32xbf16>,
    %c2_i32 = arith.constant 2 : i32
    %c7_i32_123 = arith.constant 7 : i32
    %207 = arith.subi %c7_i32_123, %c2_i32 : i32
    %208 = arith.index_cast %c2_i32 : i32 to index
    %c0_124 = arith.constant 0 : index
    %c0_125 = arith.constant 0 : index
    %209 = vector.load %arg9[%208, %c0_124, %c0_125] : memref<8x2x128xf32, #tpu.memory_space<vmem>>, vector<1x2x128xf32>
    %210 = vector.shape_cast %209 : vector<1x2x128xf32> to vector<2x128xf32>
    %c0_126 = arith.constant 0 : index
    %c0_127 = arith.constant 0 : index
    %211 = vector.load %arg11[%c0_126, %c0_127] : memref<2x32xf32, #tpu.memory_space<vmem>>, vector<2x32xf32>
    %212 = arith.truncf %211 : vector<2x32xf32> to vector<2x32xbf16>
    %cst_128 = arith.constant dense<0.000000e+00> : vector<2x128xf32>
    %213 = tpu.matmul %212, %75, %cst_128 {dimension_numbers = #tpu.dot_dimension_numbers<[1], [0], [0], [1], [0, 0, 1, 1], [], []>} : vector<2x32xbf16>, vector<32x128xbf16>, vector<2x128xf32> -> vector<2x128xf32>
    %214 = arith.addf %210, %213 : vector<2x128xf32>
    %c0_129 = arith.constant 0 : index
    %c0_130 = arith.constant 0 : index
    %215 = vector.load %arg12[%c0_129, %c0_130] : memref<2x32xf32, #tpu.memory_space<vmem>>, vector<2x32xf32>
    %216 = arith.negf %214 : vector<2x128xf32>
    %217 = math.exp %216 : vector<2x128xf32>
    %cst_131 = arith.constant 1.000000e+00 : f32
    %218 = vector.broadcast %cst_131 : f32 to vector<2x128xf32>
    %219 = arith.addf %218, %217 : vector<2x128xf32>
    %220 = arith.divf %218, %219 : vector<2x128xf32>
    %221 = math.tanh %214 : vector<2x128xf32>
    %222 = vector.extract_strided_slice %220 {offsets = [0, 0], sizes = [2, 32], strides = [1, 1]} : vector<2x128xf32> to vector<2x32xf32>
    %223 = vector.extract_strided_slice %220 {offsets = [0, 32], sizes = [2, 32], strides = [1, 1]} : vector<2x128xf32> to vector<2x32xf32>
    %224 = vector.extract_strided_slice %220 {offsets = [0, 96], sizes = [2, 32], strides = [1, 1]} : vector<2x128xf32> to vector<2x32xf32>
    %225 = vector.extract_strided_slice %221 {offsets = [0, 64], sizes = [2, 32], strides = [1, 1]} : vector<2x128xf32> to vector<2x32xf32>
    %226 = arith.mulf %223, %215 : vector<2x32xf32>
    %227 = arith.mulf %222, %225 : vector<2x32xf32>
    %228 = arith.addf %226, %227 : vector<2x32xf32>
    %229 = math.tanh %228 : vector<2x32xf32>
    %230 = arith.mulf %224, %229 : vector<2x32xf32>
    %c0_132 = arith.constant 0 : index
    %c0_133 = arith.constant 0 : index
    %231 = vector.load %arg11[%c0_132, %c0_133] : memref<2x32xf32, #tpu.memory_space<vmem>>, vector<2x32xf32>
    tpu.vector_store %arg11[%c0_132, %c0_133], %230 {strides = array<i32>} : memref<2x32xf32, #tpu.memory_space<vmem>>, vector<2x32xf32>,
    %c0_134 = arith.constant 0 : index
    %c0_135 = arith.constant 0 : index
    %232 = vector.load %arg12[%c0_134, %c0_135] : memref<2x32xf32, #tpu.memory_space<vmem>>, vector<2x32xf32>
    tpu.vector_store %arg12[%c0_134, %c0_135], %228 {strides = array<i32>} : memref<2x32xf32, #tpu.memory_space<vmem>>, vector<2x32xf32>,
    %233 = arith.index_cast %207 : i32 to index
    %c0_136 = arith.constant 0 : index
    %c0_137 = arith.constant 0 : index
    %234 = vector.load %arg10[%233, %c0_136, %c0_137] : memref<8x2x128xf32, #tpu.memory_space<vmem>>, vector<1x2x128xf32>
    %235 = vector.shape_cast %234 : vector<1x2x128xf32> to vector<2x128xf32>
    %c0_138 = arith.constant 0 : index
    %c0_139 = arith.constant 0 : index
    %236 = vector.load %arg13[%c0_138, %c0_139] : memref<2x32xf32, #tpu.memory_space<vmem>>, vector<2x32xf32>
    %237 = arith.truncf %236 : vector<2x32xf32> to vector<2x32xbf16>
    %cst_140 = arith.constant dense<0.000000e+00> : vector<2x128xf32>
    %238 = tpu.matmul %237, %76, %cst_140 {dimension_numbers = #tpu.dot_dimension_numbers<[1], [0], [0], [1], [0, 0, 1, 1], [], []>} : vector<2x32xbf16>, vector<32x128xbf16>, vector<2x128xf32> -> vector<2x128xf32>
    %239 = arith.addf %235, %238 : vector<2x128xf32>
    %c0_141 = arith.constant 0 : index
    %c0_142 = arith.constant 0 : index
    %240 = vector.load %arg14[%c0_141, %c0_142] : memref<2x32xf32, #tpu.memory_space<vmem>>, vector<2x32xf32>
    %241 = arith.negf %239 : vector<2x128xf32>
    %242 = math.exp %241 : vector<2x128xf32>
    %cst_143 = arith.constant 1.000000e+00 : f32
    %243 = vector.broadcast %cst_143 : f32 to vector<2x128xf32>
    %244 = arith.addf %243, %242 : vector<2x128xf32>
    %245 = arith.divf %243, %244 : vector<2x128xf32>
    %246 = math.tanh %239 : vector<2x128xf32>
    %247 = vector.extract_strided_slice %245 {offsets = [0, 0], sizes = [2, 32], strides = [1, 1]} : vector<2x128xf32> to vector<2x32xf32>
    %248 = vector.extract_strided_slice %245 {offsets = [0, 32], sizes = [2, 32], strides = [1, 1]} : vector<2x128xf32> to vector<2x32xf32>
    %249 = vector.extract_strided_slice %245 {offsets = [0, 96], sizes = [2, 32], strides = [1, 1]} : vector<2x128xf32> to vector<2x32xf32>
    %250 = vector.extract_strided_slice %246 {offsets = [0, 64], sizes = [2, 32], strides = [1, 1]} : vector<2x128xf32> to vector<2x32xf32>
    %251 = arith.mulf %248, %240 : vector<2x32xf32>
    %252 = arith.mulf %247, %250 : vector<2x32xf32>
    %253 = arith.addf %251, %252 : vector<2x32xf32>
    %254 = math.tanh %253 : vector<2x32xf32>
    %255 = arith.mulf %249, %254 : vector<2x32xf32>
    %c0_144 = arith.constant 0 : index
    %c0_145 = arith.constant 0 : index
    %256 = vector.load %arg13[%c0_144, %c0_145] : memref<2x32xf32, #tpu.memory_space<vmem>>, vector<2x32xf32>
    tpu.vector_store %arg13[%c0_144, %c0_145], %255 {strides = array<i32>} : memref<2x32xf32, #tpu.memory_space<vmem>>, vector<2x32xf32>,
    %c0_146 = arith.constant 0 : index
    %c0_147 = arith.constant 0 : index
    %257 = vector.load %arg14[%c0_146, %c0_147] : memref<2x32xf32, #tpu.memory_space<vmem>>, vector<2x32xf32>
    tpu.vector_store %arg14[%c0_146, %c0_147], %253 {strides = array<i32>} : memref<2x32xf32, #tpu.memory_space<vmem>>, vector<2x32xf32>,
    %258 = arith.truncf %230 : vector<2x32xf32> to vector<2x32xbf16>
    %259 = arith.index_cast %c2_i32 : i32 to index
    %c0_148 = arith.constant 0 : index
    %c0_149 = arith.constant 0 : index
    %260 = vector.load %arg7[%259, %c0_148, %c0_149] : memref<8x2x64xbf16, #tpu.memory_space<vmem>>, vector<1x2x32xbf16>
    %261 = vector.shape_cast %260 : vector<1x2x32xbf16> to vector<2x32xbf16>
    %262 = vector.shape_cast %258 : vector<2x32xbf16> to vector<1x2x32xbf16>
    tpu.vector_store %arg7[%259, %c0_148, %c0_149], %262 {strides = array<i32>} : memref<8x2x64xbf16, #tpu.memory_space<vmem>>, vector<1x2x32xbf16>,
    %263 = arith.truncf %255 : vector<2x32xf32> to vector<2x32xbf16>
    %264 = arith.index_cast %207 : i32 to index
    %c0_150 = arith.constant 0 : index
    %c32_151 = arith.constant 32 : index
    %265 = vector.load %arg7[%264, %c0_150, %c32_151] : memref<8x2x64xbf16, #tpu.memory_space<vmem>>, vector<1x2x32xbf16>
    %266 = vector.shape_cast %265 : vector<1x2x32xbf16> to vector<2x32xbf16>
    %267 = vector.shape_cast %263 : vector<2x32xbf16> to vector<1x2x32xbf16>
    tpu.vector_store %arg7[%264, %c0_150, %c32_151], %267 {strides = array<i32>} : memref<8x2x64xbf16, #tpu.memory_space<vmem>>, vector<1x2x32xbf16>,
    %c3_i32 = arith.constant 3 : i32
    %c7_i32_152 = arith.constant 7 : i32
    %268 = arith.subi %c7_i32_152, %c3_i32 : i32
    %269 = arith.index_cast %c3_i32 : i32 to index
    %c0_153 = arith.constant 0 : index
    %c0_154 = arith.constant 0 : index
    %270 = vector.load %arg9[%269, %c0_153, %c0_154] : memref<8x2x128xf32, #tpu.memory_space<vmem>>, vector<1x2x128xf32>
    %271 = vector.shape_cast %270 : vector<1x2x128xf32> to vector<2x128xf32>
    %c0_155 = arith.constant 0 : index
    %c0_156 = arith.constant 0 : index
    %272 = vector.load %arg11[%c0_155, %c0_156] : memref<2x32xf32, #tpu.memory_space<vmem>>, vector<2x32xf32>
    %273 = arith.truncf %272 : vector<2x32xf32> to vector<2x32xbf16>
    %cst_157 = arith.constant dense<0.000000e+00> : vector<2x128xf32>
    %274 = tpu.matmul %273, %75, %cst_157 {dimension_numbers = #tpu.dot_dimension_numbers<[1], [0], [0], [1], [0, 0, 1, 1], [], []>} : vector<2x32xbf16>, vector<32x128xbf16>, vector<2x128xf32> -> vector<2x128xf32>
    %275 = arith.addf %271, %274 : vector<2x128xf32>
    %c0_158 = arith.constant 0 : index
    %c0_159 = arith.constant 0 : index
    %276 = vector.load %arg12[%c0_158, %c0_159] : memref<2x32xf32, #tpu.memory_space<vmem>>, vector<2x32xf32>
    %277 = arith.negf %275 : vector<2x128xf32>
    %278 = math.exp %277 : vector<2x128xf32>
    %cst_160 = arith.constant 1.000000e+00 : f32
    %279 = vector.broadcast %cst_160 : f32 to vector<2x128xf32>
    %280 = arith.addf %279, %278 : vector<2x128xf32>
    %281 = arith.divf %279, %280 : vector<2x128xf32>
    %282 = math.tanh %275 : vector<2x128xf32>
    %283 = vector.extract_strided_slice %281 {offsets = [0, 0], sizes = [2, 32], strides = [1, 1]} : vector<2x128xf32> to vector<2x32xf32>
    %284 = vector.extract_strided_slice %281 {offsets = [0, 32], sizes = [2, 32], strides = [1, 1]} : vector<2x128xf32> to vector<2x32xf32>
    %285 = vector.extract_strided_slice %281 {offsets = [0, 96], sizes = [2, 32], strides = [1, 1]} : vector<2x128xf32> to vector<2x32xf32>
    %286 = vector.extract_strided_slice %282 {offsets = [0, 64], sizes = [2, 32], strides = [1, 1]} : vector<2x128xf32> to vector<2x32xf32>
    %287 = arith.mulf %284, %276 : vector<2x32xf32>
    %288 = arith.mulf %283, %286 : vector<2x32xf32>
    %289 = arith.addf %287, %288 : vector<2x32xf32>
    %290 = math.tanh %289 : vector<2x32xf32>
    %291 = arith.mulf %285, %290 : vector<2x32xf32>
    %c0_161 = arith.constant 0 : index
    %c0_162 = arith.constant 0 : index
    %292 = vector.load %arg11[%c0_161, %c0_162] : memref<2x32xf32, #tpu.memory_space<vmem>>, vector<2x32xf32>
    tpu.vector_store %arg11[%c0_161, %c0_162], %291 {strides = array<i32>} : memref<2x32xf32, #tpu.memory_space<vmem>>, vector<2x32xf32>,
    %c0_163 = arith.constant 0 : index
    %c0_164 = arith.constant 0 : index
    %293 = vector.load %arg12[%c0_163, %c0_164] : memref<2x32xf32, #tpu.memory_space<vmem>>, vector<2x32xf32>
    tpu.vector_store %arg12[%c0_163, %c0_164], %289 {strides = array<i32>} : memref<2x32xf32, #tpu.memory_space<vmem>>, vector<2x32xf32>,
    %294 = arith.index_cast %268 : i32 to index
    %c0_165 = arith.constant 0 : index
    %c0_166 = arith.constant 0 : index
    %295 = vector.load %arg10[%294, %c0_165, %c0_166] : memref<8x2x128xf32, #tpu.memory_space<vmem>>, vector<1x2x128xf32>
    %296 = vector.shape_cast %295 : vector<1x2x128xf32> to vector<2x128xf32>
    %c0_167 = arith.constant 0 : index
    %c0_168 = arith.constant 0 : index
    %297 = vector.load %arg13[%c0_167, %c0_168] : memref<2x32xf32, #tpu.memory_space<vmem>>, vector<2x32xf32>
    %298 = arith.truncf %297 : vector<2x32xf32> to vector<2x32xbf16>
    %cst_169 = arith.constant dense<0.000000e+00> : vector<2x128xf32>
    %299 = tpu.matmul %298, %76, %cst_169 {dimension_numbers = #tpu.dot_dimension_numbers<[1], [0], [0], [1], [0, 0, 1, 1], [], []>} : vector<2x32xbf16>, vector<32x128xbf16>, vector<2x128xf32> -> vector<2x128xf32>
    %300 = arith.addf %296, %299 : vector<2x128xf32>
    %c0_170 = arith.constant 0 : index
    %c0_171 = arith.constant 0 : index
    %301 = vector.load %arg14[%c0_170, %c0_171] : memref<2x32xf32, #tpu.memory_space<vmem>>, vector<2x32xf32>
    %302 = arith.negf %300 : vector<2x128xf32>
    %303 = math.exp %302 : vector<2x128xf32>
    %cst_172 = arith.constant 1.000000e+00 : f32
    %304 = vector.broadcast %cst_172 : f32 to vector<2x128xf32>
    %305 = arith.addf %304, %303 : vector<2x128xf32>
    %306 = arith.divf %304, %305 : vector<2x128xf32>
    %307 = math.tanh %300 : vector<2x128xf32>
    %308 = vector.extract_strided_slice %306 {offsets = [0, 0], sizes = [2, 32], strides = [1, 1]} : vector<2x128xf32> to vector<2x32xf32>
    %309 = vector.extract_strided_slice %306 {offsets = [0, 32], sizes = [2, 32], strides = [1, 1]} : vector<2x128xf32> to vector<2x32xf32>
    %310 = vector.extract_strided_slice %306 {offsets = [0, 96], sizes = [2, 32], strides = [1, 1]} : vector<2x128xf32> to vector<2x32xf32>
    %311 = vector.extract_strided_slice %307 {offsets = [0, 64], sizes = [2, 32], strides = [1, 1]} : vector<2x128xf32> to vector<2x32xf32>
    %312 = arith.mulf %309, %301 : vector<2x32xf32>
    %313 = arith.mulf %308, %311 : vector<2x32xf32>
    %314 = arith.addf %312, %313 : vector<2x32xf32>
    %315 = math.tanh %314 : vector<2x32xf32>
    %316 = arith.mulf %310, %315 : vector<2x32xf32>
    %c0_173 = arith.constant 0 : index
    %c0_174 = arith.constant 0 : index
    %317 = vector.load %arg13[%c0_173, %c0_174] : memref<2x32xf32, #tpu.memory_space<vmem>>, vector<2x32xf32>
    tpu.vector_store %arg13[%c0_173, %c0_174], %316 {strides = array<i32>} : memref<2x32xf32, #tpu.memory_space<vmem>>, vector<2x32xf32>,
    %c0_175 = arith.constant 0 : index
    %c0_176 = arith.constant 0 : index
    %318 = vector.load %arg14[%c0_175, %c0_176] : memref<2x32xf32, #tpu.memory_space<vmem>>, vector<2x32xf32>
    tpu.vector_store %arg14[%c0_175, %c0_176], %314 {strides = array<i32>} : memref<2x32xf32, #tpu.memory_space<vmem>>, vector<2x32xf32>,
    %319 = arith.truncf %291 : vector<2x32xf32> to vector<2x32xbf16>
    %320 = arith.index_cast %c3_i32 : i32 to index
    %c0_177 = arith.constant 0 : index
    %c0_178 = arith.constant 0 : index
    %321 = vector.load %arg7[%320, %c0_177, %c0_178] : memref<8x2x64xbf16, #tpu.memory_space<vmem>>, vector<1x2x32xbf16>
    %322 = vector.shape_cast %321 : vector<1x2x32xbf16> to vector<2x32xbf16>
    %323 = vector.shape_cast %319 : vector<2x32xbf16> to vector<1x2x32xbf16>
    tpu.vector_store %arg7[%320, %c0_177, %c0_178], %323 {strides = array<i32>} : memref<8x2x64xbf16, #tpu.memory_space<vmem>>, vector<1x2x32xbf16>,
    %324 = arith.truncf %316 : vector<2x32xf32> to vector<2x32xbf16>
    %325 = arith.index_cast %268 : i32 to index
    %c0_179 = arith.constant 0 : index
    %c32_180 = arith.constant 32 : index
    %326 = vector.load %arg7[%325, %c0_179, %c32_180] : memref<8x2x64xbf16, #tpu.memory_space<vmem>>, vector<1x2x32xbf16>
    %327 = vector.shape_cast %326 : vector<1x2x32xbf16> to vector<2x32xbf16>
    %328 = vector.shape_cast %324 : vector<2x32xbf16> to vector<1x2x32xbf16>
    tpu.vector_store %arg7[%325, %c0_179, %c32_180], %328 {strides = array<i32>} : memref<8x2x64xbf16, #tpu.memory_space<vmem>>, vector<1x2x32xbf16>,
    %c4_i32 = arith.constant 4 : i32
    %c7_i32_181 = arith.constant 7 : i32
    %329 = arith.subi %c7_i32_181, %c4_i32 : i32
    %330 = arith.index_cast %c4_i32 : i32 to index
    %c0_182 = arith.constant 0 : index
    %c0_183 = arith.constant 0 : index
    %331 = vector.load %arg9[%330, %c0_182, %c0_183] : memref<8x2x128xf32, #tpu.memory_space<vmem>>, vector<1x2x128xf32>
    %332 = vector.shape_cast %331 : vector<1x2x128xf32> to vector<2x128xf32>
    %c0_184 = arith.constant 0 : index
    %c0_185 = arith.constant 0 : index
    %333 = vector.load %arg11[%c0_184, %c0_185] : memref<2x32xf32, #tpu.memory_space<vmem>>, vector<2x32xf32>
    %334 = arith.truncf %333 : vector<2x32xf32> to vector<2x32xbf16>
    %cst_186 = arith.constant dense<0.000000e+00> : vector<2x128xf32>
    %335 = tpu.matmul %334, %75, %cst_186 {dimension_numbers = #tpu.dot_dimension_numbers<[1], [0], [0], [1], [0, 0, 1, 1], [], []>} : vector<2x32xbf16>, vector<32x128xbf16>, vector<2x128xf32> -> vector<2x128xf32>
    %336 = arith.addf %332, %335 : vector<2x128xf32>
    %c0_187 = arith.constant 0 : index
    %c0_188 = arith.constant 0 : index
    %337 = vector.load %arg12[%c0_187, %c0_188] : memref<2x32xf32, #tpu.memory_space<vmem>>, vector<2x32xf32>
    %338 = arith.negf %336 : vector<2x128xf32>
    %339 = math.exp %338 : vector<2x128xf32>
    %cst_189 = arith.constant 1.000000e+00 : f32
    %340 = vector.broadcast %cst_189 : f32 to vector<2x128xf32>
    %341 = arith.addf %340, %339 : vector<2x128xf32>
    %342 = arith.divf %340, %341 : vector<2x128xf32>
    %343 = math.tanh %336 : vector<2x128xf32>
    %344 = vector.extract_strided_slice %342 {offsets = [0, 0], sizes = [2, 32], strides = [1, 1]} : vector<2x128xf32> to vector<2x32xf32>
    %345 = vector.extract_strided_slice %342 {offsets = [0, 32], sizes = [2, 32], strides = [1, 1]} : vector<2x128xf32> to vector<2x32xf32>
    %346 = vector.extract_strided_slice %342 {offsets = [0, 96], sizes = [2, 32], strides = [1, 1]} : vector<2x128xf32> to vector<2x32xf32>
    %347 = vector.extract_strided_slice %343 {offsets = [0, 64], sizes = [2, 32], strides = [1, 1]} : vector<2x128xf32> to vector<2x32xf32>
    %348 = arith.mulf %345, %337 : vector<2x32xf32>
    %349 = arith.mulf %344, %347 : vector<2x32xf32>
    %350 = arith.addf %348, %349 : vector<2x32xf32>
    %351 = math.tanh %350 : vector<2x32xf32>
    %352 = arith.mulf %346, %351 : vector<2x32xf32>
    %c0_190 = arith.constant 0 : index
    %c0_191 = arith.constant 0 : index
    %353 = vector.load %arg11[%c0_190, %c0_191] : memref<2x32xf32, #tpu.memory_space<vmem>>, vector<2x32xf32>
    tpu.vector_store %arg11[%c0_190, %c0_191], %352 {strides = array<i32>} : memref<2x32xf32, #tpu.memory_space<vmem>>, vector<2x32xf32>,
    %c0_192 = arith.constant 0 : index
    %c0_193 = arith.constant 0 : index
    %354 = vector.load %arg12[%c0_192, %c0_193] : memref<2x32xf32, #tpu.memory_space<vmem>>, vector<2x32xf32>
    tpu.vector_store %arg12[%c0_192, %c0_193], %350 {strides = array<i32>} : memref<2x32xf32, #tpu.memory_space<vmem>>, vector<2x32xf32>,
    %355 = arith.index_cast %329 : i32 to index
    %c0_194 = arith.constant 0 : index
    %c0_195 = arith.constant 0 : index
    %356 = vector.load %arg10[%355, %c0_194, %c0_195] : memref<8x2x128xf32, #tpu.memory_space<vmem>>, vector<1x2x128xf32>
    %357 = vector.shape_cast %356 : vector<1x2x128xf32> to vector<2x128xf32>
    %c0_196 = arith.constant 0 : index
    %c0_197 = arith.constant 0 : index
    %358 = vector.load %arg13[%c0_196, %c0_197] : memref<2x32xf32, #tpu.memory_space<vmem>>, vector<2x32xf32>
    %359 = arith.truncf %358 : vector<2x32xf32> to vector<2x32xbf16>
    %cst_198 = arith.constant dense<0.000000e+00> : vector<2x128xf32>
    %360 = tpu.matmul %359, %76, %cst_198 {dimension_numbers = #tpu.dot_dimension_numbers<[1], [0], [0], [1], [0, 0, 1, 1], [], []>} : vector<2x32xbf16>, vector<32x128xbf16>, vector<2x128xf32> -> vector<2x128xf32>
    %361 = arith.addf %357, %360 : vector<2x128xf32>
    %c0_199 = arith.constant 0 : index
    %c0_200 = arith.constant 0 : index
    %362 = vector.load %arg14[%c0_199, %c0_200] : memref<2x32xf32, #tpu.memory_space<vmem>>, vector<2x32xf32>
    %363 = arith.negf %361 : vector<2x128xf32>
    %364 = math.exp %363 : vector<2x128xf32>
    %cst_201 = arith.constant 1.000000e+00 : f32
    %365 = vector.broadcast %cst_201 : f32 to vector<2x128xf32>
    %366 = arith.addf %365, %364 : vector<2x128xf32>
    %367 = arith.divf %365, %366 : vector<2x128xf32>
    %368 = math.tanh %361 : vector<2x128xf32>
    %369 = vector.extract_strided_slice %367 {offsets = [0, 0], sizes = [2, 32], strides = [1, 1]} : vector<2x128xf32> to vector<2x32xf32>
    %370 = vector.extract_strided_slice %367 {offsets = [0, 32], sizes = [2, 32], strides = [1, 1]} : vector<2x128xf32> to vector<2x32xf32>
    %371 = vector.extract_strided_slice %367 {offsets = [0, 96], sizes = [2, 32], strides = [1, 1]} : vector<2x128xf32> to vector<2x32xf32>
    %372 = vector.extract_strided_slice %368 {offsets = [0, 64], sizes = [2, 32], strides = [1, 1]} : vector<2x128xf32> to vector<2x32xf32>
    %373 = arith.mulf %370, %362 : vector<2x32xf32>
    %374 = arith.mulf %369, %372 : vector<2x32xf32>
    %375 = arith.addf %373, %374 : vector<2x32xf32>
    %376 = math.tanh %375 : vector<2x32xf32>
    %377 = arith.mulf %371, %376 : vector<2x32xf32>
    %c0_202 = arith.constant 0 : index
    %c0_203 = arith.constant 0 : index
    %378 = vector.load %arg13[%c0_202, %c0_203] : memref<2x32xf32, #tpu.memory_space<vmem>>, vector<2x32xf32>
    tpu.vector_store %arg13[%c0_202, %c0_203], %377 {strides = array<i32>} : memref<2x32xf32, #tpu.memory_space<vmem>>, vector<2x32xf32>,
    %c0_204 = arith.constant 0 : index
    %c0_205 = arith.constant 0 : index
    %379 = vector.load %arg14[%c0_204, %c0_205] : memref<2x32xf32, #tpu.memory_space<vmem>>, vector<2x32xf32>
    tpu.vector_store %arg14[%c0_204, %c0_205], %375 {strides = array<i32>} : memref<2x32xf32, #tpu.memory_space<vmem>>, vector<2x32xf32>,
    %380 = arith.truncf %352 : vector<2x32xf32> to vector<2x32xbf16>
    %381 = arith.index_cast %c4_i32 : i32 to index
    %c0_206 = arith.constant 0 : index
    %c0_207 = arith.constant 0 : index
    %382 = vector.load %arg7[%381, %c0_206, %c0_207] : memref<8x2x64xbf16, #tpu.memory_space<vmem>>, vector<1x2x32xbf16>
    %383 = vector.shape_cast %382 : vector<1x2x32xbf16> to vector<2x32xbf16>
    %384 = vector.shape_cast %380 : vector<2x32xbf16> to vector<1x2x32xbf16>
    tpu.vector_store %arg7[%381, %c0_206, %c0_207], %384 {strides = array<i32>} : memref<8x2x64xbf16, #tpu.memory_space<vmem>>, vector<1x2x32xbf16>,
    %385 = arith.truncf %377 : vector<2x32xf32> to vector<2x32xbf16>
    %386 = arith.index_cast %329 : i32 to index
    %c0_208 = arith.constant 0 : index
    %c32_209 = arith.constant 32 : index
    %387 = vector.load %arg7[%386, %c0_208, %c32_209] : memref<8x2x64xbf16, #tpu.memory_space<vmem>>, vector<1x2x32xbf16>
    %388 = vector.shape_cast %387 : vector<1x2x32xbf16> to vector<2x32xbf16>
    %389 = vector.shape_cast %385 : vector<2x32xbf16> to vector<1x2x32xbf16>
    tpu.vector_store %arg7[%386, %c0_208, %c32_209], %389 {strides = array<i32>} : memref<8x2x64xbf16, #tpu.memory_space<vmem>>, vector<1x2x32xbf16>,
    %c5_i32 = arith.constant 5 : i32
    %c7_i32_210 = arith.constant 7 : i32
    %390 = arith.subi %c7_i32_210, %c5_i32 : i32
    %391 = arith.index_cast %c5_i32 : i32 to index
    %c0_211 = arith.constant 0 : index
    %c0_212 = arith.constant 0 : index
    %392 = vector.load %arg9[%391, %c0_211, %c0_212] : memref<8x2x128xf32, #tpu.memory_space<vmem>>, vector<1x2x128xf32>
    %393 = vector.shape_cast %392 : vector<1x2x128xf32> to vector<2x128xf32>
    %c0_213 = arith.constant 0 : index
    %c0_214 = arith.constant 0 : index
    %394 = vector.load %arg11[%c0_213, %c0_214] : memref<2x32xf32, #tpu.memory_space<vmem>>, vector<2x32xf32>
    %395 = arith.truncf %394 : vector<2x32xf32> to vector<2x32xbf16>
    %cst_215 = arith.constant dense<0.000000e+00> : vector<2x128xf32>
    %396 = tpu.matmul %395, %75, %cst_215 {dimension_numbers = #tpu.dot_dimension_numbers<[1], [0], [0], [1], [0, 0, 1, 1], [], []>} : vector<2x32xbf16>, vector<32x128xbf16>, vector<2x128xf32> -> vector<2x128xf32>
    %397 = arith.addf %393, %396 : vector<2x128xf32>
    %c0_216 = arith.constant 0 : index
    %c0_217 = arith.constant 0 : index
    %398 = vector.load %arg12[%c0_216, %c0_217] : memref<2x32xf32, #tpu.memory_space<vmem>>, vector<2x32xf32>
    %399 = arith.negf %397 : vector<2x128xf32>
    %400 = math.exp %399 : vector<2x128xf32>
    %cst_218 = arith.constant 1.000000e+00 : f32
    %401 = vector.broadcast %cst_218 : f32 to vector<2x128xf32>
    %402 = arith.addf %401, %400 : vector<2x128xf32>
    %403 = arith.divf %401, %402 : vector<2x128xf32>
    %404 = math.tanh %397 : vector<2x128xf32>
    %405 = vector.extract_strided_slice %403 {offsets = [0, 0], sizes = [2, 32], strides = [1, 1]} : vector<2x128xf32> to vector<2x32xf32>
    %406 = vector.extract_strided_slice %403 {offsets = [0, 32], sizes = [2, 32], strides = [1, 1]} : vector<2x128xf32> to vector<2x32xf32>
    %407 = vector.extract_strided_slice %403 {offsets = [0, 96], sizes = [2, 32], strides = [1, 1]} : vector<2x128xf32> to vector<2x32xf32>
    %408 = vector.extract_strided_slice %404 {offsets = [0, 64], sizes = [2, 32], strides = [1, 1]} : vector<2x128xf32> to vector<2x32xf32>
    %409 = arith.mulf %406, %398 : vector<2x32xf32>
    %410 = arith.mulf %405, %408 : vector<2x32xf32>
    %411 = arith.addf %409, %410 : vector<2x32xf32>
    %412 = math.tanh %411 : vector<2x32xf32>
    %413 = arith.mulf %407, %412 : vector<2x32xf32>
    %c0_219 = arith.constant 0 : index
    %c0_220 = arith.constant 0 : index
    %414 = vector.load %arg11[%c0_219, %c0_220] : memref<2x32xf32, #tpu.memory_space<vmem>>, vector<2x32xf32>
    tpu.vector_store %arg11[%c0_219, %c0_220], %413 {strides = array<i32>} : memref<2x32xf32, #tpu.memory_space<vmem>>, vector<2x32xf32>,
    %c0_221 = arith.constant 0 : index
    %c0_222 = arith.constant 0 : index
    %415 = vector.load %arg12[%c0_221, %c0_222] : memref<2x32xf32, #tpu.memory_space<vmem>>, vector<2x32xf32>
    tpu.vector_store %arg12[%c0_221, %c0_222], %411 {strides = array<i32>} : memref<2x32xf32, #tpu.memory_space<vmem>>, vector<2x32xf32>,
    %416 = arith.index_cast %390 : i32 to index
    %c0_223 = arith.constant 0 : index
    %c0_224 = arith.constant 0 : index
    %417 = vector.load %arg10[%416, %c0_223, %c0_224] : memref<8x2x128xf32, #tpu.memory_space<vmem>>, vector<1x2x128xf32>
    %418 = vector.shape_cast %417 : vector<1x2x128xf32> to vector<2x128xf32>
    %c0_225 = arith.constant 0 : index
    %c0_226 = arith.constant 0 : index
    %419 = vector.load %arg13[%c0_225, %c0_226] : memref<2x32xf32, #tpu.memory_space<vmem>>, vector<2x32xf32>
    %420 = arith.truncf %419 : vector<2x32xf32> to vector<2x32xbf16>
    %cst_227 = arith.constant dense<0.000000e+00> : vector<2x128xf32>
    %421 = tpu.matmul %420, %76, %cst_227 {dimension_numbers = #tpu.dot_dimension_numbers<[1], [0], [0], [1], [0, 0, 1, 1], [], []>} : vector<2x32xbf16>, vector<32x128xbf16>, vector<2x128xf32> -> vector<2x128xf32>
    %422 = arith.addf %418, %421 : vector<2x128xf32>
    %c0_228 = arith.constant 0 : index
    %c0_229 = arith.constant 0 : index
    %423 = vector.load %arg14[%c0_228, %c0_229] : memref<2x32xf32, #tpu.memory_space<vmem>>, vector<2x32xf32>
    %424 = arith.negf %422 : vector<2x128xf32>
    %425 = math.exp %424 : vector<2x128xf32>
    %cst_230 = arith.constant 1.000000e+00 : f32
    %426 = vector.broadcast %cst_230 : f32 to vector<2x128xf32>
    %427 = arith.addf %426, %425 : vector<2x128xf32>
    %428 = arith.divf %426, %427 : vector<2x128xf32>
    %429 = math.tanh %422 : vector<2x128xf32>
    %430 = vector.extract_strided_slice %428 {offsets = [0, 0], sizes = [2, 32], strides = [1, 1]} : vector<2x128xf32> to vector<2x32xf32>
    %431 = vector.extract_strided_slice %428 {offsets = [0, 32], sizes = [2, 32], strides = [1, 1]} : vector<2x128xf32> to vector<2x32xf32>
    %432 = vector.extract_strided_slice %428 {offsets = [0, 96], sizes = [2, 32], strides = [1, 1]} : vector<2x128xf32> to vector<2x32xf32>
    %433 = vector.extract_strided_slice %429 {offsets = [0, 64], sizes = [2, 32], strides = [1, 1]} : vector<2x128xf32> to vector<2x32xf32>
    %434 = arith.mulf %431, %423 : vector<2x32xf32>
    %435 = arith.mulf %430, %433 : vector<2x32xf32>
    %436 = arith.addf %434, %435 : vector<2x32xf32>
    %437 = math.tanh %436 : vector<2x32xf32>
    %438 = arith.mulf %432, %437 : vector<2x32xf32>
    %c0_231 = arith.constant 0 : index
    %c0_232 = arith.constant 0 : index
    %439 = vector.load %arg13[%c0_231, %c0_232] : memref<2x32xf32, #tpu.memory_space<vmem>>, vector<2x32xf32>
    tpu.vector_store %arg13[%c0_231, %c0_232], %438 {strides = array<i32>} : memref<2x32xf32, #tpu.memory_space<vmem>>, vector<2x32xf32>,
    %c0_233 = arith.constant 0 : index
    %c0_234 = arith.constant 0 : index
    %440 = vector.load %arg14[%c0_233, %c0_234] : memref<2x32xf32, #tpu.memory_space<vmem>>, vector<2x32xf32>
    tpu.vector_store %arg14[%c0_233, %c0_234], %436 {strides = array<i32>} : memref<2x32xf32, #tpu.memory_space<vmem>>, vector<2x32xf32>,
    %441 = arith.truncf %413 : vector<2x32xf32> to vector<2x32xbf16>
    %442 = arith.index_cast %c5_i32 : i32 to index
    %c0_235 = arith.constant 0 : index
    %c0_236 = arith.constant 0 : index
    %443 = vector.load %arg7[%442, %c0_235, %c0_236] : memref<8x2x64xbf16, #tpu.memory_space<vmem>>, vector<1x2x32xbf16>
    %444 = vector.shape_cast %443 : vector<1x2x32xbf16> to vector<2x32xbf16>
    %445 = vector.shape_cast %441 : vector<2x32xbf16> to vector<1x2x32xbf16>
    tpu.vector_store %arg7[%442, %c0_235, %c0_236], %445 {strides = array<i32>} : memref<8x2x64xbf16, #tpu.memory_space<vmem>>, vector<1x2x32xbf16>,
    %446 = arith.truncf %438 : vector<2x32xf32> to vector<2x32xbf16>
    %447 = arith.index_cast %390 : i32 to index
    %c0_237 = arith.constant 0 : index
    %c32_238 = arith.constant 32 : index
    %448 = vector.load %arg7[%447, %c0_237, %c32_238] : memref<8x2x64xbf16, #tpu.memory_space<vmem>>, vector<1x2x32xbf16>
    %449 = vector.shape_cast %448 : vector<1x2x32xbf16> to vector<2x32xbf16>
    %450 = vector.shape_cast %446 : vector<2x32xbf16> to vector<1x2x32xbf16>
    tpu.vector_store %arg7[%447, %c0_237, %c32_238], %450 {strides = array<i32>} : memref<8x2x64xbf16, #tpu.memory_space<vmem>>, vector<1x2x32xbf16>,
    %c6_i32 = arith.constant 6 : i32
    %c7_i32_239 = arith.constant 7 : i32
    %451 = arith.subi %c7_i32_239, %c6_i32 : i32
    %452 = arith.index_cast %c6_i32 : i32 to index
    %c0_240 = arith.constant 0 : index
    %c0_241 = arith.constant 0 : index
    %453 = vector.load %arg9[%452, %c0_240, %c0_241] : memref<8x2x128xf32, #tpu.memory_space<vmem>>, vector<1x2x128xf32>
    %454 = vector.shape_cast %453 : vector<1x2x128xf32> to vector<2x128xf32>
    %c0_242 = arith.constant 0 : index
    %c0_243 = arith.constant 0 : index
    %455 = vector.load %arg11[%c0_242, %c0_243] : memref<2x32xf32, #tpu.memory_space<vmem>>, vector<2x32xf32>
    %456 = arith.truncf %455 : vector<2x32xf32> to vector<2x32xbf16>
    %cst_244 = arith.constant dense<0.000000e+00> : vector<2x128xf32>
    %457 = tpu.matmul %456, %75, %cst_244 {dimension_numbers = #tpu.dot_dimension_numbers<[1], [0], [0], [1], [0, 0, 1, 1], [], []>} : vector<2x32xbf16>, vector<32x128xbf16>, vector<2x128xf32> -> vector<2x128xf32>
    %458 = arith.addf %454, %457 : vector<2x128xf32>
    %c0_245 = arith.constant 0 : index
    %c0_246 = arith.constant 0 : index
    %459 = vector.load %arg12[%c0_245, %c0_246] : memref<2x32xf32, #tpu.memory_space<vmem>>, vector<2x32xf32>
    %460 = arith.negf %458 : vector<2x128xf32>
    %461 = math.exp %460 : vector<2x128xf32>
    %cst_247 = arith.constant 1.000000e+00 : f32
    %462 = vector.broadcast %cst_247 : f32 to vector<2x128xf32>
    %463 = arith.addf %462, %461 : vector<2x128xf32>
    %464 = arith.divf %462, %463 : vector<2x128xf32>
    %465 = math.tanh %458 : vector<2x128xf32>
    %466 = vector.extract_strided_slice %464 {offsets = [0, 0], sizes = [2, 32], strides = [1, 1]} : vector<2x128xf32> to vector<2x32xf32>
    %467 = vector.extract_strided_slice %464 {offsets = [0, 32], sizes = [2, 32], strides = [1, 1]} : vector<2x128xf32> to vector<2x32xf32>
    %468 = vector.extract_strided_slice %464 {offsets = [0, 96], sizes = [2, 32], strides = [1, 1]} : vector<2x128xf32> to vector<2x32xf32>
    %469 = vector.extract_strided_slice %465 {offsets = [0, 64], sizes = [2, 32], strides = [1, 1]} : vector<2x128xf32> to vector<2x32xf32>
    %470 = arith.mulf %467, %459 : vector<2x32xf32>
    %471 = arith.mulf %466, %469 : vector<2x32xf32>
    %472 = arith.addf %470, %471 : vector<2x32xf32>
    %473 = math.tanh %472 : vector<2x32xf32>
    %474 = arith.mulf %468, %473 : vector<2x32xf32>
    %c0_248 = arith.constant 0 : index
    %c0_249 = arith.constant 0 : index
    %475 = vector.load %arg11[%c0_248, %c0_249] : memref<2x32xf32, #tpu.memory_space<vmem>>, vector<2x32xf32>
    tpu.vector_store %arg11[%c0_248, %c0_249], %474 {strides = array<i32>} : memref<2x32xf32, #tpu.memory_space<vmem>>, vector<2x32xf32>,
    %c0_250 = arith.constant 0 : index
    %c0_251 = arith.constant 0 : index
    %476 = vector.load %arg12[%c0_250, %c0_251] : memref<2x32xf32, #tpu.memory_space<vmem>>, vector<2x32xf32>
    tpu.vector_store %arg12[%c0_250, %c0_251], %472 {strides = array<i32>} : memref<2x32xf32, #tpu.memory_space<vmem>>, vector<2x32xf32>,
    %477 = arith.index_cast %451 : i32 to index
    %c0_252 = arith.constant 0 : index
    %c0_253 = arith.constant 0 : index
    %478 = vector.load %arg10[%477, %c0_252, %c0_253] : memref<8x2x128xf32, #tpu.memory_space<vmem>>, vector<1x2x128xf32>
    %479 = vector.shape_cast %478 : vector<1x2x128xf32> to vector<2x128xf32>
    %c0_254 = arith.constant 0 : index
    %c0_255 = arith.constant 0 : index
    %480 = vector.load %arg13[%c0_254, %c0_255] : memref<2x32xf32, #tpu.memory_space<vmem>>, vector<2x32xf32>
    %481 = arith.truncf %480 : vector<2x32xf32> to vector<2x32xbf16>
    %cst_256 = arith.constant dense<0.000000e+00> : vector<2x128xf32>
    %482 = tpu.matmul %481, %76, %cst_256 {dimension_numbers = #tpu.dot_dimension_numbers<[1], [0], [0], [1], [0, 0, 1, 1], [], []>} : vector<2x32xbf16>, vector<32x128xbf16>, vector<2x128xf32> -> vector<2x128xf32>
    %483 = arith.addf %479, %482 : vector<2x128xf32>
    %c0_257 = arith.constant 0 : index
    %c0_258 = arith.constant 0 : index
    %484 = vector.load %arg14[%c0_257, %c0_258] : memref<2x32xf32, #tpu.memory_space<vmem>>, vector<2x32xf32>
    %485 = arith.negf %483 : vector<2x128xf32>
    %486 = math.exp %485 : vector<2x128xf32>
    %cst_259 = arith.constant 1.000000e+00 : f32
    %487 = vector.broadcast %cst_259 : f32 to vector<2x128xf32>
    %488 = arith.addf %487, %486 : vector<2x128xf32>
    %489 = arith.divf %487, %488 : vector<2x128xf32>
    %490 = math.tanh %483 : vector<2x128xf32>
    %491 = vector.extract_strided_slice %489 {offsets = [0, 0], sizes = [2, 32], strides = [1, 1]} : vector<2x128xf32> to vector<2x32xf32>
    %492 = vector.extract_strided_slice %489 {offsets = [0, 32], sizes = [2, 32], strides = [1, 1]} : vector<2x128xf32> to vector<2x32xf32>
    %493 = vector.extract_strided_slice %489 {offsets = [0, 96], sizes = [2, 32], strides = [1, 1]} : vector<2x128xf32> to vector<2x32xf32>
    %494 = vector.extract_strided_slice %490 {offsets = [0, 64], sizes = [2, 32], strides = [1, 1]} : vector<2x128xf32> to vector<2x32xf32>
    %495 = arith.mulf %492, %484 : vector<2x32xf32>
    %496 = arith.mulf %491, %494 : vector<2x32xf32>
    %497 = arith.addf %495, %496 : vector<2x32xf32>
    %498 = math.tanh %497 : vector<2x32xf32>
    %499 = arith.mulf %493, %498 : vector<2x32xf32>
    %c0_260 = arith.constant 0 : index
    %c0_261 = arith.constant 0 : index
    %500 = vector.load %arg13[%c0_260, %c0_261] : memref<2x32xf32, #tpu.memory_space<vmem>>, vector<2x32xf32>
    tpu.vector_store %arg13[%c0_260, %c0_261], %499 {strides = array<i32>} : memref<2x32xf32, #tpu.memory_space<vmem>>, vector<2x32xf32>,
    %c0_262 = arith.constant 0 : index
    %c0_263 = arith.constant 0 : index
    %501 = vector.load %arg14[%c0_262, %c0_263] : memref<2x32xf32, #tpu.memory_space<vmem>>, vector<2x32xf32>
    tpu.vector_store %arg14[%c0_262, %c0_263], %497 {strides = array<i32>} : memref<2x32xf32, #tpu.memory_space<vmem>>, vector<2x32xf32>,
    %502 = arith.truncf %474 : vector<2x32xf32> to vector<2x32xbf16>
    %503 = arith.index_cast %c6_i32 : i32 to index
    %c0_264 = arith.constant 0 : index
    %c0_265 = arith.constant 0 : index
    %504 = vector.load %arg7[%503, %c0_264, %c0_265] : memref<8x2x64xbf16, #tpu.memory_space<vmem>>, vector<1x2x32xbf16>
    %505 = vector.shape_cast %504 : vector<1x2x32xbf16> to vector<2x32xbf16>
    %506 = vector.shape_cast %502 : vector<2x32xbf16> to vector<1x2x32xbf16>
    tpu.vector_store %arg7[%503, %c0_264, %c0_265], %506 {strides = array<i32>} : memref<8x2x64xbf16, #tpu.memory_space<vmem>>, vector<1x2x32xbf16>,
    %507 = arith.truncf %499 : vector<2x32xf32> to vector<2x32xbf16>
    %508 = arith.index_cast %451 : i32 to index
    %c0_266 = arith.constant 0 : index
    %c32_267 = arith.constant 32 : index
    %509 = vector.load %arg7[%508, %c0_266, %c32_267] : memref<8x2x64xbf16, #tpu.memory_space<vmem>>, vector<1x2x32xbf16>
    %510 = vector.shape_cast %509 : vector<1x2x32xbf16> to vector<2x32xbf16>
    %511 = vector.shape_cast %507 : vector<2x32xbf16> to vector<1x2x32xbf16>
    tpu.vector_store %arg7[%508, %c0_266, %c32_267], %511 {strides = array<i32>} : memref<8x2x64xbf16, #tpu.memory_space<vmem>>, vector<1x2x32xbf16>,
    %c7_i32_268 = arith.constant 7 : i32
    %c7_i32_269 = arith.constant 7 : i32
    %512 = arith.subi %c7_i32_269, %c7_i32_268 : i32
    %513 = arith.index_cast %c7_i32_268 : i32 to index
    %c0_270 = arith.constant 0 : index
    %c0_271 = arith.constant 0 : index
    %514 = vector.load %arg9[%513, %c0_270, %c0_271] : memref<8x2x128xf32, #tpu.memory_space<vmem>>, vector<1x2x128xf32>
    %515 = vector.shape_cast %514 : vector<1x2x128xf32> to vector<2x128xf32>
    %c0_272 = arith.constant 0 : index
    %c0_273 = arith.constant 0 : index
    %516 = vector.load %arg11[%c0_272, %c0_273] : memref<2x32xf32, #tpu.memory_space<vmem>>, vector<2x32xf32>
    %517 = arith.truncf %516 : vector<2x32xf32> to vector<2x32xbf16>
    %cst_274 = arith.constant dense<0.000000e+00> : vector<2x128xf32>
    %518 = tpu.matmul %517, %75, %cst_274 {dimension_numbers = #tpu.dot_dimension_numbers<[1], [0], [0], [1], [0, 0, 1, 1], [], []>} : vector<2x32xbf16>, vector<32x128xbf16>, vector<2x128xf32> -> vector<2x128xf32>
    %519 = arith.addf %515, %518 : vector<2x128xf32>
    %c0_275 = arith.constant 0 : index
    %c0_276 = arith.constant 0 : index
    %520 = vector.load %arg12[%c0_275, %c0_276] : memref<2x32xf32, #tpu.memory_space<vmem>>, vector<2x32xf32>
    %521 = arith.negf %519 : vector<2x128xf32>
    %522 = math.exp %521 : vector<2x128xf32>
    %cst_277 = arith.constant 1.000000e+00 : f32
    %523 = vector.broadcast %cst_277 : f32 to vector<2x128xf32>
    %524 = arith.addf %523, %522 : vector<2x128xf32>
    %525 = arith.divf %523, %524 : vector<2x128xf32>
    %526 = math.tanh %519 : vector<2x128xf32>
    %527 = vector.extract_strided_slice %525 {offsets = [0, 0], sizes = [2, 32], strides = [1, 1]} : vector<2x128xf32> to vector<2x32xf32>
    %528 = vector.extract_strided_slice %525 {offsets = [0, 32], sizes = [2, 32], strides = [1, 1]} : vector<2x128xf32> to vector<2x32xf32>
    %529 = vector.extract_strided_slice %525 {offsets = [0, 96], sizes = [2, 32], strides = [1, 1]} : vector<2x128xf32> to vector<2x32xf32>
    %530 = vector.extract_strided_slice %526 {offsets = [0, 64], sizes = [2, 32], strides = [1, 1]} : vector<2x128xf32> to vector<2x32xf32>
    %531 = arith.mulf %528, %520 : vector<2x32xf32>
    %532 = arith.mulf %527, %530 : vector<2x32xf32>
    %533 = arith.addf %531, %532 : vector<2x32xf32>
    %534 = math.tanh %533 : vector<2x32xf32>
    %535 = arith.mulf %529, %534 : vector<2x32xf32>
    %c0_278 = arith.constant 0 : index
    %c0_279 = arith.constant 0 : index
    %536 = vector.load %arg11[%c0_278, %c0_279] : memref<2x32xf32, #tpu.memory_space<vmem>>, vector<2x32xf32>
    tpu.vector_store %arg11[%c0_278, %c0_279], %535 {strides = array<i32>} : memref<2x32xf32, #tpu.memory_space<vmem>>, vector<2x32xf32>,
    %c0_280 = arith.constant 0 : index
    %c0_281 = arith.constant 0 : index
    %537 = vector.load %arg12[%c0_280, %c0_281] : memref<2x32xf32, #tpu.memory_space<vmem>>, vector<2x32xf32>
    tpu.vector_store %arg12[%c0_280, %c0_281], %533 {strides = array<i32>} : memref<2x32xf32, #tpu.memory_space<vmem>>, vector<2x32xf32>,
    %538 = arith.index_cast %512 : i32 to index
    %c0_282 = arith.constant 0 : index
    %c0_283 = arith.constant 0 : index
    %539 = vector.load %arg10[%538, %c0_282, %c0_283] : memref<8x2x128xf32, #tpu.memory_space<vmem>>, vector<1x2x128xf32>
    %540 = vector.shape_cast %539 : vector<1x2x128xf32> to vector<2x128xf32>
    %c0_284 = arith.constant 0 : index
    %c0_285 = arith.constant 0 : index
    %541 = vector.load %arg13[%c0_284, %c0_285] : memref<2x32xf32, #tpu.memory_space<vmem>>, vector<2x32xf32>
    %542 = arith.truncf %541 : vector<2x32xf32> to vector<2x32xbf16>
    %cst_286 = arith.constant dense<0.000000e+00> : vector<2x128xf32>
    %543 = tpu.matmul %542, %76, %cst_286 {dimension_numbers = #tpu.dot_dimension_numbers<[1], [0], [0], [1], [0, 0, 1, 1], [], []>} : vector<2x32xbf16>, vector<32x128xbf16>, vector<2x128xf32> -> vector<2x128xf32>
    %544 = arith.addf %540, %543 : vector<2x128xf32>
    %c0_287 = arith.constant 0 : index
    %c0_288 = arith.constant 0 : index
    %545 = vector.load %arg14[%c0_287, %c0_288] : memref<2x32xf32, #tpu.memory_space<vmem>>, vector<2x32xf32>
    %546 = arith.negf %544 : vector<2x128xf32>
    %547 = math.exp %546 : vector<2x128xf32>
    %cst_289 = arith.constant 1.000000e+00 : f32
    %548 = vector.broadcast %cst_289 : f32 to vector<2x128xf32>
    %549 = arith.addf %548, %547 : vector<2x128xf32>
    %550 = arith.divf %548, %549 : vector<2x128xf32>
    %551 = math.tanh %544 : vector<2x128xf32>
    %552 = vector.extract_strided_slice %550 {offsets = [0, 0], sizes = [2, 32], strides = [1, 1]} : vector<2x128xf32> to vector<2x32xf32>
    %553 = vector.extract_strided_slice %550 {offsets = [0, 32], sizes = [2, 32], strides = [1, 1]} : vector<2x128xf32> to vector<2x32xf32>
    %554 = vector.extract_strided_slice %550 {offsets = [0, 96], sizes = [2, 32], strides = [1, 1]} : vector<2x128xf32> to vector<2x32xf32>
    %555 = vector.extract_strided_slice %551 {offsets = [0, 64], sizes = [2, 32], strides = [1, 1]} : vector<2x128xf32> to vector<2x32xf32>
    %556 = arith.mulf %553, %545 : vector<2x32xf32>
    %557 = arith.mulf %552, %555 : vector<2x32xf32>
    %558 = arith.addf %556, %557 : vector<2x32xf32>
    %559 = math.tanh %558 : vector<2x32xf32>
    %560 = arith.mulf %554, %559 : vector<2x32xf32>
    %c0_290 = arith.constant 0 : index
    %c0_291 = arith.constant 0 : index
    %561 = vector.load %arg13[%c0_290, %c0_291] : memref<2x32xf32, #tpu.memory_space<vmem>>, vector<2x32xf32>
    tpu.vector_store %arg13[%c0_290, %c0_291], %560 {strides = array<i32>} : memref<2x32xf32, #tpu.memory_space<vmem>>, vector<2x32xf32>,
    %c0_292 = arith.constant 0 : index
    %c0_293 = arith.constant 0 : index
    %562 = vector.load %arg14[%c0_292, %c0_293] : memref<2x32xf32, #tpu.memory_space<vmem>>, vector<2x32xf32>
    tpu.vector_store %arg14[%c0_292, %c0_293], %558 {strides = array<i32>} : memref<2x32xf32, #tpu.memory_space<vmem>>, vector<2x32xf32>,
    %563 = arith.truncf %535 : vector<2x32xf32> to vector<2x32xbf16>
    %564 = arith.index_cast %c7_i32_268 : i32 to index
    %c0_294 = arith.constant 0 : index
    %c0_295 = arith.constant 0 : index
    %565 = vector.load %arg7[%564, %c0_294, %c0_295] : memref<8x2x64xbf16, #tpu.memory_space<vmem>>, vector<1x2x32xbf16>
    %566 = vector.shape_cast %565 : vector<1x2x32xbf16> to vector<2x32xbf16>
    %567 = vector.shape_cast %563 : vector<2x32xbf16> to vector<1x2x32xbf16>
    tpu.vector_store %arg7[%564, %c0_294, %c0_295], %567 {strides = array<i32>} : memref<8x2x64xbf16, #tpu.memory_space<vmem>>, vector<1x2x32xbf16>,
    %568 = arith.truncf %560 : vector<2x32xf32> to vector<2x32xbf16>
    %569 = arith.index_cast %512 : i32 to index
    %c0_296 = arith.constant 0 : index
    %c32_297 = arith.constant 32 : index
    %570 = vector.load %arg7[%569, %c0_296, %c32_297] : memref<8x2x64xbf16, #tpu.memory_space<vmem>>, vector<1x2x32xbf16>
    %571 = vector.shape_cast %570 : vector<1x2x32xbf16> to vector<2x32xbf16>
    %572 = vector.shape_cast %568 : vector<2x32xbf16> to vector<1x2x32xbf16>
    tpu.vector_store %arg7[%569, %c0_296, %c32_297], %572 {strides = array<i32>} : memref<8x2x64xbf16, #tpu.memory_space<vmem>>, vector<1x2x32xbf16>,
    %c8_i32 = arith.constant 8 : i32
    %c0_298 = arith.constant 0 : index
    %c0_299 = arith.constant 0 : index
    %573 = vector.load %arg11[%c0_298, %c0_299] : memref<2x32xf32, #tpu.memory_space<vmem>>, vector<2x32xf32>
    %c0_300 = arith.constant 0 : index
    %c0_301 = arith.constant 0 : index
    %574 = vector.load %arg8[%c0_300, %c0_301] : memref<2x64xf32, #tpu.memory_space<vmem>>, vector<2x32xf32>
    tpu.vector_store %arg8[%c0_300, %c0_301], %573 {strides = array<i32>} : memref<2x64xf32, #tpu.memory_space<vmem>>, vector<2x32xf32>,
    %c0_302 = arith.constant 0 : index
    %c0_303 = arith.constant 0 : index
    %575 = vector.load %arg13[%c0_302, %c0_303] : memref<2x32xf32, #tpu.memory_space<vmem>>, vector<2x32xf32>
    %c0_304 = arith.constant 0 : index
    %c32_305 = arith.constant 32 : index
    %576 = vector.load %arg8[%c0_304, %c32_305] : memref<2x64xf32, #tpu.memory_space<vmem>>, vector<2x32xf32>
    tpu.vector_store %arg8[%c0_304, %c32_305], %575 {strides = array<i32>} : memref<2x64xf32, #tpu.memory_space<vmem>>, vector<2x32xf32>,
    return
  }
}

module attributes {stable_mosaic.version = 11 : i64} {
  func.func @bilstm_layer_head_kernel(%arg0: memref<16x64xbf16, #tpu.memory_space<vmem>>, %arg1: memref<2x64xf32, #tpu.memory_space<vmem>>, %arg2: memref<64x128xbf16, #tpu.memory_space<vmem>>, %arg3: memref<32x128xbf16, #tpu.memory_space<vmem>>, %arg4: memref<1x128xf32, #tpu.memory_space<vmem>>, %arg5: memref<64x128xbf16, #tpu.memory_space<vmem>>, %arg6: memref<32x128xbf16, #tpu.memory_space<vmem>>, %arg7: memref<1x128xf32, #tpu.memory_space<vmem>>, %arg8: memref<128x4xf32, #tpu.memory_space<vmem>>, %arg9: memref<1x4xf32, #tpu.memory_space<vmem>>, %arg10: memref<2x4xf32, #tpu.memory_space<vmem>>, %arg11: memref<8x2x128xf32, #tpu.memory_space<vmem>>, %arg12: memref<8x2x128xf32, #tpu.memory_space<vmem>>, %arg13: memref<2x32xf32, #tpu.memory_space<vmem>>, %arg14: memref<2x32xf32, #tpu.memory_space<vmem>>, %arg15: memref<2x32xf32, #tpu.memory_space<vmem>>, %arg16: memref<2x32xf32, #tpu.memory_space<vmem>>) attributes {dimension_semantics = [], scalar_prefetch = 0 : i64, scratch_operands = 6 : i64, tpu.core_type = #tpu.core_type<tc>} {
    %c0 = arith.constant 0 : index
    %c0_0 = arith.constant 0 : index
    %0 = vector.load %arg0[%c0, %c0_0] : memref<16x64xbf16, #tpu.memory_space<vmem>>, vector<16x64xbf16>
    %c0_1 = arith.constant 0 : index
    %c0_2 = arith.constant 0 : index
    %1 = vector.load %arg2[%c0_1, %c0_2] : memref<64x128xbf16, #tpu.memory_space<vmem>>, vector<64x128xbf16>
    %c0_3 = arith.constant 0 : index
    %c0_4 = arith.constant 0 : index
    %2 = vector.load %arg4[%c0_3, %c0_4] : memref<1x128xf32, #tpu.memory_space<vmem>>, vector<1x128xf32>
    %cst = arith.constant dense<0.000000e+00> : vector<16x128xf32>
    %3 = tpu.matmul %0, %1, %cst {dimension_numbers = #tpu.dot_dimension_numbers<[1], [0], [0], [1], [0, 0, 1, 1], [], []>} : vector<16x64xbf16>, vector<64x128xbf16>, vector<16x128xf32> -> vector<16x128xf32>
    %4 = vector.broadcast %2 : vector<1x128xf32> to vector<16x128xf32>
    %5 = arith.addf %3, %4 : vector<16x128xf32>
    %6 = vector.extract_strided_slice %5 {offsets = [0, 0], sizes = [2, 128], strides = [1, 1]} : vector<16x128xf32> to vector<2x128xf32>
    %c0_5 = arith.constant 0 : index
    %c0_6 = arith.constant 0 : index
    %c0_7 = arith.constant 0 : index
    %7 = vector.load %arg11[%c0_5, %c0_6, %c0_7] : memref<8x2x128xf32, #tpu.memory_space<vmem>>, vector<1x2x128xf32>
    %8 = vector.shape_cast %7 : vector<1x2x128xf32> to vector<2x128xf32>
    %9 = vector.shape_cast %6 : vector<2x128xf32> to vector<1x2x128xf32>
    tpu.vector_store %arg11[%c0_5, %c0_6, %c0_7], %9 {strides = array<i32>} : memref<8x2x128xf32, #tpu.memory_space<vmem>>, vector<1x2x128xf32>,
    %10 = vector.extract_strided_slice %5 {offsets = [2, 0], sizes = [2, 128], strides = [1, 1]} : vector<16x128xf32> to vector<2x128xf32>
    %c1 = arith.constant 1 : index
    %c0_8 = arith.constant 0 : index
    %c0_9 = arith.constant 0 : index
    %11 = vector.load %arg11[%c1, %c0_8, %c0_9] : memref<8x2x128xf32, #tpu.memory_space<vmem>>, vector<1x2x128xf32>
    %12 = vector.shape_cast %11 : vector<1x2x128xf32> to vector<2x128xf32>
    %13 = vector.shape_cast %10 : vector<2x128xf32> to vector<1x2x128xf32>
    tpu.vector_store %arg11[%c1, %c0_8, %c0_9], %13 {strides = array<i32>} : memref<8x2x128xf32, #tpu.memory_space<vmem>>, vector<1x2x128xf32>,
    %14 = vector.extract_strided_slice %5 {offsets = [4, 0], sizes = [2, 128], strides = [1, 1]} : vector<16x128xf32> to vector<2x128xf32>
    %c2 = arith.constant 2 : index
    %c0_10 = arith.constant 0 : index
    %c0_11 = arith.constant 0 : index
    %15 = vector.load %arg11[%c2, %c0_10, %c0_11] : memref<8x2x128xf32, #tpu.memory_space<vmem>>, vector<1x2x128xf32>
    %16 = vector.shape_cast %15 : vector<1x2x128xf32> to vector<2x128xf32>
    %17 = vector.shape_cast %14 : vector<2x128xf32> to vector<1x2x128xf32>
    tpu.vector_store %arg11[%c2, %c0_10, %c0_11], %17 {strides = array<i32>} : memref<8x2x128xf32, #tpu.memory_space<vmem>>, vector<1x2x128xf32>,
    %18 = vector.extract_strided_slice %5 {offsets = [6, 0], sizes = [2, 128], strides = [1, 1]} : vector<16x128xf32> to vector<2x128xf32>
    %c3 = arith.constant 3 : index
    %c0_12 = arith.constant 0 : index
    %c0_13 = arith.constant 0 : index
    %19 = vector.load %arg11[%c3, %c0_12, %c0_13] : memref<8x2x128xf32, #tpu.memory_space<vmem>>, vector<1x2x128xf32>
    %20 = vector.shape_cast %19 : vector<1x2x128xf32> to vector<2x128xf32>
    %21 = vector.shape_cast %18 : vector<2x128xf32> to vector<1x2x128xf32>
    tpu.vector_store %arg11[%c3, %c0_12, %c0_13], %21 {strides = array<i32>} : memref<8x2x128xf32, #tpu.memory_space<vmem>>, vector<1x2x128xf32>,
    %22 = vector.extract_strided_slice %5 {offsets = [8, 0], sizes = [2, 128], strides = [1, 1]} : vector<16x128xf32> to vector<2x128xf32>
    %c4 = arith.constant 4 : index
    %c0_14 = arith.constant 0 : index
    %c0_15 = arith.constant 0 : index
    %23 = vector.load %arg11[%c4, %c0_14, %c0_15] : memref<8x2x128xf32, #tpu.memory_space<vmem>>, vector<1x2x128xf32>
    %24 = vector.shape_cast %23 : vector<1x2x128xf32> to vector<2x128xf32>
    %25 = vector.shape_cast %22 : vector<2x128xf32> to vector<1x2x128xf32>
    tpu.vector_store %arg11[%c4, %c0_14, %c0_15], %25 {strides = array<i32>} : memref<8x2x128xf32, #tpu.memory_space<vmem>>, vector<1x2x128xf32>,
    %26 = vector.extract_strided_slice %5 {offsets = [10, 0], sizes = [2, 128], strides = [1, 1]} : vector<16x128xf32> to vector<2x128xf32>
    %c5 = arith.constant 5 : index
    %c0_16 = arith.constant 0 : index
    %c0_17 = arith.constant 0 : index
    %27 = vector.load %arg11[%c5, %c0_16, %c0_17] : memref<8x2x128xf32, #tpu.memory_space<vmem>>, vector<1x2x128xf32>
    %28 = vector.shape_cast %27 : vector<1x2x128xf32> to vector<2x128xf32>
    %29 = vector.shape_cast %26 : vector<2x128xf32> to vector<1x2x128xf32>
    tpu.vector_store %arg11[%c5, %c0_16, %c0_17], %29 {strides = array<i32>} : memref<8x2x128xf32, #tpu.memory_space<vmem>>, vector<1x2x128xf32>,
    %30 = vector.extract_strided_slice %5 {offsets = [12, 0], sizes = [2, 128], strides = [1, 1]} : vector<16x128xf32> to vector<2x128xf32>
    %c6 = arith.constant 6 : index
    %c0_18 = arith.constant 0 : index
    %c0_19 = arith.constant 0 : index
    %31 = vector.load %arg11[%c6, %c0_18, %c0_19] : memref<8x2x128xf32, #tpu.memory_space<vmem>>, vector<1x2x128xf32>
    %32 = vector.shape_cast %31 : vector<1x2x128xf32> to vector<2x128xf32>
    %33 = vector.shape_cast %30 : vector<2x128xf32> to vector<1x2x128xf32>
    tpu.vector_store %arg11[%c6, %c0_18, %c0_19], %33 {strides = array<i32>} : memref<8x2x128xf32, #tpu.memory_space<vmem>>, vector<1x2x128xf32>,
    %34 = vector.extract_strided_slice %5 {offsets = [14, 0], sizes = [2, 128], strides = [1, 1]} : vector<16x128xf32> to vector<2x128xf32>
    %c7 = arith.constant 7 : index
    %c0_20 = arith.constant 0 : index
    %c0_21 = arith.constant 0 : index
    %35 = vector.load %arg11[%c7, %c0_20, %c0_21] : memref<8x2x128xf32, #tpu.memory_space<vmem>>, vector<1x2x128xf32>
    %36 = vector.shape_cast %35 : vector<1x2x128xf32> to vector<2x128xf32>
    %37 = vector.shape_cast %34 : vector<2x128xf32> to vector<1x2x128xf32>
    tpu.vector_store %arg11[%c7, %c0_20, %c0_21], %37 {strides = array<i32>} : memref<8x2x128xf32, #tpu.memory_space<vmem>>, vector<1x2x128xf32>,
    %c0_22 = arith.constant 0 : index
    %c0_23 = arith.constant 0 : index
    %38 = vector.load %arg5[%c0_22, %c0_23] : memref<64x128xbf16, #tpu.memory_space<vmem>>, vector<64x128xbf16>
    %c0_24 = arith.constant 0 : index
    %c0_25 = arith.constant 0 : index
    %39 = vector.load %arg7[%c0_24, %c0_25] : memref<1x128xf32, #tpu.memory_space<vmem>>, vector<1x128xf32>
    %cst_26 = arith.constant dense<0.000000e+00> : vector<16x128xf32>
    %40 = tpu.matmul %0, %38, %cst_26 {dimension_numbers = #tpu.dot_dimension_numbers<[1], [0], [0], [1], [0, 0, 1, 1], [], []>} : vector<16x64xbf16>, vector<64x128xbf16>, vector<16x128xf32> -> vector<16x128xf32>
    %41 = vector.broadcast %39 : vector<1x128xf32> to vector<16x128xf32>
    %42 = arith.addf %40, %41 : vector<16x128xf32>
    %43 = vector.extract_strided_slice %42 {offsets = [0, 0], sizes = [2, 128], strides = [1, 1]} : vector<16x128xf32> to vector<2x128xf32>
    %c0_27 = arith.constant 0 : index
    %c0_28 = arith.constant 0 : index
    %c0_29 = arith.constant 0 : index
    %44 = vector.load %arg12[%c0_27, %c0_28, %c0_29] : memref<8x2x128xf32, #tpu.memory_space<vmem>>, vector<1x2x128xf32>
    %45 = vector.shape_cast %44 : vector<1x2x128xf32> to vector<2x128xf32>
    %46 = vector.shape_cast %43 : vector<2x128xf32> to vector<1x2x128xf32>
    tpu.vector_store %arg12[%c0_27, %c0_28, %c0_29], %46 {strides = array<i32>} : memref<8x2x128xf32, #tpu.memory_space<vmem>>, vector<1x2x128xf32>,
    %47 = vector.extract_strided_slice %42 {offsets = [2, 0], sizes = [2, 128], strides = [1, 1]} : vector<16x128xf32> to vector<2x128xf32>
    %c1_30 = arith.constant 1 : index
    %c0_31 = arith.constant 0 : index
    %c0_32 = arith.constant 0 : index
    %48 = vector.load %arg12[%c1_30, %c0_31, %c0_32] : memref<8x2x128xf32, #tpu.memory_space<vmem>>, vector<1x2x128xf32>
    %49 = vector.shape_cast %48 : vector<1x2x128xf32> to vector<2x128xf32>
    %50 = vector.shape_cast %47 : vector<2x128xf32> to vector<1x2x128xf32>
    tpu.vector_store %arg12[%c1_30, %c0_31, %c0_32], %50 {strides = array<i32>} : memref<8x2x128xf32, #tpu.memory_space<vmem>>, vector<1x2x128xf32>,
    %51 = vector.extract_strided_slice %42 {offsets = [4, 0], sizes = [2, 128], strides = [1, 1]} : vector<16x128xf32> to vector<2x128xf32>
    %c2_33 = arith.constant 2 : index
    %c0_34 = arith.constant 0 : index
    %c0_35 = arith.constant 0 : index
    %52 = vector.load %arg12[%c2_33, %c0_34, %c0_35] : memref<8x2x128xf32, #tpu.memory_space<vmem>>, vector<1x2x128xf32>
    %53 = vector.shape_cast %52 : vector<1x2x128xf32> to vector<2x128xf32>
    %54 = vector.shape_cast %51 : vector<2x128xf32> to vector<1x2x128xf32>
    tpu.vector_store %arg12[%c2_33, %c0_34, %c0_35], %54 {strides = array<i32>} : memref<8x2x128xf32, #tpu.memory_space<vmem>>, vector<1x2x128xf32>,
    %55 = vector.extract_strided_slice %42 {offsets = [6, 0], sizes = [2, 128], strides = [1, 1]} : vector<16x128xf32> to vector<2x128xf32>
    %c3_36 = arith.constant 3 : index
    %c0_37 = arith.constant 0 : index
    %c0_38 = arith.constant 0 : index
    %56 = vector.load %arg12[%c3_36, %c0_37, %c0_38] : memref<8x2x128xf32, #tpu.memory_space<vmem>>, vector<1x2x128xf32>
    %57 = vector.shape_cast %56 : vector<1x2x128xf32> to vector<2x128xf32>
    %58 = vector.shape_cast %55 : vector<2x128xf32> to vector<1x2x128xf32>
    tpu.vector_store %arg12[%c3_36, %c0_37, %c0_38], %58 {strides = array<i32>} : memref<8x2x128xf32, #tpu.memory_space<vmem>>, vector<1x2x128xf32>,
    %59 = vector.extract_strided_slice %42 {offsets = [8, 0], sizes = [2, 128], strides = [1, 1]} : vector<16x128xf32> to vector<2x128xf32>
    %c4_39 = arith.constant 4 : index
    %c0_40 = arith.constant 0 : index
    %c0_41 = arith.constant 0 : index
    %60 = vector.load %arg12[%c4_39, %c0_40, %c0_41] : memref<8x2x128xf32, #tpu.memory_space<vmem>>, vector<1x2x128xf32>
    %61 = vector.shape_cast %60 : vector<1x2x128xf32> to vector<2x128xf32>
    %62 = vector.shape_cast %59 : vector<2x128xf32> to vector<1x2x128xf32>
    tpu.vector_store %arg12[%c4_39, %c0_40, %c0_41], %62 {strides = array<i32>} : memref<8x2x128xf32, #tpu.memory_space<vmem>>, vector<1x2x128xf32>,
    %63 = vector.extract_strided_slice %42 {offsets = [10, 0], sizes = [2, 128], strides = [1, 1]} : vector<16x128xf32> to vector<2x128xf32>
    %c5_42 = arith.constant 5 : index
    %c0_43 = arith.constant 0 : index
    %c0_44 = arith.constant 0 : index
    %64 = vector.load %arg12[%c5_42, %c0_43, %c0_44] : memref<8x2x128xf32, #tpu.memory_space<vmem>>, vector<1x2x128xf32>
    %65 = vector.shape_cast %64 : vector<1x2x128xf32> to vector<2x128xf32>
    %66 = vector.shape_cast %63 : vector<2x128xf32> to vector<1x2x128xf32>
    tpu.vector_store %arg12[%c5_42, %c0_43, %c0_44], %66 {strides = array<i32>} : memref<8x2x128xf32, #tpu.memory_space<vmem>>, vector<1x2x128xf32>,
    %67 = vector.extract_strided_slice %42 {offsets = [12, 0], sizes = [2, 128], strides = [1, 1]} : vector<16x128xf32> to vector<2x128xf32>
    %c6_45 = arith.constant 6 : index
    %c0_46 = arith.constant 0 : index
    %c0_47 = arith.constant 0 : index
    %68 = vector.load %arg12[%c6_45, %c0_46, %c0_47] : memref<8x2x128xf32, #tpu.memory_space<vmem>>, vector<1x2x128xf32>
    %69 = vector.shape_cast %68 : vector<1x2x128xf32> to vector<2x128xf32>
    %70 = vector.shape_cast %67 : vector<2x128xf32> to vector<1x2x128xf32>
    tpu.vector_store %arg12[%c6_45, %c0_46, %c0_47], %70 {strides = array<i32>} : memref<8x2x128xf32, #tpu.memory_space<vmem>>, vector<1x2x128xf32>,
    %71 = vector.extract_strided_slice %42 {offsets = [14, 0], sizes = [2, 128], strides = [1, 1]} : vector<16x128xf32> to vector<2x128xf32>
    %c7_48 = arith.constant 7 : index
    %c0_49 = arith.constant 0 : index
    %c0_50 = arith.constant 0 : index
    %72 = vector.load %arg12[%c7_48, %c0_49, %c0_50] : memref<8x2x128xf32, #tpu.memory_space<vmem>>, vector<1x2x128xf32>
    %73 = vector.shape_cast %72 : vector<1x2x128xf32> to vector<2x128xf32>
    %74 = vector.shape_cast %71 : vector<2x128xf32> to vector<1x2x128xf32>
    tpu.vector_store %arg12[%c7_48, %c0_49, %c0_50], %74 {strides = array<i32>} : memref<8x2x128xf32, #tpu.memory_space<vmem>>, vector<1x2x128xf32>,
    %c0_51 = arith.constant 0 : index
    %c0_52 = arith.constant 0 : index
    %75 = vector.load %arg3[%c0_51, %c0_52] : memref<32x128xbf16, #tpu.memory_space<vmem>>, vector<32x128xbf16>
    %c0_53 = arith.constant 0 : index
    %c0_54 = arith.constant 0 : index
    %76 = vector.load %arg6[%c0_53, %c0_54] : memref<32x128xbf16, #tpu.memory_space<vmem>>, vector<32x128xbf16>
    %cst_55 = arith.constant 0.000000e+00 : f32
    %77 = vector.broadcast %cst_55 : f32 to vector<2x32xf32>
    %c0_56 = arith.constant 0 : index
    %c0_57 = arith.constant 0 : index
    %78 = vector.load %arg13[%c0_56, %c0_57] : memref<2x32xf32, #tpu.memory_space<vmem>>, vector<2x32xf32>
    tpu.vector_store %arg13[%c0_56, %c0_57], %77 {strides = array<i32>} : memref<2x32xf32, #tpu.memory_space<vmem>>, vector<2x32xf32>,
    %cst_58 = arith.constant 0.000000e+00 : f32
    %79 = vector.broadcast %cst_58 : f32 to vector<2x32xf32>
    %c0_59 = arith.constant 0 : index
    %c0_60 = arith.constant 0 : index
    %80 = vector.load %arg14[%c0_59, %c0_60] : memref<2x32xf32, #tpu.memory_space<vmem>>, vector<2x32xf32>
    tpu.vector_store %arg14[%c0_59, %c0_60], %79 {strides = array<i32>} : memref<2x32xf32, #tpu.memory_space<vmem>>, vector<2x32xf32>,
    %cst_61 = arith.constant 0.000000e+00 : f32
    %81 = vector.broadcast %cst_61 : f32 to vector<2x32xf32>
    %c0_62 = arith.constant 0 : index
    %c0_63 = arith.constant 0 : index
    %82 = vector.load %arg15[%c0_62, %c0_63] : memref<2x32xf32, #tpu.memory_space<vmem>>, vector<2x32xf32>
    tpu.vector_store %arg15[%c0_62, %c0_63], %81 {strides = array<i32>} : memref<2x32xf32, #tpu.memory_space<vmem>>, vector<2x32xf32>,
    %cst_64 = arith.constant 0.000000e+00 : f32
    %83 = vector.broadcast %cst_64 : f32 to vector<2x32xf32>
    %c0_65 = arith.constant 0 : index
    %c0_66 = arith.constant 0 : index
    %84 = vector.load %arg16[%c0_65, %c0_66] : memref<2x32xf32, #tpu.memory_space<vmem>>, vector<2x32xf32>
    tpu.vector_store %arg16[%c0_65, %c0_66], %83 {strides = array<i32>} : memref<2x32xf32, #tpu.memory_space<vmem>>, vector<2x32xf32>,
    %c0_i32 = arith.constant 0 : i32
    %c7_i32 = arith.constant 7 : i32
    %85 = arith.subi %c7_i32, %c0_i32 : i32
    %86 = arith.index_cast %c0_i32 : i32 to index
    %c0_67 = arith.constant 0 : index
    %c0_68 = arith.constant 0 : index
    %87 = vector.load %arg11[%86, %c0_67, %c0_68] : memref<8x2x128xf32, #tpu.memory_space<vmem>>, vector<1x2x128xf32>
    %88 = vector.shape_cast %87 : vector<1x2x128xf32> to vector<2x128xf32>
    %c0_69 = arith.constant 0 : index
    %c0_70 = arith.constant 0 : index
    %89 = vector.load %arg13[%c0_69, %c0_70] : memref<2x32xf32, #tpu.memory_space<vmem>>, vector<2x32xf32>
    %90 = arith.truncf %89 : vector<2x32xf32> to vector<2x32xbf16>
    %cst_71 = arith.constant dense<0.000000e+00> : vector<2x128xf32>
    %91 = tpu.matmul %90, %75, %cst_71 {dimension_numbers = #tpu.dot_dimension_numbers<[1], [0], [0], [1], [0, 0, 1, 1], [], []>} : vector<2x32xbf16>, vector<32x128xbf16>, vector<2x128xf32> -> vector<2x128xf32>
    %92 = arith.addf %88, %91 : vector<2x128xf32>
    %c0_72 = arith.constant 0 : index
    %c0_73 = arith.constant 0 : index
    %93 = vector.load %arg14[%c0_72, %c0_73] : memref<2x32xf32, #tpu.memory_space<vmem>>, vector<2x32xf32>
    %94 = arith.negf %92 : vector<2x128xf32>
    %95 = math.exp %94 : vector<2x128xf32>
    %cst_74 = arith.constant 1.000000e+00 : f32
    %96 = vector.broadcast %cst_74 : f32 to vector<2x128xf32>
    %97 = arith.addf %96, %95 : vector<2x128xf32>
    %98 = arith.divf %96, %97 : vector<2x128xf32>
    %99 = math.tanh %92 : vector<2x128xf32>
    %100 = vector.extract_strided_slice %98 {offsets = [0, 0], sizes = [2, 32], strides = [1, 1]} : vector<2x128xf32> to vector<2x32xf32>
    %101 = vector.extract_strided_slice %98 {offsets = [0, 32], sizes = [2, 32], strides = [1, 1]} : vector<2x128xf32> to vector<2x32xf32>
    %102 = vector.extract_strided_slice %98 {offsets = [0, 96], sizes = [2, 32], strides = [1, 1]} : vector<2x128xf32> to vector<2x32xf32>
    %103 = vector.extract_strided_slice %99 {offsets = [0, 64], sizes = [2, 32], strides = [1, 1]} : vector<2x128xf32> to vector<2x32xf32>
    %104 = arith.mulf %101, %93 : vector<2x32xf32>
    %105 = arith.mulf %100, %103 : vector<2x32xf32>
    %106 = arith.addf %104, %105 : vector<2x32xf32>
    %107 = math.tanh %106 : vector<2x32xf32>
    %108 = arith.mulf %102, %107 : vector<2x32xf32>
    %c0_75 = arith.constant 0 : index
    %c0_76 = arith.constant 0 : index
    %109 = vector.load %arg13[%c0_75, %c0_76] : memref<2x32xf32, #tpu.memory_space<vmem>>, vector<2x32xf32>
    tpu.vector_store %arg13[%c0_75, %c0_76], %108 {strides = array<i32>} : memref<2x32xf32, #tpu.memory_space<vmem>>, vector<2x32xf32>,
    %c0_77 = arith.constant 0 : index
    %c0_78 = arith.constant 0 : index
    %110 = vector.load %arg14[%c0_77, %c0_78] : memref<2x32xf32, #tpu.memory_space<vmem>>, vector<2x32xf32>
    tpu.vector_store %arg14[%c0_77, %c0_78], %106 {strides = array<i32>} : memref<2x32xf32, #tpu.memory_space<vmem>>, vector<2x32xf32>,
    %111 = arith.index_cast %85 : i32 to index
    %c0_79 = arith.constant 0 : index
    %c0_80 = arith.constant 0 : index
    %112 = vector.load %arg12[%111, %c0_79, %c0_80] : memref<8x2x128xf32, #tpu.memory_space<vmem>>, vector<1x2x128xf32>
    %113 = vector.shape_cast %112 : vector<1x2x128xf32> to vector<2x128xf32>
    %c0_81 = arith.constant 0 : index
    %c0_82 = arith.constant 0 : index
    %114 = vector.load %arg15[%c0_81, %c0_82] : memref<2x32xf32, #tpu.memory_space<vmem>>, vector<2x32xf32>
    %115 = arith.truncf %114 : vector<2x32xf32> to vector<2x32xbf16>
    %cst_83 = arith.constant dense<0.000000e+00> : vector<2x128xf32>
    %116 = tpu.matmul %115, %76, %cst_83 {dimension_numbers = #tpu.dot_dimension_numbers<[1], [0], [0], [1], [0, 0, 1, 1], [], []>} : vector<2x32xbf16>, vector<32x128xbf16>, vector<2x128xf32> -> vector<2x128xf32>
    %117 = arith.addf %113, %116 : vector<2x128xf32>
    %c0_84 = arith.constant 0 : index
    %c0_85 = arith.constant 0 : index
    %118 = vector.load %arg16[%c0_84, %c0_85] : memref<2x32xf32, #tpu.memory_space<vmem>>, vector<2x32xf32>
    %119 = arith.negf %117 : vector<2x128xf32>
    %120 = math.exp %119 : vector<2x128xf32>
    %cst_86 = arith.constant 1.000000e+00 : f32
    %121 = vector.broadcast %cst_86 : f32 to vector<2x128xf32>
    %122 = arith.addf %121, %120 : vector<2x128xf32>
    %123 = arith.divf %121, %122 : vector<2x128xf32>
    %124 = math.tanh %117 : vector<2x128xf32>
    %125 = vector.extract_strided_slice %123 {offsets = [0, 0], sizes = [2, 32], strides = [1, 1]} : vector<2x128xf32> to vector<2x32xf32>
    %126 = vector.extract_strided_slice %123 {offsets = [0, 32], sizes = [2, 32], strides = [1, 1]} : vector<2x128xf32> to vector<2x32xf32>
    %127 = vector.extract_strided_slice %123 {offsets = [0, 96], sizes = [2, 32], strides = [1, 1]} : vector<2x128xf32> to vector<2x32xf32>
    %128 = vector.extract_strided_slice %124 {offsets = [0, 64], sizes = [2, 32], strides = [1, 1]} : vector<2x128xf32> to vector<2x32xf32>
    %129 = arith.mulf %126, %118 : vector<2x32xf32>
    %130 = arith.mulf %125, %128 : vector<2x32xf32>
    %131 = arith.addf %129, %130 : vector<2x32xf32>
    %132 = math.tanh %131 : vector<2x32xf32>
    %133 = arith.mulf %127, %132 : vector<2x32xf32>
    %c0_87 = arith.constant 0 : index
    %c0_88 = arith.constant 0 : index
    %134 = vector.load %arg15[%c0_87, %c0_88] : memref<2x32xf32, #tpu.memory_space<vmem>>, vector<2x32xf32>
    tpu.vector_store %arg15[%c0_87, %c0_88], %133 {strides = array<i32>} : memref<2x32xf32, #tpu.memory_space<vmem>>, vector<2x32xf32>,
    %c0_89 = arith.constant 0 : index
    %c0_90 = arith.constant 0 : index
    %135 = vector.load %arg16[%c0_89, %c0_90] : memref<2x32xf32, #tpu.memory_space<vmem>>, vector<2x32xf32>
    tpu.vector_store %arg16[%c0_89, %c0_90], %131 {strides = array<i32>} : memref<2x32xf32, #tpu.memory_space<vmem>>, vector<2x32xf32>,
    %c1_i32 = arith.constant 1 : i32
    %c7_i32_91 = arith.constant 7 : i32
    %136 = arith.subi %c7_i32_91, %c1_i32 : i32
    %137 = arith.index_cast %c1_i32 : i32 to index
    %c0_92 = arith.constant 0 : index
    %c0_93 = arith.constant 0 : index
    %138 = vector.load %arg11[%137, %c0_92, %c0_93] : memref<8x2x128xf32, #tpu.memory_space<vmem>>, vector<1x2x128xf32>
    %139 = vector.shape_cast %138 : vector<1x2x128xf32> to vector<2x128xf32>
    %c0_94 = arith.constant 0 : index
    %c0_95 = arith.constant 0 : index
    %140 = vector.load %arg13[%c0_94, %c0_95] : memref<2x32xf32, #tpu.memory_space<vmem>>, vector<2x32xf32>
    %141 = arith.truncf %140 : vector<2x32xf32> to vector<2x32xbf16>
    %cst_96 = arith.constant dense<0.000000e+00> : vector<2x128xf32>
    %142 = tpu.matmul %141, %75, %cst_96 {dimension_numbers = #tpu.dot_dimension_numbers<[1], [0], [0], [1], [0, 0, 1, 1], [], []>} : vector<2x32xbf16>, vector<32x128xbf16>, vector<2x128xf32> -> vector<2x128xf32>
    %143 = arith.addf %139, %142 : vector<2x128xf32>
    %c0_97 = arith.constant 0 : index
    %c0_98 = arith.constant 0 : index
    %144 = vector.load %arg14[%c0_97, %c0_98] : memref<2x32xf32, #tpu.memory_space<vmem>>, vector<2x32xf32>
    %145 = arith.negf %143 : vector<2x128xf32>
    %146 = math.exp %145 : vector<2x128xf32>
    %cst_99 = arith.constant 1.000000e+00 : f32
    %147 = vector.broadcast %cst_99 : f32 to vector<2x128xf32>
    %148 = arith.addf %147, %146 : vector<2x128xf32>
    %149 = arith.divf %147, %148 : vector<2x128xf32>
    %150 = math.tanh %143 : vector<2x128xf32>
    %151 = vector.extract_strided_slice %149 {offsets = [0, 0], sizes = [2, 32], strides = [1, 1]} : vector<2x128xf32> to vector<2x32xf32>
    %152 = vector.extract_strided_slice %149 {offsets = [0, 32], sizes = [2, 32], strides = [1, 1]} : vector<2x128xf32> to vector<2x32xf32>
    %153 = vector.extract_strided_slice %149 {offsets = [0, 96], sizes = [2, 32], strides = [1, 1]} : vector<2x128xf32> to vector<2x32xf32>
    %154 = vector.extract_strided_slice %150 {offsets = [0, 64], sizes = [2, 32], strides = [1, 1]} : vector<2x128xf32> to vector<2x32xf32>
    %155 = arith.mulf %152, %144 : vector<2x32xf32>
    %156 = arith.mulf %151, %154 : vector<2x32xf32>
    %157 = arith.addf %155, %156 : vector<2x32xf32>
    %158 = math.tanh %157 : vector<2x32xf32>
    %159 = arith.mulf %153, %158 : vector<2x32xf32>
    %c0_100 = arith.constant 0 : index
    %c0_101 = arith.constant 0 : index
    %160 = vector.load %arg13[%c0_100, %c0_101] : memref<2x32xf32, #tpu.memory_space<vmem>>, vector<2x32xf32>
    tpu.vector_store %arg13[%c0_100, %c0_101], %159 {strides = array<i32>} : memref<2x32xf32, #tpu.memory_space<vmem>>, vector<2x32xf32>,
    %c0_102 = arith.constant 0 : index
    %c0_103 = arith.constant 0 : index
    %161 = vector.load %arg14[%c0_102, %c0_103] : memref<2x32xf32, #tpu.memory_space<vmem>>, vector<2x32xf32>
    tpu.vector_store %arg14[%c0_102, %c0_103], %157 {strides = array<i32>} : memref<2x32xf32, #tpu.memory_space<vmem>>, vector<2x32xf32>,
    %162 = arith.index_cast %136 : i32 to index
    %c0_104 = arith.constant 0 : index
    %c0_105 = arith.constant 0 : index
    %163 = vector.load %arg12[%162, %c0_104, %c0_105] : memref<8x2x128xf32, #tpu.memory_space<vmem>>, vector<1x2x128xf32>
    %164 = vector.shape_cast %163 : vector<1x2x128xf32> to vector<2x128xf32>
    %c0_106 = arith.constant 0 : index
    %c0_107 = arith.constant 0 : index
    %165 = vector.load %arg15[%c0_106, %c0_107] : memref<2x32xf32, #tpu.memory_space<vmem>>, vector<2x32xf32>
    %166 = arith.truncf %165 : vector<2x32xf32> to vector<2x32xbf16>
    %cst_108 = arith.constant dense<0.000000e+00> : vector<2x128xf32>
    %167 = tpu.matmul %166, %76, %cst_108 {dimension_numbers = #tpu.dot_dimension_numbers<[1], [0], [0], [1], [0, 0, 1, 1], [], []>} : vector<2x32xbf16>, vector<32x128xbf16>, vector<2x128xf32> -> vector<2x128xf32>
    %168 = arith.addf %164, %167 : vector<2x128xf32>
    %c0_109 = arith.constant 0 : index
    %c0_110 = arith.constant 0 : index
    %169 = vector.load %arg16[%c0_109, %c0_110] : memref<2x32xf32, #tpu.memory_space<vmem>>, vector<2x32xf32>
    %170 = arith.negf %168 : vector<2x128xf32>
    %171 = math.exp %170 : vector<2x128xf32>
    %cst_111 = arith.constant 1.000000e+00 : f32
    %172 = vector.broadcast %cst_111 : f32 to vector<2x128xf32>
    %173 = arith.addf %172, %171 : vector<2x128xf32>
    %174 = arith.divf %172, %173 : vector<2x128xf32>
    %175 = math.tanh %168 : vector<2x128xf32>
    %176 = vector.extract_strided_slice %174 {offsets = [0, 0], sizes = [2, 32], strides = [1, 1]} : vector<2x128xf32> to vector<2x32xf32>
    %177 = vector.extract_strided_slice %174 {offsets = [0, 32], sizes = [2, 32], strides = [1, 1]} : vector<2x128xf32> to vector<2x32xf32>
    %178 = vector.extract_strided_slice %174 {offsets = [0, 96], sizes = [2, 32], strides = [1, 1]} : vector<2x128xf32> to vector<2x32xf32>
    %179 = vector.extract_strided_slice %175 {offsets = [0, 64], sizes = [2, 32], strides = [1, 1]} : vector<2x128xf32> to vector<2x32xf32>
    %180 = arith.mulf %177, %169 : vector<2x32xf32>
    %181 = arith.mulf %176, %179 : vector<2x32xf32>
    %182 = arith.addf %180, %181 : vector<2x32xf32>
    %183 = math.tanh %182 : vector<2x32xf32>
    %184 = arith.mulf %178, %183 : vector<2x32xf32>
    %c0_112 = arith.constant 0 : index
    %c0_113 = arith.constant 0 : index
    %185 = vector.load %arg15[%c0_112, %c0_113] : memref<2x32xf32, #tpu.memory_space<vmem>>, vector<2x32xf32>
    tpu.vector_store %arg15[%c0_112, %c0_113], %184 {strides = array<i32>} : memref<2x32xf32, #tpu.memory_space<vmem>>, vector<2x32xf32>,
    %c0_114 = arith.constant 0 : index
    %c0_115 = arith.constant 0 : index
    %186 = vector.load %arg16[%c0_114, %c0_115] : memref<2x32xf32, #tpu.memory_space<vmem>>, vector<2x32xf32>
    tpu.vector_store %arg16[%c0_114, %c0_115], %182 {strides = array<i32>} : memref<2x32xf32, #tpu.memory_space<vmem>>, vector<2x32xf32>,
    %c2_i32 = arith.constant 2 : i32
    %c7_i32_116 = arith.constant 7 : i32
    %187 = arith.subi %c7_i32_116, %c2_i32 : i32
    %188 = arith.index_cast %c2_i32 : i32 to index
    %c0_117 = arith.constant 0 : index
    %c0_118 = arith.constant 0 : index
    %189 = vector.load %arg11[%188, %c0_117, %c0_118] : memref<8x2x128xf32, #tpu.memory_space<vmem>>, vector<1x2x128xf32>
    %190 = vector.shape_cast %189 : vector<1x2x128xf32> to vector<2x128xf32>
    %c0_119 = arith.constant 0 : index
    %c0_120 = arith.constant 0 : index
    %191 = vector.load %arg13[%c0_119, %c0_120] : memref<2x32xf32, #tpu.memory_space<vmem>>, vector<2x32xf32>
    %192 = arith.truncf %191 : vector<2x32xf32> to vector<2x32xbf16>
    %cst_121 = arith.constant dense<0.000000e+00> : vector<2x128xf32>
    %193 = tpu.matmul %192, %75, %cst_121 {dimension_numbers = #tpu.dot_dimension_numbers<[1], [0], [0], [1], [0, 0, 1, 1], [], []>} : vector<2x32xbf16>, vector<32x128xbf16>, vector<2x128xf32> -> vector<2x128xf32>
    %194 = arith.addf %190, %193 : vector<2x128xf32>
    %c0_122 = arith.constant 0 : index
    %c0_123 = arith.constant 0 : index
    %195 = vector.load %arg14[%c0_122, %c0_123] : memref<2x32xf32, #tpu.memory_space<vmem>>, vector<2x32xf32>
    %196 = arith.negf %194 : vector<2x128xf32>
    %197 = math.exp %196 : vector<2x128xf32>
    %cst_124 = arith.constant 1.000000e+00 : f32
    %198 = vector.broadcast %cst_124 : f32 to vector<2x128xf32>
    %199 = arith.addf %198, %197 : vector<2x128xf32>
    %200 = arith.divf %198, %199 : vector<2x128xf32>
    %201 = math.tanh %194 : vector<2x128xf32>
    %202 = vector.extract_strided_slice %200 {offsets = [0, 0], sizes = [2, 32], strides = [1, 1]} : vector<2x128xf32> to vector<2x32xf32>
    %203 = vector.extract_strided_slice %200 {offsets = [0, 32], sizes = [2, 32], strides = [1, 1]} : vector<2x128xf32> to vector<2x32xf32>
    %204 = vector.extract_strided_slice %200 {offsets = [0, 96], sizes = [2, 32], strides = [1, 1]} : vector<2x128xf32> to vector<2x32xf32>
    %205 = vector.extract_strided_slice %201 {offsets = [0, 64], sizes = [2, 32], strides = [1, 1]} : vector<2x128xf32> to vector<2x32xf32>
    %206 = arith.mulf %203, %195 : vector<2x32xf32>
    %207 = arith.mulf %202, %205 : vector<2x32xf32>
    %208 = arith.addf %206, %207 : vector<2x32xf32>
    %209 = math.tanh %208 : vector<2x32xf32>
    %210 = arith.mulf %204, %209 : vector<2x32xf32>
    %c0_125 = arith.constant 0 : index
    %c0_126 = arith.constant 0 : index
    %211 = vector.load %arg13[%c0_125, %c0_126] : memref<2x32xf32, #tpu.memory_space<vmem>>, vector<2x32xf32>
    tpu.vector_store %arg13[%c0_125, %c0_126], %210 {strides = array<i32>} : memref<2x32xf32, #tpu.memory_space<vmem>>, vector<2x32xf32>,
    %c0_127 = arith.constant 0 : index
    %c0_128 = arith.constant 0 : index
    %212 = vector.load %arg14[%c0_127, %c0_128] : memref<2x32xf32, #tpu.memory_space<vmem>>, vector<2x32xf32>
    tpu.vector_store %arg14[%c0_127, %c0_128], %208 {strides = array<i32>} : memref<2x32xf32, #tpu.memory_space<vmem>>, vector<2x32xf32>,
    %213 = arith.index_cast %187 : i32 to index
    %c0_129 = arith.constant 0 : index
    %c0_130 = arith.constant 0 : index
    %214 = vector.load %arg12[%213, %c0_129, %c0_130] : memref<8x2x128xf32, #tpu.memory_space<vmem>>, vector<1x2x128xf32>
    %215 = vector.shape_cast %214 : vector<1x2x128xf32> to vector<2x128xf32>
    %c0_131 = arith.constant 0 : index
    %c0_132 = arith.constant 0 : index
    %216 = vector.load %arg15[%c0_131, %c0_132] : memref<2x32xf32, #tpu.memory_space<vmem>>, vector<2x32xf32>
    %217 = arith.truncf %216 : vector<2x32xf32> to vector<2x32xbf16>
    %cst_133 = arith.constant dense<0.000000e+00> : vector<2x128xf32>
    %218 = tpu.matmul %217, %76, %cst_133 {dimension_numbers = #tpu.dot_dimension_numbers<[1], [0], [0], [1], [0, 0, 1, 1], [], []>} : vector<2x32xbf16>, vector<32x128xbf16>, vector<2x128xf32> -> vector<2x128xf32>
    %219 = arith.addf %215, %218 : vector<2x128xf32>
    %c0_134 = arith.constant 0 : index
    %c0_135 = arith.constant 0 : index
    %220 = vector.load %arg16[%c0_134, %c0_135] : memref<2x32xf32, #tpu.memory_space<vmem>>, vector<2x32xf32>
    %221 = arith.negf %219 : vector<2x128xf32>
    %222 = math.exp %221 : vector<2x128xf32>
    %cst_136 = arith.constant 1.000000e+00 : f32
    %223 = vector.broadcast %cst_136 : f32 to vector<2x128xf32>
    %224 = arith.addf %223, %222 : vector<2x128xf32>
    %225 = arith.divf %223, %224 : vector<2x128xf32>
    %226 = math.tanh %219 : vector<2x128xf32>
    %227 = vector.extract_strided_slice %225 {offsets = [0, 0], sizes = [2, 32], strides = [1, 1]} : vector<2x128xf32> to vector<2x32xf32>
    %228 = vector.extract_strided_slice %225 {offsets = [0, 32], sizes = [2, 32], strides = [1, 1]} : vector<2x128xf32> to vector<2x32xf32>
    %229 = vector.extract_strided_slice %225 {offsets = [0, 96], sizes = [2, 32], strides = [1, 1]} : vector<2x128xf32> to vector<2x32xf32>
    %230 = vector.extract_strided_slice %226 {offsets = [0, 64], sizes = [2, 32], strides = [1, 1]} : vector<2x128xf32> to vector<2x32xf32>
    %231 = arith.mulf %228, %220 : vector<2x32xf32>
    %232 = arith.mulf %227, %230 : vector<2x32xf32>
    %233 = arith.addf %231, %232 : vector<2x32xf32>
    %234 = math.tanh %233 : vector<2x32xf32>
    %235 = arith.mulf %229, %234 : vector<2x32xf32>
    %c0_137 = arith.constant 0 : index
    %c0_138 = arith.constant 0 : index
    %236 = vector.load %arg15[%c0_137, %c0_138] : memref<2x32xf32, #tpu.memory_space<vmem>>, vector<2x32xf32>
    tpu.vector_store %arg15[%c0_137, %c0_138], %235 {strides = array<i32>} : memref<2x32xf32, #tpu.memory_space<vmem>>, vector<2x32xf32>,
    %c0_139 = arith.constant 0 : index
    %c0_140 = arith.constant 0 : index
    %237 = vector.load %arg16[%c0_139, %c0_140] : memref<2x32xf32, #tpu.memory_space<vmem>>, vector<2x32xf32>
    tpu.vector_store %arg16[%c0_139, %c0_140], %233 {strides = array<i32>} : memref<2x32xf32, #tpu.memory_space<vmem>>, vector<2x32xf32>,
    %c3_i32 = arith.constant 3 : i32
    %c7_i32_141 = arith.constant 7 : i32
    %238 = arith.subi %c7_i32_141, %c3_i32 : i32
    %239 = arith.index_cast %c3_i32 : i32 to index
    %c0_142 = arith.constant 0 : index
    %c0_143 = arith.constant 0 : index
    %240 = vector.load %arg11[%239, %c0_142, %c0_143] : memref<8x2x128xf32, #tpu.memory_space<vmem>>, vector<1x2x128xf32>
    %241 = vector.shape_cast %240 : vector<1x2x128xf32> to vector<2x128xf32>
    %c0_144 = arith.constant 0 : index
    %c0_145 = arith.constant 0 : index
    %242 = vector.load %arg13[%c0_144, %c0_145] : memref<2x32xf32, #tpu.memory_space<vmem>>, vector<2x32xf32>
    %243 = arith.truncf %242 : vector<2x32xf32> to vector<2x32xbf16>
    %cst_146 = arith.constant dense<0.000000e+00> : vector<2x128xf32>
    %244 = tpu.matmul %243, %75, %cst_146 {dimension_numbers = #tpu.dot_dimension_numbers<[1], [0], [0], [1], [0, 0, 1, 1], [], []>} : vector<2x32xbf16>, vector<32x128xbf16>, vector<2x128xf32> -> vector<2x128xf32>
    %245 = arith.addf %241, %244 : vector<2x128xf32>
    %c0_147 = arith.constant 0 : index
    %c0_148 = arith.constant 0 : index
    %246 = vector.load %arg14[%c0_147, %c0_148] : memref<2x32xf32, #tpu.memory_space<vmem>>, vector<2x32xf32>
    %247 = arith.negf %245 : vector<2x128xf32>
    %248 = math.exp %247 : vector<2x128xf32>
    %cst_149 = arith.constant 1.000000e+00 : f32
    %249 = vector.broadcast %cst_149 : f32 to vector<2x128xf32>
    %250 = arith.addf %249, %248 : vector<2x128xf32>
    %251 = arith.divf %249, %250 : vector<2x128xf32>
    %252 = math.tanh %245 : vector<2x128xf32>
    %253 = vector.extract_strided_slice %251 {offsets = [0, 0], sizes = [2, 32], strides = [1, 1]} : vector<2x128xf32> to vector<2x32xf32>
    %254 = vector.extract_strided_slice %251 {offsets = [0, 32], sizes = [2, 32], strides = [1, 1]} : vector<2x128xf32> to vector<2x32xf32>
    %255 = vector.extract_strided_slice %251 {offsets = [0, 96], sizes = [2, 32], strides = [1, 1]} : vector<2x128xf32> to vector<2x32xf32>
    %256 = vector.extract_strided_slice %252 {offsets = [0, 64], sizes = [2, 32], strides = [1, 1]} : vector<2x128xf32> to vector<2x32xf32>
    %257 = arith.mulf %254, %246 : vector<2x32xf32>
    %258 = arith.mulf %253, %256 : vector<2x32xf32>
    %259 = arith.addf %257, %258 : vector<2x32xf32>
    %260 = math.tanh %259 : vector<2x32xf32>
    %261 = arith.mulf %255, %260 : vector<2x32xf32>
    %c0_150 = arith.constant 0 : index
    %c0_151 = arith.constant 0 : index
    %262 = vector.load %arg13[%c0_150, %c0_151] : memref<2x32xf32, #tpu.memory_space<vmem>>, vector<2x32xf32>
    tpu.vector_store %arg13[%c0_150, %c0_151], %261 {strides = array<i32>} : memref<2x32xf32, #tpu.memory_space<vmem>>, vector<2x32xf32>,
    %c0_152 = arith.constant 0 : index
    %c0_153 = arith.constant 0 : index
    %263 = vector.load %arg14[%c0_152, %c0_153] : memref<2x32xf32, #tpu.memory_space<vmem>>, vector<2x32xf32>
    tpu.vector_store %arg14[%c0_152, %c0_153], %259 {strides = array<i32>} : memref<2x32xf32, #tpu.memory_space<vmem>>, vector<2x32xf32>,
    %264 = arith.index_cast %238 : i32 to index
    %c0_154 = arith.constant 0 : index
    %c0_155 = arith.constant 0 : index
    %265 = vector.load %arg12[%264, %c0_154, %c0_155] : memref<8x2x128xf32, #tpu.memory_space<vmem>>, vector<1x2x128xf32>
    %266 = vector.shape_cast %265 : vector<1x2x128xf32> to vector<2x128xf32>
    %c0_156 = arith.constant 0 : index
    %c0_157 = arith.constant 0 : index
    %267 = vector.load %arg15[%c0_156, %c0_157] : memref<2x32xf32, #tpu.memory_space<vmem>>, vector<2x32xf32>
    %268 = arith.truncf %267 : vector<2x32xf32> to vector<2x32xbf16>
    %cst_158 = arith.constant dense<0.000000e+00> : vector<2x128xf32>
    %269 = tpu.matmul %268, %76, %cst_158 {dimension_numbers = #tpu.dot_dimension_numbers<[1], [0], [0], [1], [0, 0, 1, 1], [], []>} : vector<2x32xbf16>, vector<32x128xbf16>, vector<2x128xf32> -> vector<2x128xf32>
    %270 = arith.addf %266, %269 : vector<2x128xf32>
    %c0_159 = arith.constant 0 : index
    %c0_160 = arith.constant 0 : index
    %271 = vector.load %arg16[%c0_159, %c0_160] : memref<2x32xf32, #tpu.memory_space<vmem>>, vector<2x32xf32>
    %272 = arith.negf %270 : vector<2x128xf32>
    %273 = math.exp %272 : vector<2x128xf32>
    %cst_161 = arith.constant 1.000000e+00 : f32
    %274 = vector.broadcast %cst_161 : f32 to vector<2x128xf32>
    %275 = arith.addf %274, %273 : vector<2x128xf32>
    %276 = arith.divf %274, %275 : vector<2x128xf32>
    %277 = math.tanh %270 : vector<2x128xf32>
    %278 = vector.extract_strided_slice %276 {offsets = [0, 0], sizes = [2, 32], strides = [1, 1]} : vector<2x128xf32> to vector<2x32xf32>
    %279 = vector.extract_strided_slice %276 {offsets = [0, 32], sizes = [2, 32], strides = [1, 1]} : vector<2x128xf32> to vector<2x32xf32>
    %280 = vector.extract_strided_slice %276 {offsets = [0, 96], sizes = [2, 32], strides = [1, 1]} : vector<2x128xf32> to vector<2x32xf32>
    %281 = vector.extract_strided_slice %277 {offsets = [0, 64], sizes = [2, 32], strides = [1, 1]} : vector<2x128xf32> to vector<2x32xf32>
    %282 = arith.mulf %279, %271 : vector<2x32xf32>
    %283 = arith.mulf %278, %281 : vector<2x32xf32>
    %284 = arith.addf %282, %283 : vector<2x32xf32>
    %285 = math.tanh %284 : vector<2x32xf32>
    %286 = arith.mulf %280, %285 : vector<2x32xf32>
    %c0_162 = arith.constant 0 : index
    %c0_163 = arith.constant 0 : index
    %287 = vector.load %arg15[%c0_162, %c0_163] : memref<2x32xf32, #tpu.memory_space<vmem>>, vector<2x32xf32>
    tpu.vector_store %arg15[%c0_162, %c0_163], %286 {strides = array<i32>} : memref<2x32xf32, #tpu.memory_space<vmem>>, vector<2x32xf32>,
    %c0_164 = arith.constant 0 : index
    %c0_165 = arith.constant 0 : index
    %288 = vector.load %arg16[%c0_164, %c0_165] : memref<2x32xf32, #tpu.memory_space<vmem>>, vector<2x32xf32>
    tpu.vector_store %arg16[%c0_164, %c0_165], %284 {strides = array<i32>} : memref<2x32xf32, #tpu.memory_space<vmem>>, vector<2x32xf32>,
    %c4_i32 = arith.constant 4 : i32
    %c7_i32_166 = arith.constant 7 : i32
    %289 = arith.subi %c7_i32_166, %c4_i32 : i32
    %290 = arith.index_cast %c4_i32 : i32 to index
    %c0_167 = arith.constant 0 : index
    %c0_168 = arith.constant 0 : index
    %291 = vector.load %arg11[%290, %c0_167, %c0_168] : memref<8x2x128xf32, #tpu.memory_space<vmem>>, vector<1x2x128xf32>
    %292 = vector.shape_cast %291 : vector<1x2x128xf32> to vector<2x128xf32>
    %c0_169 = arith.constant 0 : index
    %c0_170 = arith.constant 0 : index
    %293 = vector.load %arg13[%c0_169, %c0_170] : memref<2x32xf32, #tpu.memory_space<vmem>>, vector<2x32xf32>
    %294 = arith.truncf %293 : vector<2x32xf32> to vector<2x32xbf16>
    %cst_171 = arith.constant dense<0.000000e+00> : vector<2x128xf32>
    %295 = tpu.matmul %294, %75, %cst_171 {dimension_numbers = #tpu.dot_dimension_numbers<[1], [0], [0], [1], [0, 0, 1, 1], [], []>} : vector<2x32xbf16>, vector<32x128xbf16>, vector<2x128xf32> -> vector<2x128xf32>
    %296 = arith.addf %292, %295 : vector<2x128xf32>
    %c0_172 = arith.constant 0 : index
    %c0_173 = arith.constant 0 : index
    %297 = vector.load %arg14[%c0_172, %c0_173] : memref<2x32xf32, #tpu.memory_space<vmem>>, vector<2x32xf32>
    %298 = arith.negf %296 : vector<2x128xf32>
    %299 = math.exp %298 : vector<2x128xf32>
    %cst_174 = arith.constant 1.000000e+00 : f32
    %300 = vector.broadcast %cst_174 : f32 to vector<2x128xf32>
    %301 = arith.addf %300, %299 : vector<2x128xf32>
    %302 = arith.divf %300, %301 : vector<2x128xf32>
    %303 = math.tanh %296 : vector<2x128xf32>
    %304 = vector.extract_strided_slice %302 {offsets = [0, 0], sizes = [2, 32], strides = [1, 1]} : vector<2x128xf32> to vector<2x32xf32>
    %305 = vector.extract_strided_slice %302 {offsets = [0, 32], sizes = [2, 32], strides = [1, 1]} : vector<2x128xf32> to vector<2x32xf32>
    %306 = vector.extract_strided_slice %302 {offsets = [0, 96], sizes = [2, 32], strides = [1, 1]} : vector<2x128xf32> to vector<2x32xf32>
    %307 = vector.extract_strided_slice %303 {offsets = [0, 64], sizes = [2, 32], strides = [1, 1]} : vector<2x128xf32> to vector<2x32xf32>
    %308 = arith.mulf %305, %297 : vector<2x32xf32>
    %309 = arith.mulf %304, %307 : vector<2x32xf32>
    %310 = arith.addf %308, %309 : vector<2x32xf32>
    %311 = math.tanh %310 : vector<2x32xf32>
    %312 = arith.mulf %306, %311 : vector<2x32xf32>
    %c0_175 = arith.constant 0 : index
    %c0_176 = arith.constant 0 : index
    %313 = vector.load %arg13[%c0_175, %c0_176] : memref<2x32xf32, #tpu.memory_space<vmem>>, vector<2x32xf32>
    tpu.vector_store %arg13[%c0_175, %c0_176], %312 {strides = array<i32>} : memref<2x32xf32, #tpu.memory_space<vmem>>, vector<2x32xf32>,
    %c0_177 = arith.constant 0 : index
    %c0_178 = arith.constant 0 : index
    %314 = vector.load %arg14[%c0_177, %c0_178] : memref<2x32xf32, #tpu.memory_space<vmem>>, vector<2x32xf32>
    tpu.vector_store %arg14[%c0_177, %c0_178], %310 {strides = array<i32>} : memref<2x32xf32, #tpu.memory_space<vmem>>, vector<2x32xf32>,
    %315 = arith.index_cast %289 : i32 to index
    %c0_179 = arith.constant 0 : index
    %c0_180 = arith.constant 0 : index
    %316 = vector.load %arg12[%315, %c0_179, %c0_180] : memref<8x2x128xf32, #tpu.memory_space<vmem>>, vector<1x2x128xf32>
    %317 = vector.shape_cast %316 : vector<1x2x128xf32> to vector<2x128xf32>
    %c0_181 = arith.constant 0 : index
    %c0_182 = arith.constant 0 : index
    %318 = vector.load %arg15[%c0_181, %c0_182] : memref<2x32xf32, #tpu.memory_space<vmem>>, vector<2x32xf32>
    %319 = arith.truncf %318 : vector<2x32xf32> to vector<2x32xbf16>
    %cst_183 = arith.constant dense<0.000000e+00> : vector<2x128xf32>
    %320 = tpu.matmul %319, %76, %cst_183 {dimension_numbers = #tpu.dot_dimension_numbers<[1], [0], [0], [1], [0, 0, 1, 1], [], []>} : vector<2x32xbf16>, vector<32x128xbf16>, vector<2x128xf32> -> vector<2x128xf32>
    %321 = arith.addf %317, %320 : vector<2x128xf32>
    %c0_184 = arith.constant 0 : index
    %c0_185 = arith.constant 0 : index
    %322 = vector.load %arg16[%c0_184, %c0_185] : memref<2x32xf32, #tpu.memory_space<vmem>>, vector<2x32xf32>
    %323 = arith.negf %321 : vector<2x128xf32>
    %324 = math.exp %323 : vector<2x128xf32>
    %cst_186 = arith.constant 1.000000e+00 : f32
    %325 = vector.broadcast %cst_186 : f32 to vector<2x128xf32>
    %326 = arith.addf %325, %324 : vector<2x128xf32>
    %327 = arith.divf %325, %326 : vector<2x128xf32>
    %328 = math.tanh %321 : vector<2x128xf32>
    %329 = vector.extract_strided_slice %327 {offsets = [0, 0], sizes = [2, 32], strides = [1, 1]} : vector<2x128xf32> to vector<2x32xf32>
    %330 = vector.extract_strided_slice %327 {offsets = [0, 32], sizes = [2, 32], strides = [1, 1]} : vector<2x128xf32> to vector<2x32xf32>
    %331 = vector.extract_strided_slice %327 {offsets = [0, 96], sizes = [2, 32], strides = [1, 1]} : vector<2x128xf32> to vector<2x32xf32>
    %332 = vector.extract_strided_slice %328 {offsets = [0, 64], sizes = [2, 32], strides = [1, 1]} : vector<2x128xf32> to vector<2x32xf32>
    %333 = arith.mulf %330, %322 : vector<2x32xf32>
    %334 = arith.mulf %329, %332 : vector<2x32xf32>
    %335 = arith.addf %333, %334 : vector<2x32xf32>
    %336 = math.tanh %335 : vector<2x32xf32>
    %337 = arith.mulf %331, %336 : vector<2x32xf32>
    %c0_187 = arith.constant 0 : index
    %c0_188 = arith.constant 0 : index
    %338 = vector.load %arg15[%c0_187, %c0_188] : memref<2x32xf32, #tpu.memory_space<vmem>>, vector<2x32xf32>
    tpu.vector_store %arg15[%c0_187, %c0_188], %337 {strides = array<i32>} : memref<2x32xf32, #tpu.memory_space<vmem>>, vector<2x32xf32>,
    %c0_189 = arith.constant 0 : index
    %c0_190 = arith.constant 0 : index
    %339 = vector.load %arg16[%c0_189, %c0_190] : memref<2x32xf32, #tpu.memory_space<vmem>>, vector<2x32xf32>
    tpu.vector_store %arg16[%c0_189, %c0_190], %335 {strides = array<i32>} : memref<2x32xf32, #tpu.memory_space<vmem>>, vector<2x32xf32>,
    %c5_i32 = arith.constant 5 : i32
    %c7_i32_191 = arith.constant 7 : i32
    %340 = arith.subi %c7_i32_191, %c5_i32 : i32
    %341 = arith.index_cast %c5_i32 : i32 to index
    %c0_192 = arith.constant 0 : index
    %c0_193 = arith.constant 0 : index
    %342 = vector.load %arg11[%341, %c0_192, %c0_193] : memref<8x2x128xf32, #tpu.memory_space<vmem>>, vector<1x2x128xf32>
    %343 = vector.shape_cast %342 : vector<1x2x128xf32> to vector<2x128xf32>
    %c0_194 = arith.constant 0 : index
    %c0_195 = arith.constant 0 : index
    %344 = vector.load %arg13[%c0_194, %c0_195] : memref<2x32xf32, #tpu.memory_space<vmem>>, vector<2x32xf32>
    %345 = arith.truncf %344 : vector<2x32xf32> to vector<2x32xbf16>
    %cst_196 = arith.constant dense<0.000000e+00> : vector<2x128xf32>
    %346 = tpu.matmul %345, %75, %cst_196 {dimension_numbers = #tpu.dot_dimension_numbers<[1], [0], [0], [1], [0, 0, 1, 1], [], []>} : vector<2x32xbf16>, vector<32x128xbf16>, vector<2x128xf32> -> vector<2x128xf32>
    %347 = arith.addf %343, %346 : vector<2x128xf32>
    %c0_197 = arith.constant 0 : index
    %c0_198 = arith.constant 0 : index
    %348 = vector.load %arg14[%c0_197, %c0_198] : memref<2x32xf32, #tpu.memory_space<vmem>>, vector<2x32xf32>
    %349 = arith.negf %347 : vector<2x128xf32>
    %350 = math.exp %349 : vector<2x128xf32>
    %cst_199 = arith.constant 1.000000e+00 : f32
    %351 = vector.broadcast %cst_199 : f32 to vector<2x128xf32>
    %352 = arith.addf %351, %350 : vector<2x128xf32>
    %353 = arith.divf %351, %352 : vector<2x128xf32>
    %354 = math.tanh %347 : vector<2x128xf32>
    %355 = vector.extract_strided_slice %353 {offsets = [0, 0], sizes = [2, 32], strides = [1, 1]} : vector<2x128xf32> to vector<2x32xf32>
    %356 = vector.extract_strided_slice %353 {offsets = [0, 32], sizes = [2, 32], strides = [1, 1]} : vector<2x128xf32> to vector<2x32xf32>
    %357 = vector.extract_strided_slice %353 {offsets = [0, 96], sizes = [2, 32], strides = [1, 1]} : vector<2x128xf32> to vector<2x32xf32>
    %358 = vector.extract_strided_slice %354 {offsets = [0, 64], sizes = [2, 32], strides = [1, 1]} : vector<2x128xf32> to vector<2x32xf32>
    %359 = arith.mulf %356, %348 : vector<2x32xf32>
    %360 = arith.mulf %355, %358 : vector<2x32xf32>
    %361 = arith.addf %359, %360 : vector<2x32xf32>
    %362 = math.tanh %361 : vector<2x32xf32>
    %363 = arith.mulf %357, %362 : vector<2x32xf32>
    %c0_200 = arith.constant 0 : index
    %c0_201 = arith.constant 0 : index
    %364 = vector.load %arg13[%c0_200, %c0_201] : memref<2x32xf32, #tpu.memory_space<vmem>>, vector<2x32xf32>
    tpu.vector_store %arg13[%c0_200, %c0_201], %363 {strides = array<i32>} : memref<2x32xf32, #tpu.memory_space<vmem>>, vector<2x32xf32>,
    %c0_202 = arith.constant 0 : index
    %c0_203 = arith.constant 0 : index
    %365 = vector.load %arg14[%c0_202, %c0_203] : memref<2x32xf32, #tpu.memory_space<vmem>>, vector<2x32xf32>
    tpu.vector_store %arg14[%c0_202, %c0_203], %361 {strides = array<i32>} : memref<2x32xf32, #tpu.memory_space<vmem>>, vector<2x32xf32>,
    %366 = arith.index_cast %340 : i32 to index
    %c0_204 = arith.constant 0 : index
    %c0_205 = arith.constant 0 : index
    %367 = vector.load %arg12[%366, %c0_204, %c0_205] : memref<8x2x128xf32, #tpu.memory_space<vmem>>, vector<1x2x128xf32>
    %368 = vector.shape_cast %367 : vector<1x2x128xf32> to vector<2x128xf32>
    %c0_206 = arith.constant 0 : index
    %c0_207 = arith.constant 0 : index
    %369 = vector.load %arg15[%c0_206, %c0_207] : memref<2x32xf32, #tpu.memory_space<vmem>>, vector<2x32xf32>
    %370 = arith.truncf %369 : vector<2x32xf32> to vector<2x32xbf16>
    %cst_208 = arith.constant dense<0.000000e+00> : vector<2x128xf32>
    %371 = tpu.matmul %370, %76, %cst_208 {dimension_numbers = #tpu.dot_dimension_numbers<[1], [0], [0], [1], [0, 0, 1, 1], [], []>} : vector<2x32xbf16>, vector<32x128xbf16>, vector<2x128xf32> -> vector<2x128xf32>
    %372 = arith.addf %368, %371 : vector<2x128xf32>
    %c0_209 = arith.constant 0 : index
    %c0_210 = arith.constant 0 : index
    %373 = vector.load %arg16[%c0_209, %c0_210] : memref<2x32xf32, #tpu.memory_space<vmem>>, vector<2x32xf32>
    %374 = arith.negf %372 : vector<2x128xf32>
    %375 = math.exp %374 : vector<2x128xf32>
    %cst_211 = arith.constant 1.000000e+00 : f32
    %376 = vector.broadcast %cst_211 : f32 to vector<2x128xf32>
    %377 = arith.addf %376, %375 : vector<2x128xf32>
    %378 = arith.divf %376, %377 : vector<2x128xf32>
    %379 = math.tanh %372 : vector<2x128xf32>
    %380 = vector.extract_strided_slice %378 {offsets = [0, 0], sizes = [2, 32], strides = [1, 1]} : vector<2x128xf32> to vector<2x32xf32>
    %381 = vector.extract_strided_slice %378 {offsets = [0, 32], sizes = [2, 32], strides = [1, 1]} : vector<2x128xf32> to vector<2x32xf32>
    %382 = vector.extract_strided_slice %378 {offsets = [0, 96], sizes = [2, 32], strides = [1, 1]} : vector<2x128xf32> to vector<2x32xf32>
    %383 = vector.extract_strided_slice %379 {offsets = [0, 64], sizes = [2, 32], strides = [1, 1]} : vector<2x128xf32> to vector<2x32xf32>
    %384 = arith.mulf %381, %373 : vector<2x32xf32>
    %385 = arith.mulf %380, %383 : vector<2x32xf32>
    %386 = arith.addf %384, %385 : vector<2x32xf32>
    %387 = math.tanh %386 : vector<2x32xf32>
    %388 = arith.mulf %382, %387 : vector<2x32xf32>
    %c0_212 = arith.constant 0 : index
    %c0_213 = arith.constant 0 : index
    %389 = vector.load %arg15[%c0_212, %c0_213] : memref<2x32xf32, #tpu.memory_space<vmem>>, vector<2x32xf32>
    tpu.vector_store %arg15[%c0_212, %c0_213], %388 {strides = array<i32>} : memref<2x32xf32, #tpu.memory_space<vmem>>, vector<2x32xf32>,
    %c0_214 = arith.constant 0 : index
    %c0_215 = arith.constant 0 : index
    %390 = vector.load %arg16[%c0_214, %c0_215] : memref<2x32xf32, #tpu.memory_space<vmem>>, vector<2x32xf32>
    tpu.vector_store %arg16[%c0_214, %c0_215], %386 {strides = array<i32>} : memref<2x32xf32, #tpu.memory_space<vmem>>, vector<2x32xf32>,
    %c6_i32 = arith.constant 6 : i32
    %c7_i32_216 = arith.constant 7 : i32
    %391 = arith.subi %c7_i32_216, %c6_i32 : i32
    %392 = arith.index_cast %c6_i32 : i32 to index
    %c0_217 = arith.constant 0 : index
    %c0_218 = arith.constant 0 : index
    %393 = vector.load %arg11[%392, %c0_217, %c0_218] : memref<8x2x128xf32, #tpu.memory_space<vmem>>, vector<1x2x128xf32>
    %394 = vector.shape_cast %393 : vector<1x2x128xf32> to vector<2x128xf32>
    %c0_219 = arith.constant 0 : index
    %c0_220 = arith.constant 0 : index
    %395 = vector.load %arg13[%c0_219, %c0_220] : memref<2x32xf32, #tpu.memory_space<vmem>>, vector<2x32xf32>
    %396 = arith.truncf %395 : vector<2x32xf32> to vector<2x32xbf16>
    %cst_221 = arith.constant dense<0.000000e+00> : vector<2x128xf32>
    %397 = tpu.matmul %396, %75, %cst_221 {dimension_numbers = #tpu.dot_dimension_numbers<[1], [0], [0], [1], [0, 0, 1, 1], [], []>} : vector<2x32xbf16>, vector<32x128xbf16>, vector<2x128xf32> -> vector<2x128xf32>
    %398 = arith.addf %394, %397 : vector<2x128xf32>
    %c0_222 = arith.constant 0 : index
    %c0_223 = arith.constant 0 : index
    %399 = vector.load %arg14[%c0_222, %c0_223] : memref<2x32xf32, #tpu.memory_space<vmem>>, vector<2x32xf32>
    %400 = arith.negf %398 : vector<2x128xf32>
    %401 = math.exp %400 : vector<2x128xf32>
    %cst_224 = arith.constant 1.000000e+00 : f32
    %402 = vector.broadcast %cst_224 : f32 to vector<2x128xf32>
    %403 = arith.addf %402, %401 : vector<2x128xf32>
    %404 = arith.divf %402, %403 : vector<2x128xf32>
    %405 = math.tanh %398 : vector<2x128xf32>
    %406 = vector.extract_strided_slice %404 {offsets = [0, 0], sizes = [2, 32], strides = [1, 1]} : vector<2x128xf32> to vector<2x32xf32>
    %407 = vector.extract_strided_slice %404 {offsets = [0, 32], sizes = [2, 32], strides = [1, 1]} : vector<2x128xf32> to vector<2x32xf32>
    %408 = vector.extract_strided_slice %404 {offsets = [0, 96], sizes = [2, 32], strides = [1, 1]} : vector<2x128xf32> to vector<2x32xf32>
    %409 = vector.extract_strided_slice %405 {offsets = [0, 64], sizes = [2, 32], strides = [1, 1]} : vector<2x128xf32> to vector<2x32xf32>
    %410 = arith.mulf %407, %399 : vector<2x32xf32>
    %411 = arith.mulf %406, %409 : vector<2x32xf32>
    %412 = arith.addf %410, %411 : vector<2x32xf32>
    %413 = math.tanh %412 : vector<2x32xf32>
    %414 = arith.mulf %408, %413 : vector<2x32xf32>
    %c0_225 = arith.constant 0 : index
    %c0_226 = arith.constant 0 : index
    %415 = vector.load %arg13[%c0_225, %c0_226] : memref<2x32xf32, #tpu.memory_space<vmem>>, vector<2x32xf32>
    tpu.vector_store %arg13[%c0_225, %c0_226], %414 {strides = array<i32>} : memref<2x32xf32, #tpu.memory_space<vmem>>, vector<2x32xf32>,
    %c0_227 = arith.constant 0 : index
    %c0_228 = arith.constant 0 : index
    %416 = vector.load %arg14[%c0_227, %c0_228] : memref<2x32xf32, #tpu.memory_space<vmem>>, vector<2x32xf32>
    tpu.vector_store %arg14[%c0_227, %c0_228], %412 {strides = array<i32>} : memref<2x32xf32, #tpu.memory_space<vmem>>, vector<2x32xf32>,
    %417 = arith.index_cast %391 : i32 to index
    %c0_229 = arith.constant 0 : index
    %c0_230 = arith.constant 0 : index
    %418 = vector.load %arg12[%417, %c0_229, %c0_230] : memref<8x2x128xf32, #tpu.memory_space<vmem>>, vector<1x2x128xf32>
    %419 = vector.shape_cast %418 : vector<1x2x128xf32> to vector<2x128xf32>
    %c0_231 = arith.constant 0 : index
    %c0_232 = arith.constant 0 : index
    %420 = vector.load %arg15[%c0_231, %c0_232] : memref<2x32xf32, #tpu.memory_space<vmem>>, vector<2x32xf32>
    %421 = arith.truncf %420 : vector<2x32xf32> to vector<2x32xbf16>
    %cst_233 = arith.constant dense<0.000000e+00> : vector<2x128xf32>
    %422 = tpu.matmul %421, %76, %cst_233 {dimension_numbers = #tpu.dot_dimension_numbers<[1], [0], [0], [1], [0, 0, 1, 1], [], []>} : vector<2x32xbf16>, vector<32x128xbf16>, vector<2x128xf32> -> vector<2x128xf32>
    %423 = arith.addf %419, %422 : vector<2x128xf32>
    %c0_234 = arith.constant 0 : index
    %c0_235 = arith.constant 0 : index
    %424 = vector.load %arg16[%c0_234, %c0_235] : memref<2x32xf32, #tpu.memory_space<vmem>>, vector<2x32xf32>
    %425 = arith.negf %423 : vector<2x128xf32>
    %426 = math.exp %425 : vector<2x128xf32>
    %cst_236 = arith.constant 1.000000e+00 : f32
    %427 = vector.broadcast %cst_236 : f32 to vector<2x128xf32>
    %428 = arith.addf %427, %426 : vector<2x128xf32>
    %429 = arith.divf %427, %428 : vector<2x128xf32>
    %430 = math.tanh %423 : vector<2x128xf32>
    %431 = vector.extract_strided_slice %429 {offsets = [0, 0], sizes = [2, 32], strides = [1, 1]} : vector<2x128xf32> to vector<2x32xf32>
    %432 = vector.extract_strided_slice %429 {offsets = [0, 32], sizes = [2, 32], strides = [1, 1]} : vector<2x128xf32> to vector<2x32xf32>
    %433 = vector.extract_strided_slice %429 {offsets = [0, 96], sizes = [2, 32], strides = [1, 1]} : vector<2x128xf32> to vector<2x32xf32>
    %434 = vector.extract_strided_slice %430 {offsets = [0, 64], sizes = [2, 32], strides = [1, 1]} : vector<2x128xf32> to vector<2x32xf32>
    %435 = arith.mulf %432, %424 : vector<2x32xf32>
    %436 = arith.mulf %431, %434 : vector<2x32xf32>
    %437 = arith.addf %435, %436 : vector<2x32xf32>
    %438 = math.tanh %437 : vector<2x32xf32>
    %439 = arith.mulf %433, %438 : vector<2x32xf32>
    %c0_237 = arith.constant 0 : index
    %c0_238 = arith.constant 0 : index
    %440 = vector.load %arg15[%c0_237, %c0_238] : memref<2x32xf32, #tpu.memory_space<vmem>>, vector<2x32xf32>
    tpu.vector_store %arg15[%c0_237, %c0_238], %439 {strides = array<i32>} : memref<2x32xf32, #tpu.memory_space<vmem>>, vector<2x32xf32>,
    %c0_239 = arith.constant 0 : index
    %c0_240 = arith.constant 0 : index
    %441 = vector.load %arg16[%c0_239, %c0_240] : memref<2x32xf32, #tpu.memory_space<vmem>>, vector<2x32xf32>
    tpu.vector_store %arg16[%c0_239, %c0_240], %437 {strides = array<i32>} : memref<2x32xf32, #tpu.memory_space<vmem>>, vector<2x32xf32>,
    %c7_i32_241 = arith.constant 7 : i32
    %c7_i32_242 = arith.constant 7 : i32
    %442 = arith.subi %c7_i32_242, %c7_i32_241 : i32
    %443 = arith.index_cast %c7_i32_241 : i32 to index
    %c0_243 = arith.constant 0 : index
    %c0_244 = arith.constant 0 : index
    %444 = vector.load %arg11[%443, %c0_243, %c0_244] : memref<8x2x128xf32, #tpu.memory_space<vmem>>, vector<1x2x128xf32>
    %445 = vector.shape_cast %444 : vector<1x2x128xf32> to vector<2x128xf32>
    %c0_245 = arith.constant 0 : index
    %c0_246 = arith.constant 0 : index
    %446 = vector.load %arg13[%c0_245, %c0_246] : memref<2x32xf32, #tpu.memory_space<vmem>>, vector<2x32xf32>
    %447 = arith.truncf %446 : vector<2x32xf32> to vector<2x32xbf16>
    %cst_247 = arith.constant dense<0.000000e+00> : vector<2x128xf32>
    %448 = tpu.matmul %447, %75, %cst_247 {dimension_numbers = #tpu.dot_dimension_numbers<[1], [0], [0], [1], [0, 0, 1, 1], [], []>} : vector<2x32xbf16>, vector<32x128xbf16>, vector<2x128xf32> -> vector<2x128xf32>
    %449 = arith.addf %445, %448 : vector<2x128xf32>
    %c0_248 = arith.constant 0 : index
    %c0_249 = arith.constant 0 : index
    %450 = vector.load %arg14[%c0_248, %c0_249] : memref<2x32xf32, #tpu.memory_space<vmem>>, vector<2x32xf32>
    %451 = arith.negf %449 : vector<2x128xf32>
    %452 = math.exp %451 : vector<2x128xf32>
    %cst_250 = arith.constant 1.000000e+00 : f32
    %453 = vector.broadcast %cst_250 : f32 to vector<2x128xf32>
    %454 = arith.addf %453, %452 : vector<2x128xf32>
    %455 = arith.divf %453, %454 : vector<2x128xf32>
    %456 = math.tanh %449 : vector<2x128xf32>
    %457 = vector.extract_strided_slice %455 {offsets = [0, 0], sizes = [2, 32], strides = [1, 1]} : vector<2x128xf32> to vector<2x32xf32>
    %458 = vector.extract_strided_slice %455 {offsets = [0, 32], sizes = [2, 32], strides = [1, 1]} : vector<2x128xf32> to vector<2x32xf32>
    %459 = vector.extract_strided_slice %455 {offsets = [0, 96], sizes = [2, 32], strides = [1, 1]} : vector<2x128xf32> to vector<2x32xf32>
    %460 = vector.extract_strided_slice %456 {offsets = [0, 64], sizes = [2, 32], strides = [1, 1]} : vector<2x128xf32> to vector<2x32xf32>
    %461 = arith.mulf %458, %450 : vector<2x32xf32>
    %462 = arith.mulf %457, %460 : vector<2x32xf32>
    %463 = arith.addf %461, %462 : vector<2x32xf32>
    %464 = math.tanh %463 : vector<2x32xf32>
    %465 = arith.mulf %459, %464 : vector<2x32xf32>
    %c0_251 = arith.constant 0 : index
    %c0_252 = arith.constant 0 : index
    %466 = vector.load %arg13[%c0_251, %c0_252] : memref<2x32xf32, #tpu.memory_space<vmem>>, vector<2x32xf32>
    tpu.vector_store %arg13[%c0_251, %c0_252], %465 {strides = array<i32>} : memref<2x32xf32, #tpu.memory_space<vmem>>, vector<2x32xf32>,
    %c0_253 = arith.constant 0 : index
    %c0_254 = arith.constant 0 : index
    %467 = vector.load %arg14[%c0_253, %c0_254] : memref<2x32xf32, #tpu.memory_space<vmem>>, vector<2x32xf32>
    tpu.vector_store %arg14[%c0_253, %c0_254], %463 {strides = array<i32>} : memref<2x32xf32, #tpu.memory_space<vmem>>, vector<2x32xf32>,
    %468 = arith.index_cast %442 : i32 to index
    %c0_255 = arith.constant 0 : index
    %c0_256 = arith.constant 0 : index
    %469 = vector.load %arg12[%468, %c0_255, %c0_256] : memref<8x2x128xf32, #tpu.memory_space<vmem>>, vector<1x2x128xf32>
    %470 = vector.shape_cast %469 : vector<1x2x128xf32> to vector<2x128xf32>
    %c0_257 = arith.constant 0 : index
    %c0_258 = arith.constant 0 : index
    %471 = vector.load %arg15[%c0_257, %c0_258] : memref<2x32xf32, #tpu.memory_space<vmem>>, vector<2x32xf32>
    %472 = arith.truncf %471 : vector<2x32xf32> to vector<2x32xbf16>
    %cst_259 = arith.constant dense<0.000000e+00> : vector<2x128xf32>
    %473 = tpu.matmul %472, %76, %cst_259 {dimension_numbers = #tpu.dot_dimension_numbers<[1], [0], [0], [1], [0, 0, 1, 1], [], []>} : vector<2x32xbf16>, vector<32x128xbf16>, vector<2x128xf32> -> vector<2x128xf32>
    %474 = arith.addf %470, %473 : vector<2x128xf32>
    %c0_260 = arith.constant 0 : index
    %c0_261 = arith.constant 0 : index
    %475 = vector.load %arg16[%c0_260, %c0_261] : memref<2x32xf32, #tpu.memory_space<vmem>>, vector<2x32xf32>
    %476 = arith.negf %474 : vector<2x128xf32>
    %477 = math.exp %476 : vector<2x128xf32>
    %cst_262 = arith.constant 1.000000e+00 : f32
    %478 = vector.broadcast %cst_262 : f32 to vector<2x128xf32>
    %479 = arith.addf %478, %477 : vector<2x128xf32>
    %480 = arith.divf %478, %479 : vector<2x128xf32>
    %481 = math.tanh %474 : vector<2x128xf32>
    %482 = vector.extract_strided_slice %480 {offsets = [0, 0], sizes = [2, 32], strides = [1, 1]} : vector<2x128xf32> to vector<2x32xf32>
    %483 = vector.extract_strided_slice %480 {offsets = [0, 32], sizes = [2, 32], strides = [1, 1]} : vector<2x128xf32> to vector<2x32xf32>
    %484 = vector.extract_strided_slice %480 {offsets = [0, 96], sizes = [2, 32], strides = [1, 1]} : vector<2x128xf32> to vector<2x32xf32>
    %485 = vector.extract_strided_slice %481 {offsets = [0, 64], sizes = [2, 32], strides = [1, 1]} : vector<2x128xf32> to vector<2x32xf32>
    %486 = arith.mulf %483, %475 : vector<2x32xf32>
    %487 = arith.mulf %482, %485 : vector<2x32xf32>
    %488 = arith.addf %486, %487 : vector<2x32xf32>
    %489 = math.tanh %488 : vector<2x32xf32>
    %490 = arith.mulf %484, %489 : vector<2x32xf32>
    %c0_263 = arith.constant 0 : index
    %c0_264 = arith.constant 0 : index
    %491 = vector.load %arg15[%c0_263, %c0_264] : memref<2x32xf32, #tpu.memory_space<vmem>>, vector<2x32xf32>
    tpu.vector_store %arg15[%c0_263, %c0_264], %490 {strides = array<i32>} : memref<2x32xf32, #tpu.memory_space<vmem>>, vector<2x32xf32>,
    %c0_265 = arith.constant 0 : index
    %c0_266 = arith.constant 0 : index
    %492 = vector.load %arg16[%c0_265, %c0_266] : memref<2x32xf32, #tpu.memory_space<vmem>>, vector<2x32xf32>
    tpu.vector_store %arg16[%c0_265, %c0_266], %488 {strides = array<i32>} : memref<2x32xf32, #tpu.memory_space<vmem>>, vector<2x32xf32>,
    %c8_i32 = arith.constant 8 : i32
    %c0_267 = arith.constant 0 : index
    %c0_268 = arith.constant 0 : index
    %493 = vector.load %arg1[%c0_267, %c0_268] : memref<2x64xf32, #tpu.memory_space<vmem>>, vector<2x64xf32>
    %c0_269 = arith.constant 0 : index
    %c0_270 = arith.constant 0 : index
    %494 = vector.load %arg13[%c0_269, %c0_270] : memref<2x32xf32, #tpu.memory_space<vmem>>, vector<2x32xf32>
    %c0_271 = arith.constant 0 : index
    %c0_272 = arith.constant 0 : index
    %495 = vector.load %arg15[%c0_271, %c0_272] : memref<2x32xf32, #tpu.memory_space<vmem>>, vector<2x32xf32>
    %496 = tpu.concatenate %493, %494, %495 in 1 : vector<2x64xf32>, vector<2x32xf32>, vector<2x32xf32> -> vector<2x128xf32>
    %c0_273 = arith.constant 0 : index
    %c0_274 = arith.constant 0 : index
    %497 = vector.load %arg8[%c0_273, %c0_274] : memref<128x4xf32, #tpu.memory_space<vmem>>, vector<128x4xf32>
    %cst_275 = arith.constant dense<0.000000e+00> : vector<2x4xf32>
    %498 = tpu.matmul %496, %497, %cst_275 {dimension_numbers = #tpu.dot_dimension_numbers<[1], [0], [0], [1], [0, 0, 1, 1], [], []>} : vector<2x128xf32>, vector<128x4xf32>, vector<2x4xf32> -> vector<2x4xf32>
    %c0_276 = arith.constant 0 : index
    %c0_277 = arith.constant 0 : index
    %499 = vector.load %arg9[%c0_276, %c0_277] : memref<1x4xf32, #tpu.memory_space<vmem>>, vector<1x4xf32>
    %500 = vector.broadcast %499 : vector<1x4xf32> to vector<2x4xf32>
    %501 = arith.addf %498, %500 : vector<2x4xf32>
    %cst_278 = arith.constant dense<0xFF800000> : vector<2xf32>
    %502 = vector.multi_reduction <maximumf>, %501, %cst_278 [1] : vector<2x4xf32> to vector<2xf32>
    %503 = vector.shape_cast %502 : vector<2xf32> to vector<2x1xf32>
    %504 = vector.broadcast %503 : vector<2x1xf32> to vector<2x4xf32>
    %505 = arith.subf %501, %504 : vector<2x4xf32>
    %506 = math.exp %505 : vector<2x4xf32>
    %cst_279 = arith.constant dense<0.000000e+00> : vector<2xf32>
    %507 = vector.multi_reduction <add>, %506, %cst_279 [1] : vector<2x4xf32> to vector<2xf32>
    %508 = vector.shape_cast %507 : vector<2xf32> to vector<2x1xf32>
    %509 = vector.broadcast %508 : vector<2x1xf32> to vector<2x4xf32>
    %510 = arith.divf %506, %509 : vector<2x4xf32>
    %c0_280 = arith.constant 0 : index
    %c0_281 = arith.constant 0 : index
    %511 = vector.load %arg10[%c0_280, %c0_281] : memref<2x4xf32, #tpu.memory_space<vmem>>, vector<2x4xf32>
    tpu.vector_store %arg10[%c0_280, %c0_281], %510 {strides = array<i32>} : memref<2x4xf32, #tpu.memory_space<vmem>>, vector<2x4xf32>,
    return
  }
}

</mosaic_0001>

<llo_original>
// kernel: lstm_classifier_forward.3
$region0: #{lstm_classifier_forward.3}
  #allocation0 [shape = 'u32[]', space=smem, size = 0x4, offset = 0x4, fixed_abs, tag = 'smem constant byte address 0x4 - core index']
  #allocation1 [shape = 'u32[72,128]{1,0:T(1,128)}', space=vmem, size = 0x9000, scoped, tag = 'internal scratch']
  #allocation2 [shape = 'f32[8,2,128]{2,1,0:T(2,128)}', space=vmem, size = 0x2000, scoped, tag = 'scratch operand']
  #allocation3 [shape = 'f32[8,2,128]{2,1,0:T(2,128)}', space=vmem, size = 0x2000, scoped, tag = 'scratch operand']
  #allocation4 [shape = 'f32[2,32]{1,0:T(2,128)}', space=vmem, size = 0x400, scoped, tag = 'scratch operand']
  #allocation5 [shape = 'f32[2,32]{1,0:T(2,128)}', space=vmem, size = 0x400, scoped, tag = 'scratch operand']
  #allocation6 [shape = 'f32[2,32]{1,0:T(2,128)}', space=vmem, size = 0x400, scoped, tag = 'scratch operand']
  #allocation7 [shape = 'f32[2,32]{1,0:T(2,128)}', space=vmem, size = 0x400, scoped, tag = 'scratch operand']
  %s0 = inlined_call_operand.vmem [shape: bf16[16,64], index: 0, kind: input, shape index: {}]
  %s1 = inlined_call_operand.vmem [shape: f32[2,64], index: 1, kind: input, shape index: {}]
  %s2 = inlined_call_operand.vmem [shape: bf16[64,128], index: 2, kind: input, shape index: {}]
  %s3 = inlined_call_operand.vmem [shape: bf16[32,128], index: 3, kind: input, shape index: {}]
  %s4 = inlined_call_operand.vmem [shape: f32[1,128], index: 4, kind: input, shape index: {}]
  %s5 = inlined_call_operand.vmem [shape: bf16[64,128], index: 5, kind: input, shape index: {}]
  %s6 = inlined_call_operand.vmem [shape: bf16[32,128], index: 6, kind: input, shape index: {}]
  %s7 = inlined_call_operand.vmem [shape: f32[1,128], index: 7, kind: input, shape index: {}]
  %s8 = inlined_call_operand.vmem [shape: f32[128,4], index: 8, kind: input, shape index: {}]
  %s9 = inlined_call_operand.vmem [shape: f32[1,4], index: 9, kind: input, shape index: {}]
  %s10 = inlined_call_operand.hbm [shape: f32[2,4], index: 10, kind: output, shape index: {}]
  %s11 = sld [smem:[#allocation0]]
  $region50: #{lstm_classifier_forward.3} parent=0
    _
  %s13 = ssub.s32 1, %s11
  %s14 = scalar_select 0, %s13, %s11
  $region1: #{lstm_classifier_forward.3} parent=0
    #allocation8 [shape = 'u8[1024]{0}', space=vmem, size = 0x400, scoped, tag = 'output window, operand 0, single buffered']
    #allocation9 [shape = 's32[1]{0}', space=sflag, size = 0x4, scoped, tag = 'scoped memory for lstm_classifier_forward.3']
    %15 = vsyncpa [#allocation9], 0
    // Predicated region
    $region2: #{lstm_classifier_forward.3} parent=1 // pred_check
      _
    $region3: #{lstm_classifier_forward.3} parent=1 // pred_check_branch
      %17 = sbr.rel (0) target = $region5
    $region4: #{lstm_classifier_forward.3} parent=1 // pred_region
      _
    $region5: #{lstm_classifier_forward.3} parent=1 // pred_fallthru
      _
    // Predicated region
    $region6: #{lstm_classifier_forward.3} parent=1 // pred_check
      _
    $region7: #{lstm_classifier_forward.3} parent=1 // pred_check_branch
      %19 = sbr.rel (0) target = $region9
    $region8: #{lstm_classifier_forward.3} parent=1 // pred_region
      _
    $region9: #{lstm_classifier_forward.3} parent=1 // pred_fallthru
      _
    // Predicated region
    $region10: #{lstm_classifier_forward.3} parent=1 // pred_check
      _
    $region11: #{lstm_classifier_forward.3} parent=1 // pred_check_branch
      %21 = sbr.rel (0) target = $region13
    $region12: #{lstm_classifier_forward.3} parent=1 // pred_region
      _
    $region13: #{lstm_classifier_forward.3} parent=1 // pred_fallthru
      _
    // Predicated region
    $region14: #{lstm_classifier_forward.3} parent=1 // pred_check
      _
    $region15: #{lstm_classifier_forward.3} parent=1 // pred_check_branch
      %23 = sbr.rel (0) target = $region17
    $region16: #{lstm_classifier_forward.3} parent=1 // pred_region
      _
    $region17: #{lstm_classifier_forward.3} parent=1 // pred_fallthru
      _
    // Predicated region
    $region18: #{lstm_classifier_forward.3} parent=1 // pred_check
      _
    $region19: #{lstm_classifier_forward.3} parent=1 // pred_check_branch
      %25 = sbr.rel (0) target = $region21
    $region20: #{lstm_classifier_forward.3} parent=1 // pred_region
      _
    $region21: #{lstm_classifier_forward.3} parent=1 // pred_fallthru
      _
    // Predicated region
    $region22: #{lstm_classifier_forward.3} parent=1 // pred_check
      _
    $region23: #{lstm_classifier_forward.3} parent=1 // pred_check_branch
      %27 = sbr.rel (0) target = $region25
    $region24: #{lstm_classifier_forward.3} parent=1 // pred_region
      _
    $region25: #{lstm_classifier_forward.3} parent=1 // pred_fallthru
      _
    // Predicated region
    $region26: #{lstm_classifier_forward.3} parent=1 // pred_check
      _
    $region27: #{lstm_classifier_forward.3} parent=1 // pred_check_branch
      %29 = sbr.rel (0) target = $region29
    $region28: #{lstm_classifier_forward.3} parent=1 // pred_region
      _
    $region29: #{lstm_classifier_forward.3} parent=1 // pred_fallthru
      _
    // Predicated region
    $region30: #{lstm_classifier_forward.3} parent=1 // pred_check
      _
    $region31: #{lstm_classifier_forward.3} parent=1 // pred_check_branch
      %31 = sbr.rel (0) target = $region33
    $region32: #{lstm_classifier_forward.3} parent=1 // pred_region
      _
    $region33: #{lstm_classifier_forward.3} parent=1 // pred_fallthru
      _
    // Predicated region
    $region34: #{lstm_classifier_forward.3} parent=1 // pred_check
      _
    $region35: #{lstm_classifier_forward.3} parent=1 // pred_check_branch
      %33 = sbr.rel (0) target = $region37
    $region36: #{lstm_classifier_forward.3} parent=1 // pred_region
      _
    $region37: #{lstm_classifier_forward.3} parent=1 // pred_fallthru
      _
    // Predicated region
    $region38: #{lstm_classifier_forward.3} parent=1 // pred_check
      _
    $region39: #{lstm_classifier_forward.3} parent=1 // pred_check_branch
      %35 = sbr.rel (0) target = $region41
    $region40: #{lstm_classifier_forward.3} parent=1 // pred_region
      _
    $region41: #{lstm_classifier_forward.3} parent=1 // pred_fallthru
      _
    %v37 = vld [vmem:[%s0] sm:$0xf]
    %v38 = vld [vmem:[%s0 + $0x4] sm:$0xf]
    %v39 = vld [vmem:[%s2] sm:$0xf]
    %v40 = vld [vmem:[%s2 + $0x4] sm:$0xf]
    %v41 = vld [vmem:[%s2 + $0x8] sm:$0xf]
    %v42 = vld [vmem:[%s2 + $0xc] sm:$0xf]
    %v43 = vld [vmem:[%s2 + $0x10] sm:$0xf]
    %v44 = vld [vmem:[%s2 + $0x14] sm:$0xf]
    %v45 = vld [vmem:[%s2 + $0x18] sm:$0xf]
    %v46 = vld [vmem:[%s2 + $0x1c] sm:$0xf]
    %v47 = vld [vmem:[%s4] sm:$0x1]
    %v49 = vperm.slane %v47, 0
    %v53 = vunpack.c.l.b16 %v37
    %v54 = vunpack.c.l.b16 %v38
    %v55 = vpack.c.b16 %v54, %v53
    %v64 = vunpack.c.l.b16 %v39
    %v65 = vunpack.c.l.b16 %v40
    %v66 = vunpack.c.l.b16 %v41
    %v67 = vunpack.c.l.b16 %v42
    %v68 = vunpack.c.l.b16 %v43
    %v69 = vunpack.c.l.b16 %v44
    %v70 = vunpack.c.l.b16 %v45
    %v71 = vunpack.c.l.b16 %v46
    %v72 = vpack.c.b16 %v65, %v64
    %v73 = vpack.c.b16 %v67, %v66
    %v74 = vpack.c.b16 %v69, %v68
    %v75 = vpack.c.b16 %v71, %v70
    %vm80 = vcmask 523264
    %v82 = vsel %vm80, %v55, 0
    %84 = vmatpush.bf16.msra.mxu0 0
    %85 = vmatpush.bf16.msra.mxu0 0
    %86 = vmatpush.bf16.msra.mxu0 0
    %87 = vmatpush.bf16.msra.mxu0 0
    %88 = vmatpush.bf16.msra.mxu0 %v75
    %89 = vmatpush.bf16.msra.mxu0 %v74
    %90 = vmatpush.bf16.msra.mxu0 %v73
    %91 = vmatpush.bf16.msra.mxu0 %v72
    %92 = vmatmul.bf16.gmra.mxu0 %v82
    %v93 = vpop.f32.mrf.mxu0
    %v94 = vadd.f32 %v49, %v93
    %v95 = vpop.f32.mrf.mxu0
    %v96 = vadd.f32 %v49, %v95
    %97 = vdwg.mxu0
    %98 = vst [vmem:[#allocation2] sm:$0x3] %v94
    %s99 = scalar_lea.vmem [#allocation2], 2
    %100 = vst [vmem:[%s99 - $0x2] sm:$0xc] %v94
    %s101 = scalar_lea.vmem [#allocation2], 4
    %102 = vst [vmem:[%s101 - $0x4] sm:$0x30] %v94
    %s103 = scalar_lea.vmem [#allocation2], 6
    %104 = vst [vmem:[%s103 - $0x6] sm:$0xc0] %v94
    %s105 = scalar_lea.vmem [#allocation2], 8
    %106 = vst [vmem:[%s105] sm:$0x3] %v96
    %s107 = scalar_lea.vmem [#allocation2], 10
    %108 = vst [vmem:[%s107 - $0x2] sm:$0xc] %v96
    %s109 = scalar_lea.vmem [#allocation2], 12
    %110 = vst [vmem:[%s109 - $0x4] sm:$0x30] %v96
    %s111 = scalar_lea.vmem [#allocation2], 14
    %112 = vst [vmem:[%s111 - $0x6] sm:$0xc0] %v96
    %v113 = vld [vmem:[%s5] sm:$0xf]
    %v114 = vld [vmem:[%s5 + $0x4] sm:$0xf]
    %v115 = vld [vmem:[%s5 + $0x8] sm:$0xf]
    %v116 = vld [vmem:[%s5 + $0xc] sm:$0xf]
    %v117 = vld [vmem:[%s5 + $0x10] sm:$0xf]
    %v118 = vld [vmem:[%s5 + $0x14] sm:$0xf]
    %v119 = vld [vmem:[%s5 + $0x18] sm:$0xf]
    %v120 = vld [vmem:[%s5 + $0x1c] sm:$0xf]
    %v121 = vld [vmem:[%s7] sm:$0x1]
    %v123 = vperm.slane %v121, 0
    %v133 = vunpack.c.l.b16 %v113
    %v134 = vunpack.c.l.b16 %v114
    %v135 = vunpack.c.l.b16 %v115
    %v136 = vunpack.c.l.b16 %v116
    %v137 = vunpack.c.l.b16 %v117
    %v138 = vunpack.c.l.b16 %v118
    %v139 = vunpack.c.l.b16 %v119
    %v140 = vunpack.c.l.b16 %v120
    %v141 = vpack.c.b16 %v134, %v133
    %v142 = vpack.c.b16 %v136, %v135
    %v143 = vpack.c.b16 %v138, %v137
    %v144 = vpack.c.b16 %v140, %v139
    %149 = vmatpush.bf16.msra.mxu0 0
    %150 = vmatpush.bf16.msra.mxu0 0
    %151 = vmatpush.bf16.msra.mxu0 0
    %152 = vmatpush.bf16.msra.mxu0 0
    %153 = vmatpush.bf16.msra.mxu0 %v144
    %154 = vmatpush.bf16.msra.mxu0 %v143
    %155 = vmatpush.bf16.msra.mxu0 %v142
    %156 = vmatpush.bf16.msra.mxu0 %v141
    %157 = vmatmul.bf16.gmra.mxu0 %v82
    %v158 = vpop.f32.mrf.mxu0
    %v159 = vadd.f32 %v123, %v158
    %v160 = vpop.f32.mrf.mxu0
    %v161 = vadd.f32 %v123, %v160
    %162 = vdwg.mxu0
    %163 = vst [vmem:[#allocation3] sm:$0x3] %v159
    %s164 = scalar_lea.vmem [#allocation3], 2
    %165 = vst [vmem:[%s164 - $0x2] sm:$0xc] %v159
    %s166 = scalar_lea.vmem [#allocation3], 4
    %167 = vst [vmem:[%s166 - $0x4] sm:$0x30] %v159
    %s168 = scalar_lea.vmem [#allocation3], 6
    %169 = vst [vmem:[%s168 - $0x6] sm:$0xc0] %v159
    %s170 = scalar_lea.vmem [#allocation3], 8
    %171 = vst [vmem:[%s170] sm:$0x3] %v161
    %s172 = scalar_lea.vmem [#allocation3], 10
    %173 = vst [vmem:[%s172 - $0x2] sm:$0xc] %v161
    %s174 = scalar_lea.vmem [#allocation3], 12
    %175 = vst [vmem:[%s174 - $0x4] sm:$0x30] %v161
    %s176 = scalar_lea.vmem [#allocation3], 14
    %177 = vst [vmem:[%s176 - $0x6] sm:$0xc0] %v161
    %v178 = vld [vmem:[%s3] sm:$0xf]
    %v179 = vld [vmem:[%s3 + $0x4] sm:$0xf]
    %v180 = vld [vmem:[%s3 + $0x8] sm:$0xf]
    %v181 = vld [vmem:[%s3 + $0xc] sm:$0xf]
    %v182 = vld [vmem:[%s6] sm:$0xf]
    %v183 = vld [vmem:[%s6 + $0x4] sm:$0xf]
    %v184 = vld [vmem:[%s6 + $0x8] sm:$0xf]
    %v185 = vld [vmem:[%s6 + $0xc] sm:$0xf]
    %vm186 = vcmask 254976
    %187 = vst.msk [vmem:[#allocation4] sm:$0x3] %vm186, 0.0
    %188 = vst.msk [vmem:[#allocation5] sm:$0x3] %vm186, 0.0
    %189 = vst.msk [vmem:[#allocation6] sm:$0x3] %vm186, 0.0
    %190 = vst.msk [vmem:[#allocation7] sm:$0x3] %vm186, 0.0
    %v191 = vld [vmem:[#allocation2] sm:$0x3]
    %v192 = vld [vmem:[#allocation4] sm:$0x3]
    %v193 = vpack.c.bf16 %v192, %v192
    %v198 = vunpack.c.l.b16 %v178
    %v199 = vunpack.c.l.b16 %v179
    %v200 = vunpack.c.l.b16 %v180
    %v201 = vunpack.c.l.b16 %v181
    %v202 = vpack.c.b16 %v199, %v198
    %v203 = vpack.c.b16 %v201, %v200
    %vm206 = vcmask 261120
    %v208 = vsel %vm206, %v193, 0
    %210 = vmatpush.bf16.msra.mxu0 0
    %211 = vmatpush.bf16.msra.mxu0 0
    %212 = vmatpush.bf16.msra.mxu0 0
    %213 = vmatpush.bf16.msra.mxu0 0
    %214 = vmatpush.bf16.msra.mxu0 0
    %215 = vmatpush.bf16.msra.mxu0 0
    %216 = vmatpush.bf16.msra.mxu0 %v203
    %217 = vmatpush.bf16.msra.mxu0 %v202
    %218 = vmatmul.bf16.gmra.mxu0 %v208
    %v219 = vpop.f32.mrf.mxu0
    %v220 = vadd.f32 0.0, %v219
    %v221 = vpop.f32.mrf.mxu0
    %222 = vdwg.mxu0
    %v223 = vadd.f32 %v191, %v220
    %v224 = vld [vmem:[#allocation5] sm:$0x3]
    %v225 = vxor.u32 %v223, 2147483648
    %v226 = vmul.f32 %v225, 1.442695
    %v227 = vpow.pop %v226
    %v228 = vadd.f32 %v227, 1.0
    %v229 = vrcp.pop %v228
    %v230 = vmul.f32 %v228, %v229
    %v231 = vsub.f32 1.0, %v230
    %v232 = vmul.f32 %v229, %v231
    %v233 = vadd.f32 %v229, %v232
    %vm234 = vweird.f32 %v228
    %vm235 = vweird.f32 %v229
    %vm236 = vmor %vm234, %vm235
    %v237 = vsel %vm236, %v229, %v233
    %v238 = vand.u32 2147483647, %v228
    %vm239 = vcmp.eq.f32.partialorder %v238, 8.507059e+37
    %v240 = vand.u32 %v228, 2147483648
    %v241 = vor.u32 1.1754944e-38, %v240
    %v242 = vsel %vm239, %v241, %v237
    %v243 = vmul.f32 1.0, %v242
    %v244 = vtanh.pop %v223
    %246 = vrot.lane.b32.xlu0 %v224, 32
    %v247 = vpop.permute.xlu0 %246
    %v249 = vmul.f32 %v243, %v247
    %251 = vrot.lane.b32.xlu0 %v244, 64
    %v252 = vpop.permute.xlu0 %251
    %v254 = vmul.f32 %v243, %v252
    %256 = vrot.lane.b32.xlu0 %v254, 32
    %v257 = vpop.permute.xlu0 %256
    %v259 = vadd.f32 %v249, %v257
    %v260 = vtanh.pop %v259
    %262 = vrot.lane.b32.xlu0 %v260, 64
    %v263 = vpop.permute.xlu0 %262
    %v265 = vmul.f32 %v243, %v263
    %267 = vrot.lane.b32.xlu0 %v265, 32
    %v268 = vpop.permute.xlu0 %267
    %270 = vst.msk [vmem:[#allocation4] sm:$0x3] %vm186, %v268
    %272 = vrot.lane.b32.xlu0 %v259, 96
    %v273 = vpop.permute.xlu0 %272
    %275 = vst.msk [vmem:[#allocation5] sm:$0x3] %vm186, %v273
    %v276 = vld [vmem:[%s176] sm:$0x3]
    %v277 = vld [vmem:[#allocation6] sm:$0x3]
    %v278 = vpack.c.bf16 %v277, %v277
    %v283 = vunpack.c.l.b16 %v182
    %v284 = vunpack.c.l.b16 %v183
    %v285 = vunpack.c.l.b16 %v184
    %v286 = vunpack.c.l.b16 %v185
    %v287 = vpack.c.b16 %v284, %v283
    %v288 = vpack.c.b16 %v286, %v285
    %v292 = vsel %vm206, %v278, 0
    %294 = vmatpush.bf16.msra.mxu0 0
    %295 = vmatpush.bf16.msra.mxu0 0
    %296 = vmatpush.bf16.msra.mxu0 0
    %297 = vmatpush.bf16.msra.mxu0 0
    %298 = vmatpush.bf16.msra.mxu0 0
    %299 = vmatpush.bf16.msra.mxu0 0
    %300 = vmatpush.bf16.msra.mxu0 %v288
    %301 = vmatpush.bf16.msra.mxu0 %v287
    %302 = vmatmul.bf16.gmra.mxu0 %v292
    %v303 = vpop.f32.mrf.mxu0
    %v304 = vadd.f32 0.0, %v303
    %v305 = vpop.f32.mrf.mxu0
    %306 = vdwg.mxu0
    %v307 = vadd.f32 %v276, %v304
    %v308 = vld [vmem:[#allocation7] sm:$0x3]
    %v309 = vxor.u32 %v307, 2147483648
    %v310 = vmul.f32 %v309, 1.442695
    %v311 = vpow.pop %v310
    %v312 = vadd.f32 %v311, 1.0
    %v313 = vrcp.pop %v312
    %v314 = vmul.f32 %v312, %v313
    %v315 = vsub.f32 1.0, %v314
    %v316 = vmul.f32 %v313, %v315
    %v317 = vadd.f32 %v313, %v316
    %vm318 = vweird.f32 %v312
    %vm319 = vweird.f32 %v313
    %vm320 = vmor %vm318, %vm319
    %v321 = vsel %vm320, %v313, %v317
    %v322 = vand.u32 2147483647, %v312
    %vm323 = vcmp.eq.f32.partialorder %v322, 8.507059e+37
    %v324 = vand.u32 %v312, 2147483648
    %v325 = vor.u32 1.1754944e-38, %v324
    %v326 = vsel %vm323, %v325, %v321
    %v327 = vmul.f32 1.0, %v326
    %v328 = vtanh.pop %v307
    %330 = vrot.lane.b32.xlu0 %v308, 32
    %v331 = vpop.permute.xlu0 %330
    %v333 = vmul.f32 %v327, %v331
    %335 = vrot.lane.b32.xlu0 %v328, 64
    %v336 = vpop.permute.xlu0 %335
    %v338 = vmul.f32 %v327, %v336
    %340 = vrot.lane.b32.xlu0 %v338, 32
    %v341 = vpop.permute.xlu0 %340
    %v343 = vadd.f32 %v333, %v341
    %v344 = vtanh.pop %v343
    %346 = vrot.lane.b32.xlu0 %v344, 64
    %v347 = vpop.permute.xlu0 %346
    %v349 = vmul.f32 %v327, %v347
    %351 = vrot.lane.b32.xlu0 %v349, 32
    %v352 = vpop.permute.xlu0 %351
    %354 = vst.msk [vmem:[#allocation6] sm:$0x3] %vm186, %v352
    %356 = vrot.lane.b32.xlu0 %v343, 96
    %v357 = vpop.permute.xlu0 %356
    %359 = vst.msk [vmem:[#allocation7] sm:$0x3] %vm186, %v357
    %v360 = vld [vmem:[%s99] sm:$0x3]
    %v361 = vld [vmem:[#allocation4] sm:$0x3]
    %v362 = vpack.c.bf16 %v361, %v361
    %v364 = vsel %vm206, %v362, 0
    %366 = vmatpush.bf16.msra.mxu0 0
    %367 = vmatpush.bf16.msra.mxu0 0
    %368 = vmatpush.bf16.msra.mxu0 0
    %369 = vmatpush.bf16.msra.mxu0 0
    %370 = vmatpush.bf16.msra.mxu0 0
    %371 = vmatpush.bf16.msra.mxu0 0
    %372 = vmatpush.bf16.msra.mxu0 %v203
    %373 = vmatpush.bf16.msra.mxu0 %v202
    %374 = vmatmul.bf16.gmra.mxu0 %v364
    %v375 = vpop.f32.mrf.mxu0
    %v376 = vadd.f32 0.0, %v375
    %v377 = vpop.f32.mrf.mxu0
    %378 = vdwg.mxu0
    %v379 = vadd.f32 %v360, %v376
    %v380 = vld [vmem:[#allocation5] sm:$0x3]
    %v381 = vxor.u32 %v379, 2147483648
    %v382 = vmul.f32 %v381, 1.442695
    %v383 = vpow.pop %v382
    %v384 = vadd.f32 %v383, 1.0
    %v385 = vrcp.pop %v384
    %v386 = vmul.f32 %v384, %v385
    %v387 = vsub.f32 1.0, %v386
    %v388 = vmul.f32 %v385, %v387
    %v389 = vadd.f32 %v385, %v388
    %vm390 = vweird.f32 %v384
    %vm391 = vweird.f32 %v385
    %vm392 = vmor %vm390, %vm391
    %v393 = vsel %vm392, %v385, %v389
    %v394 = vand.u32 2147483647, %v384
    %vm395 = vcmp.eq.f32.partialorder %v394, 8.507059e+37
    %v396 = vand.u32 %v384, 2147483648
    %v397 = vor.u32 1.1754944e-38, %v396
    %v398 = vsel %vm395, %v397, %v393
    %v399 = vmul.f32 1.0, %v398
    %v400 = vtanh.pop %v379
    %402 = vrot.lane.b32.xlu0 %v380, 32
    %v403 = vpop.permute.xlu0 %402
    %v405 = vmul.f32 %v399, %v403
    %407 = vrot.lane.b32.xlu0 %v400, 64
    %v408 = vpop.permute.xlu0 %407
    %v410 = vmul.f32 %v399, %v408
    %412 = vrot.lane.b32.xlu0 %v410, 32
    %v413 = vpop.permute.xlu0 %412
    %v415 = vadd.f32 %v405, %v413
    %v416 = vtanh.pop %v415
    %418 = vrot.lane.b32.xlu0 %v416, 64
    %v419 = vpop.permute.xlu0 %418
    %v421 = vmul.f32 %v399, %v419
    %423 = vrot.lane.b32.xlu0 %v421, 32
    %v424 = vpop.permute.xlu0 %423
    %426 = vst.msk [vmem:[#allocation4] sm:$0x3] %vm186, %v424
    %428 = vrot.lane.b32.xlu0 %v415, 96
    %v429 = vpop.permute.xlu0 %428
    %431 = vst.msk [vmem:[#allocation5] sm:$0x3] %vm186, %v429
    %v432 = vld [vmem:[%s174] sm:$0x3]
    %v433 = vld [vmem:[#allocation6] sm:$0x3]
    %v434 = vpack.c.bf16 %v433, %v433
    %v436 = vsel %vm206, %v434, 0
    %438 = vmatpush.bf16.msra.mxu0 0
    %439 = vmatpush.bf16.msra.mxu0 0
    %440 = vmatpush.bf16.msra.mxu0 0
    %441 = vmatpush.bf16.msra.mxu0 0
    %442 = vmatpush.bf16.msra.mxu0 0
    %443 = vmatpush.bf16.msra.mxu0 0
    %444 = vmatpush.bf16.msra.mxu0 %v288
    %445 = vmatpush.bf16.msra.mxu0 %v287
    %446 = vmatmul.bf16.gmra.mxu0 %v436
    %v447 = vpop.f32.mrf.mxu0
    %v448 = vadd.f32 0.0, %v447
    %v449 = vpop.f32.mrf.mxu0
    %450 = vdwg.mxu0
    %v451 = vadd.f32 %v432, %v448
    %v452 = vld [vmem:[#allocation7] sm:$0x3]
    %v453 = vxor.u32 %v451, 2147483648
    %v454 = vmul.f32 %v453, 1.442695
    %v455 = vpow.pop %v454
    %v456 = vadd.f32 %v455, 1.0
    %v457 = vrcp.pop %v456
    %v458 = vmul.f32 %v456, %v457
    %v459 = vsub.f32 1.0, %v458
    %v460 = vmul.f32 %v457, %v459
    %v461 = vadd.f32 %v457, %v460
    %vm462 = vweird.f32 %v456
    %vm463 = vweird.f32 %v457
    %vm464 = vmor %vm462, %vm463
    %v465 = vsel %vm464, %v457, %v461
    %v466 = vand.u32 2147483647, %v456
    %vm467 = vcmp.eq.f32.partialorder %v466, 8.507059e+37
    %v468 = vand.u32 %v456, 2147483648
    %v469 = vor.u32 1.1754944e-38, %v468
    %v470 = vsel %vm467, %v469, %v465
    %v471 = vmul.f32 1.0, %v470
    %v472 = vtanh.pop %v451
    %474 = vrot.lane.b32.xlu0 %v452, 32
    %v475 = vpop.permute.xlu0 %474
    %v477 = vmul.f32 %v471, %v475
    %479 = vrot.lane.b32.xlu0 %v472, 64
    %v480 = vpop.permute.xlu0 %479
    %v482 = vmul.f32 %v471, %v480
    %484 = vrot.lane.b32.xlu0 %v482, 32
    %v485 = vpop.permute.xlu0 %484
    %v487 = vadd.f32 %v477, %v485
    %v488 = vtanh.pop %v487
    %490 = vrot.lane.b32.xlu0 %v488, 64
    %v491 = vpop.permute.xlu0 %490
    %v493 = vmul.f32 %v471, %v491
    %495 = vrot.lane.b32.xlu0 %v493, 32
    %v496 = vpop.permute.xlu0 %495
    %498 = vst.msk [vmem:[#allocation6] sm:$0x3] %vm186, %v496
    %500 = vrot.lane.b32.xlu0 %v487, 96
    %v501 = vpop.permute.xlu0 %500
    %503 = vst.msk [vmem:[#allocation7] sm:$0x3] %vm186, %v501
    %v504 = vld [vmem:[%s101] sm:$0x3]
    %v505 = vld [vmem:[#allocation4] sm:$0x3]
    %v506 = vpack.c.bf16 %v505, %v505
    %v508 = vsel %vm206, %v506, 0
    %510 = vmatpush.bf16.msra.mxu0 0
    %511 = vmatpush.bf16.msra.mxu0 0
    %512 = vmatpush.bf16.msra.mxu0 0
    %513 = vmatpush.bf16.msra.mxu0 0
    %514 = vmatpush.bf16.msra.mxu0 0
    %515 = vmatpush.bf16.msra.mxu0 0
    %516 = vmatpush.bf16.msra.mxu0 %v203
    %517 = vmatpush.bf16.msra.mxu0 %v202
    %518 = vmatmul.bf16.gmra.mxu0 %v508
    %v519 = vpop.f32.mrf.mxu0
    %v520 = vadd.f32 0.0, %v519
    %v521 = vpop.f32.mrf.mxu0
    %522 = vdwg.mxu0
    %v523 = vadd.f32 %v504, %v520
    %v524 = vld [vmem:[#allocation5] sm:$0x3]
    %v525 = vxor.u32 %v523, 2147483648
    %v526 = vmul.f32 %v525, 1.442695
    %v527 = vpow.pop %v526
    %v528 = vadd.f32 %v527, 1.0
    %v529 = vrcp.pop %v528
    %v530 = vmul.f32 %v528, %v529
    %v531 = vsub.f32 1.0, %v530
    %v532 = vmul.f32 %v529, %v531
    %v533 = vadd.f32 %v529, %v532
    %vm534 = vweird.f32 %v528
    %vm535 = vweird.f32 %v529
    %vm536 = vmor %vm534, %vm535
    %v537 = vsel %vm536, %v529, %v533
    %v538 = vand.u32 2147483647, %v528
    %vm539 = vcmp.eq.f32.partialorder %v538, 8.507059e+37
    %v540 = vand.u32 %v528, 2147483648
    %v541 = vor.u32 1.1754944e-38, %v540
    %v542 = vsel %vm539, %v541, %v537
    %v543 = vmul.f32 1.0, %v542
    %v544 = vtanh.pop %v523
    %546 = vrot.lane.b32.xlu0 %v524, 32
    %v547 = vpop.permute.xlu0 %546
    %v549 = vmul.f32 %v543, %v547
    %551 = vrot.lane.b32.xlu0 %v544, 64
    %v552 = vpop.permute.xlu0 %551
    %v554 = vmul.f32 %v543, %v552
    %556 = vrot.lane.b32.xlu0 %v554, 32
    %v557 = vpop.permute.xlu0 %556
    %v559 = vadd.f32 %v549, %v557
    %v560 = vtanh.pop %v559
    %562 = vrot.lane.b32.xlu0 %v560, 64
    %v563 = vpop.permute.xlu0 %562
    %v565 = vmul.f32 %v543, %v563
    %567 = vrot.lane.b32.xlu0 %v565, 32
    %v568 = vpop.permute.xlu0 %567
    %570 = vst.msk [vmem:[#allocation4] sm:$0x3] %vm186, %v568
    %572 = vrot.lane.b32.xlu0 %v559, 96
    %v573 = vpop.permute.xlu0 %572
    %575 = vst.msk [vmem:[#allocation5] sm:$0x3] %vm186, %v573
    %v576 = vld [vmem:[%s172] sm:$0x3]
    %v577 = vld [vmem:[#allocation6] sm:$0x3]
    %v578 = vpack.c.bf16 %v577, %v577
    %v580 = vsel %vm206, %v578, 0
    %582 = vmatpush.bf16.msra.mxu0 0
    %583 = vmatpush.bf16.msra.mxu0 0
    %584 = vmatpush.bf16.msra.mxu0 0
    %585 = vmatpush.bf16.msra.mxu0 0
    %586 = vmatpush.bf16.msra.mxu0 0
    %587 = vmatpush.bf16.msra.mxu0 0
    %588 = vmatpush.bf16.msra.mxu0 %v288
    %589 = vmatpush.bf16.msra.mxu0 %v287
    %590 = vmatmul.bf16.gmra.mxu0 %v580
    %v591 = vpop.f32.mrf.mxu0
    %v592 = vadd.f32 0.0, %v591
    %v593 = vpop.f32.mrf.mxu0
    %594 = vdwg.mxu0
    %v595 = vadd.f32 %v576, %v592
    %v596 = vld [vmem:[#allocation7] sm:$0x3]
    %v597 = vxor.u32 %v595, 2147483648
    %v598 = vmul.f32 %v597, 1.442695
    %v599 = vpow.pop %v598
    %v600 = vadd.f32 %v599, 1.0
    %v601 = vrcp.pop %v600
    %v602 = vmul.f32 %v600, %v601
    %v603 = vsub.f32 1.0, %v602
    %v604 = vmul.f32 %v601, %v603
    %v605 = vadd.f32 %v601, %v604
    %vm606 = vweird.f32 %v600
    %vm607 = vweird.f32 %v601
    %vm608 = vmor %vm606, %vm607
    %v609 = vsel %vm608, %v601, %v605
    %v610 = vand.u32 2147483647, %v600
    %vm611 = vcmp.eq.f32.partialorder %v610, 8.507059e+37
    %v612 = vand.u32 %v600, 2147483648
    %v613 = vor.u32 1.1754944e-38, %v612
    %v614 = vsel %vm611, %v613, %v609
    %v615 = vmul.f32 1.0, %v614
    %v616 = vtanh.pop %v595
    %618 = vrot.lane.b32.xlu0 %v596, 32
    %v619 = vpop.permute.xlu0 %618
    %v621 = vmul.f32 %v615, %v619
    %623 = vrot.lane.b32.xlu0 %v616, 64
    %v624 = vpop.permute.xlu0 %623
    %v626 = vmul.f32 %v615, %v624
    %628 = vrot.lane.b32.xlu0 %v626, 32
    %v629 = vpop.permute.xlu0 %628
    %v631 = vadd.f32 %v621, %v629
    %v632 = vtanh.pop %v631
    %634 = vrot.lane.b32.xlu0 %v632, 64
    %v635 = vpop.permute.xlu0 %634
    %v637 = vmul.f32 %v615, %v635
    %639 = vrot.lane.b32.xlu0 %v637, 32
    %v640 = vpop.permute.xlu0 %639
    %642 = vst.msk [vmem:[#allocation6] sm:$0x3] %vm186, %v640
    %644 = vrot.lane.b32.xlu0 %v631, 96
    %v645 = vpop.permute.xlu0 %644
    %647 = vst.msk [vmem:[#allocation7] sm:$0x3] %vm186, %v645
    %v648 = vld [vmem:[%s103] sm:$0x3]
    %v649 = vld [vmem:[#allocation4] sm:$0x3]
    %v650 = vpack.c.bf16 %v649, %v649
    %v652 = vsel %vm206, %v650, 0
    %654 = vmatpush.bf16.msra.mxu0 0
    %655 = vmatpush.bf16.msra.mxu0 0
    %656 = vmatpush.bf16.msra.mxu0 0
    %657 = vmatpush.bf16.msra.mxu0 0
    %658 = vmatpush.bf16.msra.mxu0 0
    %659 = vmatpush.bf16.msra.mxu0 0
    %660 = vmatpush.bf16.msra.mxu0 %v203
    %661 = vmatpush.bf16.msra.mxu0 %v202
    %662 = vmatmul.bf16.gmra.mxu0 %v652
    %v663 = vpop.f32.mrf.mxu0
    %v664 = vadd.f32 0.0, %v663
    %v665 = vpop.f32.mrf.mxu0
    %666 = vdwg.mxu0
    %v667 = vadd.f32 %v648, %v664
    %v668 = vld [vmem:[#allocation5] sm:$0x3]
    %v669 = vxor.u32 %v667, 2147483648
    %v670 = vmul.f32 %v669, 1.442695
    %v671 = vpow.pop %v670
    %v672 = vadd.f32 %v671, 1.0
    %v673 = vrcp.pop %v672
    %v674 = vmul.f32 %v672, %v673
    %v675 = vsub.f32 1.0, %v674
    %v676 = vmul.f32 %v673, %v675
    %v677 = vadd.f32 %v673, %v676
    %vm678 = vweird.f32 %v672
    %vm679 = vweird.f32 %v673
    %vm680 = vmor %vm678, %vm679
    %v681 = vsel %vm680, %v673, %v677
    %v682 = vand.u32 2147483647, %v672
    %vm683 = vcmp.eq.f32.partialorder %v682, 8.507059e+37
    %v684 = vand.u32 %v672, 2147483648
    %v685 = vor.u32 1.1754944e-38, %v684
    %v686 = vsel %vm683, %v685, %v681
    %v687 = vmul.f32 1.0, %v686
    %v688 = vtanh.pop %v667
    %690 = vrot.lane.b32.xlu0 %v668, 32
    %v691 = vpop.permute.xlu0 %690
    %v693 = vmul.f32 %v687, %v691
    %695 = vrot.lane.b32.xlu0 %v688, 64
    %v696 = vpop.permute.xlu0 %695
    %v698 = vmul.f32 %v687, %v696
    %700 = vrot.lane.b32.xlu0 %v698, 32
    %v701 = vpop.permute.xlu0 %700
    %v703 = vadd.f32 %v693, %v701
    %v704 = vtanh.pop %v703
    %706 = vrot.lane.b32.xlu0 %v704, 64
    %v707 = vpop.permute.xlu0 %706
    %v709 = vmul.f32 %v687, %v707
    %711 = vrot.lane.b32.xlu0 %v709, 32
    %v712 = vpop.permute.xlu0 %711
    %714 = vst.msk [vmem:[#allocation4] sm:$0x3] %vm186, %v712
    %716 = vrot.lane.b32.xlu0 %v703, 96
    %v717 = vpop.permute.xlu0 %716
    %719 = vst.msk [vmem:[#allocation5] sm:$0x3] %vm186, %v717
    %v720 = vld [vmem:[%s170] sm:$0x3]
    %v721 = vld [vmem:[#allocation6] sm:$0x3]
    %v722 = vpack.c.bf16 %v721, %v721
    %v724 = vsel %vm206, %v722, 0
    %726 = vmatpush.bf16.msra.mxu0 0
    %727 = vmatpush.bf16.msra.mxu0 0
    %728 = vmatpush.bf16.msra.mxu0 0
    %729 = vmatpush.bf16.msra.mxu0 0
    %730 = vmatpush.bf16.msra.mxu0 0
    %731 = vmatpush.bf16.msra.mxu0 0
    %732 = vmatpush.bf16.msra.mxu0 %v288
    %733 = vmatpush.bf16.msra.mxu0 %v287
    %734 = vmatmul.bf16.gmra.mxu0 %v724
    %v735 = vpop.f32.mrf.mxu0
    %v736 = vadd.f32 0.0, %v735
    %v737 = vpop.f32.mrf.mxu0
    %738 = vdwg.mxu0
    %v739 = vadd.f32 %v720, %v736
    %v740 = vld [vmem:[#allocation7] sm:$0x3]
    %v741 = vxor.u32 %v739, 2147483648
    %v742 = vmul.f32 %v741, 1.442695
    %v743 = vpow.pop %v742
    %v744 = vadd.f32 %v743, 1.0
    %v745 = vrcp.pop %v744
    %v746 = vmul.f32 %v744, %v745
    %v747 = vsub.f32 1.0, %v746
    %v748 = vmul.f32 %v745, %v747
    %v749 = vadd.f32 %v745, %v748
    %vm750 = vweird.f32 %v744
    %vm751 = vweird.f32 %v745
    %vm752 = vmor %vm750, %vm751
    %v753 = vsel %vm752, %v745, %v749
    %v754 = vand.u32 2147483647, %v744
    %vm755 = vcmp.eq.f32.partialorder %v754, 8.507059e+37
    %v756 = vand.u32 %v744, 2147483648
    %v757 = vor.u32 1.1754944e-38, %v756
    %v758 = vsel %vm755, %v757, %v753
    %v759 = vmul.f32 1.0, %v758
    %v760 = vtanh.pop %v739
    %762 = vrot.lane.b32.xlu0 %v740, 32
    %v763 = vpop.permute.xlu0 %762
    %v765 = vmul.f32 %v759, %v763
    %767 = vrot.lane.b32.xlu0 %v760, 64
    %v768 = vpop.permute.xlu0 %767
    %v770 = vmul.f32 %v759, %v768
    %772 = vrot.lane.b32.xlu0 %v770, 32
    %v773 = vpop.permute.xlu0 %772
    %v775 = vadd.f32 %v765, %v773
    %v776 = vtanh.pop %v775
    %778 = vrot.lane.b32.xlu0 %v776, 64
    %v779 = vpop.permute.xlu0 %778
    %v781 = vmul.f32 %v759, %v779
    %783 = vrot.lane.b32.xlu0 %v781, 32
    %v784 = vpop.permute.xlu0 %783
    %786 = vst.msk [vmem:[#allocation6] sm:$0x3] %vm186, %v784
    %788 = vrot.lane.b32.xlu0 %v775, 96
    %v789 = vpop.permute.xlu0 %788
    %791 = vst.msk [vmem:[#allocation7] sm:$0x3] %vm186, %v789
    %v792 = vld [vmem:[%s105] sm:$0x3]
    %v793 = vld [vmem:[#allocation4] sm:$0x3]
    %v794 = vpack.c.bf16 %v793, %v793
    %v796 = vsel %vm206, %v794, 0
    %798 = vmatpush.bf16.msra.mxu0 0
    %799 = vmatpush.bf16.msra.mxu0 0
    %800 = vmatpush.bf16.msra.mxu0 0
    %801 = vmatpush.bf16.msra.mxu0 0
    %802 = vmatpush.bf16.msra.mxu0 0
    %803 = vmatpush.bf16.msra.mxu0 0
    %804 = vmatpush.bf16.msra.mxu0 %v203
    %805 = vmatpush.bf16.msra.mxu0 %v202
    %806 = vmatmul.bf16.gmra.mxu0 %v796
    %v807 = vpop.f32.mrf.mxu0
    %v808 = vadd.f32 0.0, %v807
    %v809 = vpop.f32.mrf.mxu0
    %810 = vdwg.mxu0
    %v811 = vadd.f32 %v792, %v808
    %v812 = vld [vmem:[#allocation5] sm:$0x3]
    %v813 = vxor.u32 %v811, 2147483648
    %v814 = vmul.f32 %v813, 1.442695
    %v815 = vpow.pop %v814
    %v816 = vadd.f32 %v815, 1.0
    %v817 = vrcp.pop %v816
    %v818 = vmul.f32 %v816, %v817
    %v819 = vsub.f32 1.0, %v818
    %v820 = vmul.f32 %v817, %v819
    %v821 = vadd.f32 %v817, %v820
    %vm822 = vweird.f32 %v816
    %vm823 = vweird.f32 %v817
    %vm824 = vmor %vm822, %vm823
    %v825 = vsel %vm824, %v817, %v821
    %v826 = vand.u32 2147483647, %v816
    %vm827 = vcmp.eq.f32.partialorder %v826, 8.507059e+37
    %v828 = vand.u32 %v816, 2147483648
    %v829 = vor.u32 1.1754944e-38, %v828
    %v830 = vsel %vm827, %v829, %v825
    %v831 = vmul.f32 1.0, %v830
    %v832 = vtanh.pop %v811
    %834 = vrot.lane.b32.xlu0 %v812, 32
    %v835 = vpop.permute.xlu0 %834
    %v837 = vmul.f32 %v831, %v835
    %839 = vrot.lane.b32.xlu0 %v832, 64
    %v840 = vpop.permute.xlu0 %839
    %v842 = vmul.f32 %v831, %v840
    %844 = vrot.lane.b32.xlu0 %v842, 32
    %v845 = vpop.permute.xlu0 %844
    %v847 = vadd.f32 %v837, %v845
    %v848 = vtanh.pop %v847
    %850 = vrot.lane.b32.xlu0 %v848, 64
    %v851 = vpop.permute.xlu0 %850
    %v853 = vmul.f32 %v831, %v851
    %855 = vrot.lane.b32.xlu0 %v853, 32
    %v856 = vpop.permute.xlu0 %855
    %858 = vst.msk [vmem:[#allocation4] sm:$0x3] %vm186, %v856
    %860 = vrot.lane.b32.xlu0 %v847, 96
    %v861 = vpop.permute.xlu0 %860
    %863 = vst.msk [vmem:[#allocation5] sm:$0x3] %vm186, %v861
    %v864 = vld [vmem:[%s168] sm:$0x3]
    %v865 = vld [vmem:[#allocation6] sm:$0x3]
    %v866 = vpack.c.bf16 %v865, %v865
    %v868 = vsel %vm206, %v866, 0
    %870 = vmatpush.bf16.msra.mxu0 0
    %871 = vmatpush.bf16.msra.mxu0 0
    %872 = vmatpush.bf16.msra.mxu0 0
    %873 = vmatpush.bf16.msra.mxu0 0
    %874 = vmatpush.bf16.msra.mxu0 0
    %875 = vmatpush.bf16.msra.mxu0 0
    %876 = vmatpush.bf16.msra.mxu0 %v288
    %877 = vmatpush.bf16.msra.mxu0 %v287
    %878 = vmatmul.bf16.gmra.mxu0 %v868
    %v879 = vpop.f32.mrf.mxu0
    %v880 = vadd.f32 0.0, %v879
    %v881 = vpop.f32.mrf.mxu0
    %882 = vdwg.mxu0
    %v883 = vadd.f32 %v864, %v880
    %v884 = vld [vmem:[#allocation7] sm:$0x3]
    %v885 = vxor.u32 %v883, 2147483648
    %v886 = vmul.f32 %v885, 1.442695
    %v887 = vpow.pop %v886
    %v888 = vadd.f32 %v887, 1.0
    %v889 = vrcp.pop %v888
    %v890 = vmul.f32 %v888, %v889
    %v891 = vsub.f32 1.0, %v890
    %v892 = vmul.f32 %v889, %v891
    %v893 = vadd.f32 %v889, %v892
    %vm894 = vweird.f32 %v888
    %vm895 = vweird.f32 %v889
    %vm896 = vmor %vm894, %vm895
    %v897 = vsel %vm896, %v889, %v893
    %v898 = vand.u32 2147483647, %v888
    %vm899 = vcmp.eq.f32.partialorder %v898, 8.507059e+37
    %v900 = vand.u32 %v888, 2147483648
    %v901 = vor.u32 1.1754944e-38, %v900
    %v902 = vsel %vm899, %v901, %v897
    %v903 = vmul.f32 1.0, %v902
    %v904 = vtanh.pop %v883
    %906 = vrot.lane.b32.xlu0 %v884, 32
    %v907 = vpop.permute.xlu0 %906
    %v909 = vmul.f32 %v903, %v907
    %911 = vrot.lane.b32.xlu0 %v904, 64
    %v912 = vpop.permute.xlu0 %911
    %v914 = vmul.f32 %v903, %v912
    %916 = vrot.lane.b32.xlu0 %v914, 32
    %v917 = vpop.permute.xlu0 %916
    %v919 = vadd.f32 %v909, %v917
    %v920 = vtanh.pop %v919
    %922 = vrot.lane.b32.xlu0 %v920, 64
    %v923 = vpop.permute.xlu0 %922
    %v925 = vmul.f32 %v903, %v923
    %927 = vrot.lane.b32.xlu0 %v925, 32
    %v928 = vpop.permute.xlu0 %927
    %930 = vst.msk [vmem:[#allocation6] sm:$0x3] %vm186, %v928
    %932 = vrot.lane.b32.xlu0 %v919, 96
    %v933 = vpop.permute.xlu0 %932
    %935 = vst.msk [vmem:[#allocation7] sm:$0x3] %vm186, %v933
    %v936 = vld [vmem:[%s107] sm:$0x3]
    %v937 = vld [vmem:[#allocation4] sm:$0x3]
    %v938 = vpack.c.bf16 %v937, %v937
    %v940 = vsel %vm206, %v938, 0
    %942 = vmatpush.bf16.msra.mxu0 0
    %943 = vmatpush.bf16.msra.mxu0 0
    %944 = vmatpush.bf16.msra.mxu0 0
    %945 = vmatpush.bf16.msra.mxu0 0
    %946 = vmatpush.bf16.msra.mxu0 0
    %947 = vmatpush.bf16.msra.mxu0 0
    %948 = vmatpush.bf16.msra.mxu0 %v203
    %949 = vmatpush.bf16.msra.mxu0 %v202
    %950 = vmatmul.bf16.gmra.mxu0 %v940
    %v951 = vpop.f32.mrf.mxu0
    %v952 = vadd.f32 0.0, %v951
    %v953 = vpop.f32.mrf.mxu0
    %954 = vdwg.mxu0
    %v955 = vadd.f32 %v936, %v952
    %v956 = vld [vmem:[#allocation5] sm:$0x3]
    %v957 = vxor.u32 %v955, 2147483648
    %v958 = vmul.f32 %v957, 1.442695
    %v959 = vpow.pop %v958
    %v960 = vadd.f32 %v959, 1.0
    %v961 = vrcp.pop %v960
    %v962 = vmul.f32 %v960, %v961
    %v963 = vsub.f32 1.0, %v962
    %v964 = vmul.f32 %v961, %v963
    %v965 = vadd.f32 %v961, %v964
    %vm966 = vweird.f32 %v960
    %vm967 = vweird.f32 %v961
    %vm968 = vmor %vm966, %vm967
    %v969 = vsel %vm968, %v961, %v965
    %v970 = vand.u32 2147483647, %v960
    %vm971 = vcmp.eq.f32.partialorder %v970, 8.507059e+37
    %v972 = vand.u32 %v960, 2147483648
    %v973 = vor.u32 1.1754944e-38, %v972
    %v974 = vsel %vm971, %v973, %v969
    %v975 = vmul.f32 1.0, %v974
    %v976 = vtanh.pop %v955
    %978 = vrot.lane.b32.xlu0 %v956, 32
    %v979 = vpop.permute.xlu0 %978
    %v981 = vmul.f32 %v975, %v979
    %983 = vrot.lane.b32.xlu0 %v976, 64
    %v984 = vpop.permute.xlu0 %983
    %v986 = vmul.f32 %v975, %v984
    %988 = vrot.lane.b32.xlu0 %v986, 32
    %v989 = vpop.permute.xlu0 %988
    %v991 = vadd.f32 %v981, %v989
    %v992 = vtanh.pop %v991
    %994 = vrot.lane.b32.xlu0 %v992, 64
    %v995 = vpop.permute.xlu0 %994
    %v997 = vmul.f32 %v975, %v995
    %999 = vrot.lane.b32.xlu0 %v997, 32
    %v1000 = vpop.permute.xlu0 %999
    %1002 = vst.msk [vmem:[#allocation4] sm:$0x3] %vm186, %v1000
    %1004 = vrot.lane.b32.xlu0 %v991, 96
    %v1005 = vpop.permute.xlu0 %1004
    %1007 = vst.msk [vmem:[#allocation5] sm:$0x3] %vm186, %v1005
    %v1008 = vld [vmem:[%s166] sm:$0x3]
    %v1009 = vld [vmem:[#allocation6] sm:$0x3]
    %v1010 = vpack.c.bf16 %v1009, %v1009
    %v1012 = vsel %vm206, %v1010, 0
    %1014 = vmatpush.bf16.msra.mxu0 0
    %1015 = vmatpush.bf16.msra.mxu0 0
    %1016 = vmatpush.bf16.msra.mxu0 0
    %1017 = vmatpush.bf16.msra.mxu0 0
    %1018 = vmatpush.bf16.msra.mxu0 0
    %1019 = vmatpush.bf16.msra.mxu0 0
    %1020 = vmatpush.bf16.msra.mxu0 %v288
    %1021 = vmatpush.bf16.msra.mxu0 %v287
    %1022 = vmatmul.bf16.gmra.mxu0 %v1012
    %v1023 = vpop.f32.mrf.mxu0
    %v1024 = vadd.f32 0.0, %v1023
    %v1025 = vpop.f32.mrf.mxu0
    %1026 = vdwg.mxu0
    %v1027 = vadd.f32 %v1008, %v1024
    %v1028 = vld [vmem:[#allocation7] sm:$0x3]
    %v1029 = vxor.u32 %v1027, 2147483648
    %v1030 = vmul.f32 %v1029, 1.442695
    %v1031 = vpow.pop %v1030
    %v1032 = vadd.f32 %v1031, 1.0
    %v1033 = vrcp.pop %v1032
    %v1034 = vmul.f32 %v1032, %v1033
    %v1035 = vsub.f32 1.0, %v1034
    %v1036 = vmul.f32 %v1033, %v1035
    %v1037 = vadd.f32 %v1033, %v1036
    %vm1038 = vweird.f32 %v1032
    %vm1039 = vweird.f32 %v1033
    %vm1040 = vmor %vm1038, %vm1039
    %v1041 = vsel %vm1040, %v1033, %v1037
    %v1042 = vand.u32 2147483647, %v1032
    %vm1043 = vcmp.eq.f32.partialorder %v1042, 8.507059e+37
    %v1044 = vand.u32 %v1032, 2147483648
    %v1045 = vor.u32 1.1754944e-38, %v1044
    %v1046 = vsel %vm1043, %v1045, %v1041
    %v1047 = vmul.f32 1.0, %v1046
    %v1048 = vtanh.pop %v1027
    %1050 = vrot.lane.b32.xlu0 %v1028, 32
    %v1051 = vpop.permute.xlu0 %1050
    %v1053 = vmul.f32 %v1047, %v1051
    %1055 = vrot.lane.b32.xlu0 %v1048, 64
    %v1056 = vpop.permute.xlu0 %1055
    %v1058 = vmul.f32 %v1047, %v1056
    %1060 = vrot.lane.b32.xlu0 %v1058, 32
    %v1061 = vpop.permute.xlu0 %1060
    %v1063 = vadd.f32 %v1053, %v1061
    %v1064 = vtanh.pop %v1063
    %1066 = vrot.lane.b32.xlu0 %v1064, 64
    %v1067 = vpop.permute.xlu0 %1066
    %v1069 = vmul.f32 %v1047, %v1067
    %1071 = vrot.lane.b32.xlu0 %v1069, 32
    %v1072 = vpop.permute.xlu0 %1071
    %1074 = vst.msk [vmem:[#allocation6] sm:$0x3] %vm186, %v1072
    %1076 = vrot.lane.b32.xlu0 %v1063, 96
    %v1077 = vpop.permute.xlu0 %1076
    %1079 = vst.msk [vmem:[#allocation7] sm:$0x3] %vm186, %v1077
    %v1080 = vld [vmem:[%s109] sm:$0x3]
    %v1081 = vld [vmem:[#allocation4] sm:$0x3]
    %v1082 = vpack.c.bf16 %v1081, %v1081
    %v1084 = vsel %vm206, %v1082, 0
    %1086 = vmatpush.bf16.msra.mxu0 0
    %1087 = vmatpush.bf16.msra.mxu0 0
    %1088 = vmatpush.bf16.msra.mxu0 0
    %1089 = vmatpush.bf16.msra.mxu0 0
    %1090 = vmatpush.bf16.msra.mxu0 0
    %1091 = vmatpush.bf16.msra.mxu0 0
    %1092 = vmatpush.bf16.msra.mxu0 %v203
    %1093 = vmatpush.bf16.msra.mxu0 %v202
    %1094 = vmatmul.bf16.gmra.mxu0 %v1084
    %v1095 = vpop.f32.mrf.mxu0
    %v1096 = vadd.f32 0.0, %v1095
    %v1097 = vpop.f32.mrf.mxu0
    %1098 = vdwg.mxu0
    %v1099 = vadd.f32 %v1080, %v1096
    %v1100 = vld [vmem:[#allocation5] sm:$0x3]
    %v1101 = vxor.u32 %v1099, 2147483648
    %v1102 = vmul.f32 %v1101, 1.442695
    %v1103 = vpow.pop %v1102
    %v1104 = vadd.f32 %v1103, 1.0
    %v1105 = vrcp.pop %v1104
    %v1106 = vmul.f32 %v1104, %v1105
    %v1107 = vsub.f32 1.0, %v1106
    %v1108 = vmul.f32 %v1105, %v1107
    %v1109 = vadd.f32 %v1105, %v1108
    %vm1110 = vweird.f32 %v1104
    %vm1111 = vweird.f32 %v1105
    %vm1112 = vmor %vm1110, %vm1111
    %v1113 = vsel %vm1112, %v1105, %v1109
    %v1114 = vand.u32 2147483647, %v1104
    %vm1115 = vcmp.eq.f32.partialorder %v1114, 8.507059e+37
    %v1116 = vand.u32 %v1104, 2147483648
    %v1117 = vor.u32 1.1754944e-38, %v1116
    %v1118 = vsel %vm1115, %v1117, %v1113
    %v1119 = vmul.f32 1.0, %v1118
    %v1120 = vtanh.pop %v1099
    %1122 = vrot.lane.b32.xlu0 %v1100, 32
    %v1123 = vpop.permute.xlu0 %1122
    %v1125 = vmul.f32 %v1119, %v1123
    %1127 = vrot.lane.b32.xlu0 %v1120, 64
    %v1128 = vpop.permute.xlu0 %1127
    %v1130 = vmul.f32 %v1119, %v1128
    %1132 = vrot.lane.b32.xlu0 %v1130, 32
    %v1133 = vpop.permute.xlu0 %1132
    %v1135 = vadd.f32 %v1125, %v1133
    %v1136 = vtanh.pop %v1135
    %1138 = vrot.lane.b32.xlu0 %v1136, 64
    %v1139 = vpop.permute.xlu0 %1138
    %v1141 = vmul.f32 %v1119, %v1139
    %1143 = vrot.lane.b32.xlu0 %v1141, 32
    %v1144 = vpop.permute.xlu0 %1143
    %1146 = vst.msk [vmem:[#allocation4] sm:$0x3] %vm186, %v1144
    %1148 = vrot.lane.b32.xlu0 %v1135, 96
    %v1149 = vpop.permute.xlu0 %1148
    %1151 = vst.msk [vmem:[#allocation5] sm:$0x3] %vm186, %v1149
    %v1152 = vld [vmem:[%s164] sm:$0x3]
    %v1153 = vld [vmem:[#allocation6] sm:$0x3]
    %v1154 = vpack.c.bf16 %v1153, %v1153
    %v1156 = vsel %vm206, %v1154, 0
    %1158 = vmatpush.bf16.msra.mxu0 0
    %1159 = vmatpush.bf16.msra.mxu0 0
    %1160 = vmatpush.bf16.msra.mxu0 0
    %1161 = vmatpush.bf16.msra.mxu0 0
    %1162 = vmatpush.bf16.msra.mxu0 0
    %1163 = vmatpush.bf16.msra.mxu0 0
    %1164 = vmatpush.bf16.msra.mxu0 %v288
    %1165 = vmatpush.bf16.msra.mxu0 %v287
    %1166 = vmatmul.bf16.gmra.mxu0 %v1156
    %v1167 = vpop.f32.mrf.mxu0
    %v1168 = vadd.f32 0.0, %v1167
    %v1169 = vpop.f32.mrf.mxu0
    %1170 = vdwg.mxu0
    %v1171 = vadd.f32 %v1152, %v1168
    %v1172 = vld [vmem:[#allocation7] sm:$0x3]
    %v1173 = vxor.u32 %v1171, 2147483648
    %v1174 = vmul.f32 %v1173, 1.442695
    %v1175 = vpow.pop %v1174
    %v1176 = vadd.f32 %v1175, 1.0
    %v1177 = vrcp.pop %v1176
    %v1178 = vmul.f32 %v1176, %v1177
    %v1179 = vsub.f32 1.0, %v1178
    %v1180 = vmul.f32 %v1177, %v1179
    %v1181 = vadd.f32 %v1177, %v1180
    %vm1182 = vweird.f32 %v1176
    %vm1183 = vweird.f32 %v1177
    %vm1184 = vmor %vm1182, %vm1183
    %v1185 = vsel %vm1184, %v1177, %v1181
    %v1186 = vand.u32 2147483647, %v1176
    %vm1187 = vcmp.eq.f32.partialorder %v1186, 8.507059e+37
    %v1188 = vand.u32 %v1176, 2147483648
    %v1189 = vor.u32 1.1754944e-38, %v1188
    %v1190 = vsel %vm1187, %v1189, %v1185
    %v1191 = vmul.f32 1.0, %v1190
    %v1192 = vtanh.pop %v1171
    %1194 = vrot.lane.b32.xlu0 %v1172, 32
    %v1195 = vpop.permute.xlu0 %1194
    %v1197 = vmul.f32 %v1191, %v1195
    %1199 = vrot.lane.b32.xlu0 %v1192, 64
    %v1200 = vpop.permute.xlu0 %1199
    %v1202 = vmul.f32 %v1191, %v1200
    %1204 = vrot.lane.b32.xlu0 %v1202, 32
    %v1205 = vpop.permute.xlu0 %1204
    %v1207 = vadd.f32 %v1197, %v1205
    %v1208 = vtanh.pop %v1207
    %1210 = vrot.lane.b32.xlu0 %v1208, 64
    %v1211 = vpop.permute.xlu0 %1210
    %v1213 = vmul.f32 %v1191, %v1211
    %1215 = vrot.lane.b32.xlu0 %v1213, 32
    %v1216 = vpop.permute.xlu0 %1215
    %1218 = vst.msk [vmem:[#allocation6] sm:$0x3] %vm186, %v1216
    %1220 = vrot.lane.b32.xlu0 %v1207, 96
    %v1221 = vpop.permute.xlu0 %1220
    %1223 = vst.msk [vmem:[#allocation7] sm:$0x3] %vm186, %v1221
    %v1224 = vld [vmem:[%s111] sm:$0x3]
    %v1225 = vld [vmem:[#allocation4] sm:$0x3]
    %v1226 = vpack.c.bf16 %v1225, %v1225
    %v1228 = vsel %vm206, %v1226, 0
    %1230 = vmatpush.bf16.msra.mxu0 0
    %1231 = vmatpush.bf16.msra.mxu0 0
    %1232 = vmatpush.bf16.msra.mxu0 0
    %1233 = vmatpush.bf16.msra.mxu0 0
    %1234 = vmatpush.bf16.msra.mxu0 0
    %1235 = vmatpush.bf16.msra.mxu0 0
    %1236 = vmatpush.bf16.msra.mxu0 %v203
    %1237 = vmatpush.bf16.msra.mxu0 %v202
    %1238 = vmatmul.bf16.gmra.mxu0 %v1228
    %v1239 = vpop.f32.mrf.mxu0
    %v1240 = vadd.f32 0.0, %v1239
    %v1241 = vpop.f32.mrf.mxu0
    %1242 = vdwg.mxu0
    %v1243 = vadd.f32 %v1224, %v1240
    %v1244 = vld [vmem:[#allocation5] sm:$0x3]
    %v1245 = vxor.u32 %v1243, 2147483648
    %v1246 = vmul.f32 %v1245, 1.442695
    %v1247 = vpow.pop %v1246
    %v1248 = vadd.f32 %v1247, 1.0
    %v1249 = vrcp.pop %v1248
    %v1250 = vmul.f32 %v1248, %v1249
    %v1251 = vsub.f32 1.0, %v1250
    %v1252 = vmul.f32 %v1249, %v1251
    %v1253 = vadd.f32 %v1249, %v1252
    %vm1254 = vweird.f32 %v1248
    %vm1255 = vweird.f32 %v1249
    %vm1256 = vmor %vm1254, %vm1255
    %v1257 = vsel %vm1256, %v1249, %v1253
    %v1258 = vand.u32 2147483647, %v1248
    %vm1259 = vcmp.eq.f32.partialorder %v1258, 8.507059e+37
    %v1260 = vand.u32 %v1248, 2147483648
    %v1261 = vor.u32 1.1754944e-38, %v1260
    %v1262 = vsel %vm1259, %v1261, %v1257
    %v1263 = vmul.f32 1.0, %v1262
    %v1264 = vtanh.pop %v1243
    %1266 = vrot.lane.b32.xlu0 %v1244, 32
    %v1267 = vpop.permute.xlu0 %1266
    %v1269 = vmul.f32 %v1263, %v1267
    %1271 = vrot.lane.b32.xlu0 %v1264, 64
    %v1272 = vpop.permute.xlu0 %1271
    %v1274 = vmul.f32 %v1263, %v1272
    %1276 = vrot.lane.b32.xlu0 %v1274, 32
    %v1277 = vpop.permute.xlu0 %1276
    %v1279 = vadd.f32 %v1269, %v1277
    %v1280 = vtanh.pop %v1279
    %1282 = vrot.lane.b32.xlu0 %v1280, 64
    %v1283 = vpop.permute.xlu0 %1282
    %v1285 = vmul.f32 %v1263, %v1283
    %1287 = vrot.lane.b32.xlu0 %v1285, 32
    %v1288 = vpop.permute.xlu0 %1287
    %1290 = vst.msk [vmem:[#allocation4] sm:$0x3] %vm186, %v1288
    %1292 = vrot.lane.b32.xlu0 %v1279, 96
    %v1293 = vpop.permute.xlu0 %1292
    %1295 = vst.msk [vmem:[#allocation5] sm:$0x3] %vm186, %v1293
    %v1296 = vld [vmem:[#allocation3] sm:$0x3]
    %v1297 = vld [vmem:[#allocation6] sm:$0x3]
    %v1298 = vpack.c.bf16 %v1297, %v1297
    %v1300 = vsel %vm206, %v1298, 0
    %1302 = vmatpush.bf16.msra.mxu0 0
    %1303 = vmatpush.bf16.msra.mxu0 0
    %1304 = vmatpush.bf16.msra.mxu0 0
    %1305 = vmatpush.bf16.msra.mxu0 0
    %1306 = vmatpush.bf16.msra.mxu0 0
    %1307 = vmatpush.bf16.msra.mxu0 0
    %1308 = vmatpush.bf16.msra.mxu0 %v288
    %1309 = vmatpush.bf16.msra.mxu0 %v287
    %1310 = vmatmul.bf16.gmra.mxu0 %v1300
    %v1311 = vpop.f32.mrf.mxu0
    %v1312 = vadd.f32 0.0, %v1311
    %v1313 = vpop.f32.mrf.mxu0
    %1314 = vdwg.mxu0
    %v1315 = vadd.f32 %v1296, %v1312
    %v1316 = vld [vmem:[#allocation7] sm:$0x3]
    %v1317 = vxor.u32 %v1315, 2147483648
    %v1318 = vmul.f32 %v1317, 1.442695
    %v1319 = vpow.pop %v1318
    %v1320 = vadd.f32 %v1319, 1.0
    %v1321 = vrcp.pop %v1320
    %v1322 = vmul.f32 %v1320, %v1321
    %v1323 = vsub.f32 1.0, %v1322
    %v1324 = vmul.f32 %v1321, %v1323
    %v1325 = vadd.f32 %v1321, %v1324
    %vm1326 = vweird.f32 %v1320
    %vm1327 = vweird.f32 %v1321
    %vm1328 = vmor %vm1326, %vm1327
    %v1329 = vsel %vm1328, %v1321, %v1325
    %v1330 = vand.u32 2147483647, %v1320
    %vm1331 = vcmp.eq.f32.partialorder %v1330, 8.507059e+37
    %v1332 = vand.u32 %v1320, 2147483648
    %v1333 = vor.u32 1.1754944e-38, %v1332
    %v1334 = vsel %vm1331, %v1333, %v1329
    %v1335 = vmul.f32 1.0, %v1334
    %v1336 = vtanh.pop %v1315
    %1338 = vrot.lane.b32.xlu0 %v1316, 32
    %v1339 = vpop.permute.xlu0 %1338
    %v1341 = vmul.f32 %v1335, %v1339
    %1343 = vrot.lane.b32.xlu0 %v1336, 64
    %v1344 = vpop.permute.xlu0 %1343
    %v1346 = vmul.f32 %v1335, %v1344
    %1348 = vrot.lane.b32.xlu0 %v1346, 32
    %v1349 = vpop.permute.xlu0 %1348
    %v1351 = vadd.f32 %v1341, %v1349
    %v1352 = vtanh.pop %v1351
    %1354 = vrot.lane.b32.xlu0 %v1352, 64
    %v1355 = vpop.permute.xlu0 %1354
    %v1357 = vmul.f32 %v1335, %v1355
    %1359 = vrot.lane.b32.xlu0 %v1357, 32
    %v1360 = vpop.permute.xlu0 %1359
    %1362 = vst.msk [vmem:[#allocation6] sm:$0x3] %vm186, %v1360
    %1364 = vrot.lane.b32.xlu0 %v1351, 96
    %v1365 = vpop.permute.xlu0 %1364
    %1367 = vst.msk [vmem:[#allocation7] sm:$0x3] %vm186, %v1365
    %v1368 = vld [vmem:[%s1] sm:$0x3]
    %v1369 = vld [vmem:[#allocation4] sm:$0x3]
    %v1370 = vld [vmem:[#allocation6] sm:$0x3]
    %1372 = vrot.lane.b32.xlu0 %v1369, 64
    %v1373 = vpop.permute.xlu0 %1372
    %1376 = vrot.lane.b32.xlu0 %v1370, 96
    %v1377 = vpop.permute.xlu0 %1376
    %v1379 = vsel %vm80, %v1368, %v1373
    %vm1380 = vcmask 785408
    %v1381 = vsel %vm1380, %v1379, %v1377
    %v1382 = vld [vmem:[%s8] sm:$0xff]
    %v1383 = vld [vmem:[%s8 + $0x8] sm:$0xff]
    %v1384 = vld [vmem:[%s8 + $0x10] sm:$0xff]
    %v1385 = vld [vmem:[%s8 + $0x18] sm:$0xff]
    %v1386 = vld [vmem:[%s8 + $0x20] sm:$0xff]
    %v1387 = vld [vmem:[%s8 + $0x28] sm:$0xff]
    %v1388 = vld [vmem:[%s8 + $0x30] sm:$0xff]
    %v1389 = vld [vmem:[%s8 + $0x38] sm:$0xff]
    %v1390 = vld [vmem:[%s8 + $0x40] sm:$0xff]
    %v1391 = vld [vmem:[%s8 + $0x48] sm:$0xff]
    %v1392 = vld [vmem:[%s8 + $0x50] sm:$0xff]
    %v1393 = vld [vmem:[%s8 + $0x58] sm:$0xff]
    %v1394 = vld [vmem:[%s8 + $0x60] sm:$0xff]
    %v1395 = vld [vmem:[%s8 + $0x68] sm:$0xff]
    %v1396 = vld [vmem:[%s8 + $0x70] sm:$0xff]
    %v1397 = vld [vmem:[%s8 + $0x78] sm:$0xff]
    %v1398 = vld [vmem:[%s9] sm:$0x1]
    %v1400 = vperm.slane %v1398, 0
    %1402 = vmatpush.msra.mxu0 %v1397
    %1403 = vmatpush.msra.mxu0 %v1396
    %1404 = vmatpush.msra.mxu0 %v1395
    %1405 = vmatpush.msra.mxu0 %v1394
    %1406 = vmatpush.msra.mxu0 %v1393
    %1407 = vmatpush.msra.mxu0 %v1392
    %1408 = vmatpush.msra.mxu0 %v1391
    %1409 = vmatpush.msra.mxu0 %v1390
    %1410 = vmatpush.msra.mxu0 %v1389
    %1411 = vmatpush.msra.mxu0 %v1388
    %1412 = vmatpush.msra.mxu0 %v1387
    %1413 = vmatpush.msra.mxu0 %v1386
    %1414 = vmatpush.msra.mxu0 %v1385
    %1415 = vmatpush.msra.mxu0 %v1384
    %1416 = vmatpush.msra.mxu0 %v1383
    %1417 = vmatpush.msra.mxu0 %v1382
    %1418 = vmatmul.f32.gmra.mxu0 %v1381
    %v1419 = vpop.f32.mrf.mxu0
    %v1420 = vadd.f32 %v1400, %v1419
    %1421 = vdwg.mxu0
    %vm1422 = vcmask 25600
    %v1423 = vsel %vm1422, %v1420, -inf
    %1424 = vmax.xlane.f32.xlu0 %v1423
    %v1425 = vpop.xlane.xlu0 %1424
    %v1426 = vsub.f32 %v1420, %v1425
    %v1427 = vmul.f32 %v1426, 1.442695
    %v1428 = vpow.pop %v1427
    %v1429 = vsel %vm1422, %v1428, 0.0
    %1430 = vadd.xlane.f32.xlu0 %v1429
    %v1431 = vpop.xlane.xlu0 %1430
    %v1432 = vrcp.pop %v1431
    %v1433 = vmul.f32 %v1431, %v1432
    %v1434 = vsub.f32 1.0, %v1433
    %v1435 = vmul.f32 %v1432, %v1434
    %v1436 = vadd.f32 %v1432, %v1435
    %vm1437 = vweird.f32 %v1431
    %vm1438 = vweird.f32 %v1432
    %vm1439 = vmor %vm1437, %vm1438
    %v1440 = vsel %vm1439, %v1432, %v1436
    %v1441 = vand.u32 2147483647, %v1431
    %vm1442 = vcmp.eq.f32.partialorder %v1441, 8.507059e+37
    %v1443 = vand.u32 %v1431, 2147483648
    %v1444 = vor.u32 1.1754944e-38, %v1443
    %v1445 = vsel %vm1442, %v1444, %v1440
    %v1446 = vmul.f32 %v1428, %v1445
    %1447 = vst.msk [vmem:[#allocation8] sm:$0x3] %vm1422, %v1446
    // Predicated region
    $region42: #{lstm_classifier_forward.3} parent=1 // pred_check
      _
    $region43: #{lstm_classifier_forward.3} parent=1 // pred_check_branch
      %1449 = sbr.rel (0) target = $region45
    $region44: #{lstm_classifier_forward.3} parent=1 // pred_region
      %1451 = vsyncadd [#allocation9], 0
      %s1453 = sshll.u32 [#allocation8], 4
      %s1454 = int_to_ptr.vmem [resolvable:$true] %s1453
      %s1455 = sshll.u32 %s10, 4
      %s1456 = int_to_ptr.hbm [resolvable:$true] %s1455
      %1458 = dma.vmem_to_hbm [thread:$0]  %s1454, 32, %s1456, [#allocation9]
    $region45: #{lstm_classifier_forward.3} parent=1 // pred_fallthru
      _
    // Predicated region
    $region46: #{lstm_classifier_forward.3} parent=1 // pred_check
      _
    $region47: #{lstm_classifier_forward.3} parent=1 // pred_check_branch
      %1460 = sbr.rel (0) target = $region49
    $region48: #{lstm_classifier_forward.3} parent=1 // pred_region
      %1462 = dma.done [#allocation9], 32
    $region49: #{lstm_classifier_forward.3} parent=1 // pred_fallthru
      _
    %1463 = vsyncpa [#allocation9], 1

// kernel: lstm_classifier_forward.2
$region0: #{lstm_classifier_forward.2}
  #allocation0 [shape = 'u32[]', space=smem, size = 0x4, offset = 0x4, fixed_abs, tag = 'smem constant byte address 0x4 - core index']
  #allocation1 [shape = 'u32[72,128]{1,0:T(1,128)}', space=vmem, size = 0x9000, scoped, tag = 'internal scratch']
  #allocation2 [shape = 'f32[8,2,128]{2,1,0:T(2,128)}', space=vmem, size = 0x2000, scoped, tag = 'scratch operand']
  #allocation3 [shape = 'f32[8,2,128]{2,1,0:T(2,128)}', space=vmem, size = 0x2000, scoped, tag = 'scratch operand']
  #allocation4 [shape = 'f32[2,32]{1,0:T(2,128)}', space=vmem, size = 0x400, scoped, tag = 'scratch operand']
  #allocation5 [shape = 'f32[2,32]{1,0:T(2,128)}', space=vmem, size = 0x400, scoped, tag = 'scratch operand']
  #allocation6 [shape = 'f32[2,32]{1,0:T(2,128)}', space=vmem, size = 0x400, scoped, tag = 'scratch operand']
  #allocation7 [shape = 'f32[2,32]{1,0:T(2,128)}', space=vmem, size = 0x400, scoped, tag = 'scratch operand']
  %s0 = inlined_call_operand.vmem [shape: bf16[16,16], index: 0, kind: input, shape index: {}]
  %s1 = inlined_call_operand.vmem [shape: bf16[16,128], index: 1, kind: input, shape index: {}]
  %s2 = inlined_call_operand.vmem [shape: bf16[32,128], index: 2, kind: input, shape index: {}]
  %s3 = inlined_call_operand.vmem [shape: f32[1,128], index: 3, kind: input, shape index: {}]
  %s4 = inlined_call_operand.vmem [shape: bf16[16,128], index: 4, kind: input, shape index: {}]
  %s5 = inlined_call_operand.vmem [shape: bf16[32,128], index: 5, kind: input, shape index: {}]
  %s6 = inlined_call_operand.vmem [shape: f32[1,128], index: 6, kind: input, shape index: {}]
  %s7 = inlined_call_operand.vmem [shape: bf16[8,2,64], index: 7, kind: output, shape index: {0}]
  %s8 = inlined_call_operand.vmem [shape: f32[2,64], index: 8, kind: output, shape index: {1}]
  %9 = xla_tuple %s7, %s8
  %s10 = sld [smem:[#allocation0]]
  $region46: #{lstm_classifier_forward.2} parent=0
    _
  %s12 = ssub.s32 1, %s10
  %s13 = scalar_select 0, %s12, %s10
  // Predicated region
  $region2: #{lstm_classifier_forward.2} parent=0 // pred_check
    _
  $region3: #{lstm_classifier_forward.2} parent=0 // pred_check_branch
    %15 = sbr.rel (0) target = $region5
  $region4: #{lstm_classifier_forward.2} parent=0 // pred_region
    _
  $region5: #{lstm_classifier_forward.2} parent=0 // pred_fallthru
    _
  // Predicated region
  $region6: #{lstm_classifier_forward.2} parent=0 // pred_check
    _
  $region7: #{lstm_classifier_forward.2} parent=0 // pred_check_branch
    %17 = sbr.rel (0) target = $region9
  $region8: #{lstm_classifier_forward.2} parent=0 // pred_region
    _
  $region9: #{lstm_classifier_forward.2} parent=0 // pred_fallthru
    _
  // Predicated region
  $region10: #{lstm_classifier_forward.2} parent=0 // pred_check
    _
  $region11: #{lstm_classifier_forward.2} parent=0 // pred_check_branch
    %19 = sbr.rel (0) target = $region13
  $region12: #{lstm_classifier_forward.2} parent=0 // pred_region
    _
  $region13: #{lstm_classifier_forward.2} parent=0 // pred_fallthru
    _
  // Predicated region
  $region14: #{lstm_classifier_forward.2} parent=0 // pred_check
    _
  $region15: #{lstm_classifier_forward.2} parent=0 // pred_check_branch
    %21 = sbr.rel (0) target = $region17
  $region16: #{lstm_classifier_forward.2} parent=0 // pred_region
    _
  $region17: #{lstm_classifier_forward.2} parent=0 // pred_fallthru
    _
  // Predicated region
  $region18: #{lstm_classifier_forward.2} parent=0 // pred_check
    _
  $region19: #{lstm_classifier_forward.2} parent=0 // pred_check_branch
    %23 = sbr.rel (0) target = $region21
  $region20: #{lstm_classifier_forward.2} parent=0 // pred_region
    _
  $region21: #{lstm_classifier_forward.2} parent=0 // pred_fallthru
    _
  // Predicated region
  $region22: #{lstm_classifier_forward.2} parent=0 // pred_check
    _
  $region23: #{lstm_classifier_forward.2} parent=0 // pred_check_branch
    %25 = sbr.rel (0) target = $region25
  $region24: #{lstm_classifier_forward.2} parent=0 // pred_region
    _
  $region25: #{lstm_classifier_forward.2} parent=0 // pred_fallthru
    _
  // Predicated region
  $region26: #{lstm_classifier_forward.2} parent=0 // pred_check
    _
  $region27: #{lstm_classifier_forward.2} parent=0 // pred_check_branch
    %27 = sbr.rel (0) target = $region29
  $region28: #{lstm_classifier_forward.2} parent=0 // pred_region
    _
  $region29: #{lstm_classifier_forward.2} parent=0 // pred_fallthru
    _
  %v29 = vld [vmem:[%s0] sm:$0xf]
  %v30 = vld [vmem:[%s0 + $0x4] sm:$0xf]
  %v31 = vld [vmem:[%s1] sm:$0xf]
  %v32 = vld [vmem:[%s1 + $0x4] sm:$0xf]
  %v33 = vld [vmem:[%s3] sm:$0x1]
  %v35 = vperm.slane %v33, 0
  %v39 = vunpack.c.l.b16 %v29
  %v40 = vunpack.c.l.b16 %v30
  %v41 = vpack.c.b16 %v40, %v39
  %v44 = vunpack.c.l.b16 %v31
  %v45 = vunpack.c.l.b16 %v32
  %v46 = vpack.c.b16 %v45, %v44
  %vm48 = vcmask 130048
  %v50 = vsel %vm48, %v41, 0
  %52 = vmatpush.bf16.msra.mxu0 0
  %53 = vmatpush.bf16.msra.mxu0 0
  %54 = vmatpush.bf16.msra.mxu0 0
  %55 = vmatpush.bf16.msra.mxu0 0
  %56 = vmatpush.bf16.msra.mxu0 0
  %57 = vmatpush.bf16.msra.mxu0 0
  %58 = vmatpush.bf16.msra.mxu0 0
  %59 = vmatpush.bf16.msra.mxu0 %v46
  %60 = vmatmul.bf16.gmra.mxu0 %v50
  %v61 = vpop.f32.mrf.mxu0
  %v62 = vadd.f32 %v35, %v61
  %v63 = vpop.f32.mrf.mxu0
  %v64 = vadd.f32 %v35, %v63
  %65 = vdwg.mxu0
  %66 = vst [vmem:[#allocation2] sm:$0x3] %v62
  %s67 = scalar_lea.vmem [#allocation2], 2
  %68 = vst [vmem:[%s67 - $0x2] sm:$0xc] %v62
  %s69 = scalar_lea.vmem [#allocation2], 4
  %70 = vst [vmem:[%s69 - $0x4] sm:$0x30] %v62
  %s71 = scalar_lea.vmem [#allocation2], 6
  %72 = vst [vmem:[%s71 - $0x6] sm:$0xc0] %v62
  %s73 = scalar_lea.vmem [#allocation2], 8
  %74 = vst [vmem:[%s73] sm:$0x3] %v64
  %s75 = scalar_lea.vmem [#allocation2], 10
  %76 = vst [vmem:[%s75 - $0x2] sm:$0xc] %v64
  %s77 = scalar_lea.vmem [#allocation2], 12
  %78 = vst [vmem:[%s77 - $0x4] sm:$0x30] %v64
  %s79 = scalar_lea.vmem [#allocation2], 14
  %80 = vst [vmem:[%s79 - $0x6] sm:$0xc0] %v64
  %v81 = vld [vmem:[%s4] sm:$0xf]
  %v82 = vld [vmem:[%s4 + $0x4] sm:$0xf]
  %v83 = vld [vmem:[%s6] sm:$0x1]
  %v85 = vperm.slane %v83, 0
  %v89 = vunpack.c.l.b16 %v81
  %v90 = vunpack.c.l.b16 %v82
  %v91 = vpack.c.b16 %v90, %v89
  %93 = vmatpush.bf16.msra.mxu0 0
  %94 = vmatpush.bf16.msra.mxu0 0
  %95 = vmatpush.bf16.msra.mxu0 0
  %96 = vmatpush.bf16.msra.mxu0 0
  %97 = vmatpush.bf16.msra.mxu0 0
  %98 = vmatpush.bf16.msra.mxu0 0
  %99 = vmatpush.bf16.msra.mxu0 0
  %100 = vmatpush.bf16.msra.mxu0 %v91
  %101 = vmatmul.bf16.gmra.mxu0 %v50
  %v102 = vpop.f32.mrf.mxu0
  %v103 = vadd.f32 %v85, %v102
  %v104 = vpop.f32.mrf.mxu0
  %v105 = vadd.f32 %v85, %v104
  %106 = vdwg.mxu0
  %107 = vst [vmem:[#allocation3] sm:$0x3] %v103
  %s108 = scalar_lea.vmem [#allocation3], 2
  %109 = vst [vmem:[%s108 - $0x2] sm:$0xc] %v103
  %s110 = scalar_lea.vmem [#allocation3], 4
  %111 = vst [vmem:[%s110 - $0x4] sm:$0x30] %v103
  %s112 = scalar_lea.vmem [#allocation3], 6
  %113 = vst [vmem:[%s112 - $0x6] sm:$0xc0] %v103
  %s114 = scalar_lea.vmem [#allocation3], 8
  %115 = vst [vmem:[%s114] sm:$0x3] %v105
  %s116 = scalar_lea.vmem [#allocation3], 10
  %117 = vst [vmem:[%s116 - $0x2] sm:$0xc] %v105
  %s118 = scalar_lea.vmem [#allocation3], 12
  %119 = vst [vmem:[%s118 - $0x4] sm:$0x30] %v105
  %s120 = scalar_lea.vmem [#allocation3], 14
  %121 = vst [vmem:[%s120 - $0x6] sm:$0xc0] %v105
  %v122 = vld [vmem:[%s2] sm:$0xf]
  %v123 = vld [vmem:[%s2 + $0x4] sm:$0xf]
  %v124 = vld [vmem:[%s2 + $0x8] sm:$0xf]
  %v125 = vld [vmem:[%s2 + $0xc] sm:$0xf]
  %v126 = vld [vmem:[%s5] sm:$0xf]
  %v127 = vld [vmem:[%s5 + $0x4] sm:$0xf]
  %v128 = vld [vmem:[%s5 + $0x8] sm:$0xf]
  %v129 = vld [vmem:[%s5 + $0xc] sm:$0xf]
  %vm130 = vcmask 254976
  %131 = vst.msk [vmem:[#allocation4] sm:$0x3] %vm130, 0.0
  %132 = vst.msk [vmem:[#allocation5] sm:$0x3] %vm130, 0.0
  %133 = vst.msk [vmem:[#allocation6] sm:$0x3] %vm130, 0.0
  %134 = vst.msk [vmem:[#allocation7] sm:$0x3] %vm130, 0.0
  %v135 = vld [vmem:[#allocation2] sm:$0x3]
  %v136 = vld [vmem:[#allocation4] sm:$0x3]
  %v137 = vpack.c.bf16 %v136, %v136
  %v142 = vunpack.c.l.b16 %v122
  %v143 = vunpack.c.l.b16 %v123
  %v144 = vunpack.c.l.b16 %v124
  %v145 = vunpack.c.l.b16 %v125
  %v146 = vpack.c.b16 %v143, %v142
  %v147 = vpack.c.b16 %v145, %v144
  %vm150 = vcmask 261120
  %v152 = vsel %vm150, %v137, 0
  %154 = vmatpush.bf16.msra.mxu0 0
  %155 = vmatpush.bf16.msra.mxu0 0
  %156 = vmatpush.bf16.msra.mxu0 0
  %157 = vmatpush.bf16.msra.mxu0 0
  %158 = vmatpush.bf16.msra.mxu0 0
  %159 = vmatpush.bf16.msra.mxu0 0
  %160 = vmatpush.bf16.msra.mxu0 %v147
  %161 = vmatpush.bf16.msra.mxu0 %v146
  %162 = vmatmul.bf16.gmra.mxu0 %v152
  %v163 = vpop.f32.mrf.mxu0
  %v164 = vadd.f32 0.0, %v163
  %v165 = vpop.f32.mrf.mxu0
  %166 = vdwg.mxu0
  %v167 = vadd.f32 %v135, %v164
  %v168 = vld [vmem:[#allocation5] sm:$0x3]
  %v169 = vxor.u32 %v167, 2147483648
  %v170 = vmul.f32 %v169, 1.442695
  %v171 = vpow.pop %v170
  %v172 = vadd.f32 %v171, 1.0
  %v173 = vrcp.pop %v172
  %v174 = vmul.f32 %v172, %v173
  %v175 = vsub.f32 1.0, %v174
  %v176 = vmul.f32 %v173, %v175
  %v177 = vadd.f32 %v173, %v176
  %vm178 = vweird.f32 %v172
  %vm179 = vweird.f32 %v173
  %vm180 = vmor %vm178, %vm179
  %v181 = vsel %vm180, %v173, %v177
  %v182 = vand.u32 2147483647, %v172
  %vm183 = vcmp.eq.f32.partialorder %v182, 8.507059e+37
  %v184 = vand.u32 %v172, 2147483648
  %v185 = vor.u32 1.1754944e-38, %v184
  %v186 = vsel %vm183, %v185, %v181
  %v187 = vmul.f32 1.0, %v186
  %v188 = vtanh.pop %v167
  %190 = vrot.lane.b32.xlu0 %v168, 32
  %v191 = vpop.permute.xlu0 %190
  %v193 = vmul.f32 %v187, %v191
  %195 = vrot.lane.b32.xlu0 %v188, 64
  %v196 = vpop.permute.xlu0 %195
  %v198 = vmul.f32 %v187, %v196
  %200 = vrot.lane.b32.xlu0 %v198, 32
  %v201 = vpop.permute.xlu0 %200
  %v203 = vadd.f32 %v193, %v201
  %v204 = vtanh.pop %v203
  %206 = vrot.lane.b32.xlu0 %v204, 64
  %v207 = vpop.permute.xlu0 %206
  %v209 = vmul.f32 %v187, %v207
  %211 = vrot.lane.b32.xlu0 %v209, 32
  %v212 = vpop.permute.xlu0 %211
  %214 = vst.msk [vmem:[#allocation4] sm:$0x3] %vm130, %v212
  %216 = vrot.lane.b32.xlu0 %v203, 96
  %v217 = vpop.permute.xlu0 %216
  %219 = vst.msk [vmem:[#allocation5] sm:$0x3] %vm130, %v217
  %v220 = vld [vmem:[%s120] sm:$0x3]
  %v221 = vld [vmem:[#allocation6] sm:$0x3]
  %v222 = vpack.c.bf16 %v221, %v221
  %v227 = vunpack.c.l.b16 %v126
  %v228 = vunpack.c.l.b16 %v127
  %v229 = vunpack.c.l.b16 %v128
  %v230 = vunpack.c.l.b16 %v129
  %v231 = vpack.c.b16 %v228, %v227
  %v232 = vpack.c.b16 %v230, %v229
  %v236 = vsel %vm150, %v222, 0
  %238 = vmatpush.bf16.msra.mxu0 0
  %239 = vmatpush.bf16.msra.mxu0 0
  %240 = vmatpush.bf16.msra.mxu0 0
  %241 = vmatpush.bf16.msra.mxu0 0
  %242 = vmatpush.bf16.msra.mxu0 0
  %243 = vmatpush.bf16.msra.mxu0 0
  %244 = vmatpush.bf16.msra.mxu0 %v232
  %245 = vmatpush.bf16.msra.mxu0 %v231
  %246 = vmatmul.bf16.gmra.mxu0 %v236
  %v247 = vpop.f32.mrf.mxu0
  %v248 = vadd.f32 0.0, %v247
  %v249 = vpop.f32.mrf.mxu0
  %250 = vdwg.mxu0
  %v251 = vadd.f32 %v220, %v248
  %v252 = vld [vmem:[#allocation7] sm:$0x3]
  %v253 = vxor.u32 %v251, 2147483648
  %v254 = vmul.f32 %v253, 1.442695
  %v255 = vpow.pop %v254
  %v256 = vadd.f32 %v255, 1.0
  %v257 = vrcp.pop %v256
  %v258 = vmul.f32 %v256, %v257
  %v259 = vsub.f32 1.0, %v258
  %v260 = vmul.f32 %v257, %v259
  %v261 = vadd.f32 %v257, %v260
  %vm262 = vweird.f32 %v256
  %vm263 = vweird.f32 %v257
  %vm264 = vmor %vm262, %vm263
  %v265 = vsel %vm264, %v257, %v261
  %v266 = vand.u32 2147483647, %v256
  %vm267 = vcmp.eq.f32.partialorder %v266, 8.507059e+37
  %v268 = vand.u32 %v256, 2147483648
  %v269 = vor.u32 1.1754944e-38, %v268
  %v270 = vsel %vm267, %v269, %v265
  %v271 = vmul.f32 1.0, %v270
  %v272 = vtanh.pop %v251
  %274 = vrot.lane.b32.xlu0 %v252, 32
  %v275 = vpop.permute.xlu0 %274
  %v277 = vmul.f32 %v271, %v275
  %279 = vrot.lane.b32.xlu0 %v272, 64
  %v280 = vpop.permute.xlu0 %279
  %v282 = vmul.f32 %v271, %v280
  %284 = vrot.lane.b32.xlu0 %v282, 32
  %v285 = vpop.permute.xlu0 %284
  %v287 = vadd.f32 %v277, %v285
  %v288 = vtanh.pop %v287
  %290 = vrot.lane.b32.xlu0 %v288, 64
  %v291 = vpop.permute.xlu0 %290
  %v293 = vmul.f32 %v271, %v291
  %295 = vrot.lane.b32.xlu0 %v293, 32
  %v296 = vpop.permute.xlu0 %295
  %298 = vst.msk [vmem:[#allocation6] sm:$0x3] %vm130, %v296
  %300 = vrot.lane.b32.xlu0 %v287, 96
  %v301 = vpop.permute.xlu0 %300
  %303 = vst.msk [vmem:[#allocation7] sm:$0x3] %vm130, %v301
  %v304 = vpack.c.bf16 %v209, %v209
  %v306 = vrot.slane %v304, 3
  %vm307 = vcmask 1040384
  %v310 = vsel %vm307, %v304, %v306
  %312 = vrot.lane.b32.xlu0 %v310, 32
  %v313 = vpop.permute.xlu0 %312
  %vm315 = vcmask 253952
  %316 = vst.msk [vmem:[%s7] sm:$0x1] %vm315, %v313
  %v317 = vpack.c.bf16 %v293, %v293
  %v319 = vrot.slane %v317, 3
  %v322 = vsel %vm307, %v317, %v319
  %324 = vrot.lane.b32.xlu0 %v322, 64
  %v325 = vpop.permute.xlu0 %324
  %s327 = scalar_lea.vmem %s7, 7
  %vm328 = vcmask 516352
  %329 = vst.msk [vmem:[%s327] sm:$0x1] %vm328, %v325
  %v330 = vld [vmem:[%s67] sm:$0x3]
  %v331 = vld [vmem:[#allocation4] sm:$0x3]
  %v332 = vpack.c.bf16 %v331, %v331
  %v334 = vsel %vm150, %v332, 0
  %336 = vmatpush.bf16.msra.mxu0 0
  %337 = vmatpush.bf16.msra.mxu0 0
  %338 = vmatpush.bf16.msra.mxu0 0
  %339 = vmatpush.bf16.msra.mxu0 0
  %340 = vmatpush.bf16.msra.mxu0 0
  %341 = vmatpush.bf16.msra.mxu0 0
  %342 = vmatpush.bf16.msra.mxu0 %v147
  %343 = vmatpush.bf16.msra.mxu0 %v146
  %344 = vmatmul.bf16.gmra.mxu0 %v334
  %v345 = vpop.f32.mrf.mxu0
  %v346 = vadd.f32 0.0, %v345
  %v347 = vpop.f32.mrf.mxu0
  %348 = vdwg.mxu0
  %v349 = vadd.f32 %v330, %v346
  %v350 = vld [vmem:[#allocation5] sm:$0x3]
  %v351 = vxor.u32 %v349, 2147483648
  %v352 = vmul.f32 %v351, 1.442695
  %v353 = vpow.pop %v352
  %v354 = vadd.f32 %v353, 1.0
  %v355 = vrcp.pop %v354
  %v356 = vmul.f32 %v354, %v355
  %v357 = vsub.f32 1.0, %v356
  %v358 = vmul.f32 %v355, %v357
  %v359 = vadd.f32 %v355, %v358
  %vm360 = vweird.f32 %v354
  %vm361 = vweird.f32 %v355
  %vm362 = vmor %vm360, %vm361
  %v363 = vsel %vm362, %v355, %v359
  %v364 = vand.u32 2147483647, %v354
  %vm365 = vcmp.eq.f32.partialorder %v364, 8.507059e+37
  %v366 = vand.u32 %v354, 2147483648
  %v367 = vor.u32 1.1754944e-38, %v366
  %v368 = vsel %vm365, %v367, %v363
  %v369 = vmul.f32 1.0, %v368
  %v370 = vtanh.pop %v349
  %372 = vrot.lane.b32.xlu0 %v350, 32
  %v373 = vpop.permute.xlu0 %372
  %v375 = vmul.f32 %v369, %v373
  %377 = vrot.lane.b32.xlu0 %v370, 64
  %v378 = vpop.permute.xlu0 %377
  %v380 = vmul.f32 %v369, %v378
  %382 = vrot.lane.b32.xlu0 %v380, 32
  %v383 = vpop.permute.xlu0 %382
  %v385 = vadd.f32 %v375, %v383
  %v386 = vtanh.pop %v385
  %388 = vrot.lane.b32.xlu0 %v386, 64
  %v389 = vpop.permute.xlu0 %388
  %v391 = vmul.f32 %v369, %v389
  %393 = vrot.lane.b32.xlu0 %v391, 32
  %v394 = vpop.permute.xlu0 %393
  %396 = vst.msk [vmem:[#allocation4] sm:$0x3] %vm130, %v394
  %398 = vrot.lane.b32.xlu0 %v385, 96
  %v399 = vpop.permute.xlu0 %398
  %401 = vst.msk [vmem:[#allocation5] sm:$0x3] %vm130, %v399
  %v402 = vld [vmem:[%s118] sm:$0x3]
  %v403 = vld [vmem:[#allocation6] sm:$0x3]
  %v404 = vpack.c.bf16 %v403, %v403
  %v406 = vsel %vm150, %v404, 0
  %408 = vmatpush.bf16.msra.mxu0 0
  %409 = vmatpush.bf16.msra.mxu0 0
  %410 = vmatpush.bf16.msra.mxu0 0
  %411 = vmatpush.bf16.msra.mxu0 0
  %412 = vmatpush.bf16.msra.mxu0 0
  %413 = vmatpush.bf16.msra.mxu0 0
  %414 = vmatpush.bf16.msra.mxu0 %v232
  %415 = vmatpush.bf16.msra.mxu0 %v231
  %416 = vmatmul.bf16.gmra.mxu0 %v406
  %v417 = vpop.f32.mrf.mxu0
  %v418 = vadd.f32 0.0, %v417
  %v419 = vpop.f32.mrf.mxu0
  %420 = vdwg.mxu0
  %v421 = vadd.f32 %v402, %v418
  %v422 = vld [vmem:[#allocation7] sm:$0x3]
  %v423 = vxor.u32 %v421, 2147483648
  %v424 = vmul.f32 %v423, 1.442695
  %v425 = vpow.pop %v424
  %v426 = vadd.f32 %v425, 1.0
  %v427 = vrcp.pop %v426
  %v428 = vmul.f32 %v426, %v427
  %v429 = vsub.f32 1.0, %v428
  %v430 = vmul.f32 %v427, %v429
  %v431 = vadd.f32 %v427, %v430
  %vm432 = vweird.f32 %v426
  %vm433 = vweird.f32 %v427
  %vm434 = vmor %vm432, %vm433
  %v435 = vsel %vm434, %v427, %v431
  %v436 = vand.u32 2147483647, %v426
  %vm437 = vcmp.eq.f32.partialorder %v436, 8.507059e+37
  %v438 = vand.u32 %v426, 2147483648
  %v439 = vor.u32 1.1754944e-38, %v438
  %v440 = vsel %vm437, %v439, %v435
  %v441 = vmul.f32 1.0, %v440
  %v442 = vtanh.pop %v421
  %444 = vrot.lane.b32.xlu0 %v422, 32
  %v445 = vpop.permute.xlu0 %444
  %v447 = vmul.f32 %v441, %v445
  %449 = vrot.lane.b32.xlu0 %v442, 64
  %v450 = vpop.permute.xlu0 %449
  %v452 = vmul.f32 %v441, %v450
  %454 = vrot.lane.b32.xlu0 %v452, 32
  %v455 = vpop.permute.xlu0 %454
  %v457 = vadd.f32 %v447, %v455
  %v458 = vtanh.pop %v457
  %460 = vrot.lane.b32.xlu0 %v458, 64
  %v461 = vpop.permute.xlu0 %460
  %v463 = vmul.f32 %v441, %v461
  %465 = vrot.lane.b32.xlu0 %v463, 32
  %v466 = vpop.permute.xlu0 %465
  %468 = vst.msk [vmem:[#allocation6] sm:$0x3] %vm130, %v466
  %470 = vrot.lane.b32.xlu0 %v457, 96
  %v471 = vpop.permute.xlu0 %470
  %473 = vst.msk [vmem:[#allocation7] sm:$0x3] %vm130, %v471
  %v474 = vpack.c.bf16 %v391, %v391
  %v476 = vrot.slane %v474, 3
  %v479 = vsel %vm307, %v474, %v476
  %481 = vrot.lane.b32.xlu0 %v479, 32
  %v482 = vpop.permute.xlu0 %481
  %s484 = scalar_lea.vmem %s7, 1
  %485 = vst.msk [vmem:[%s484] sm:$0x1] %vm315, %v482
  %v486 = vpack.c.bf16 %v463, %v463
  %v488 = vrot.slane %v486, 3
  %v491 = vsel %vm307, %v486, %v488
  %493 = vrot.lane.b32.xlu0 %v491, 64
  %v494 = vpop.permute.xlu0 %493
  %s496 = scalar_lea.vmem %s7, 6
  %497 = vst.msk [vmem:[%s496] sm:$0x1] %vm328, %v494
  %v498 = vld [vmem:[%s69] sm:$0x3]
  %v499 = vld [vmem:[#allocation4] sm:$0x3]
  %v500 = vpack.c.bf16 %v499, %v499
  %v502 = vsel %vm150, %v500, 0
  %504 = vmatpush.bf16.msra.mxu0 0
  %505 = vmatpush.bf16.msra.mxu0 0
  %506 = vmatpush.bf16.msra.mxu0 0
  %507 = vmatpush.bf16.msra.mxu0 0
  %508 = vmatpush.bf16.msra.mxu0 0
  %509 = vmatpush.bf16.msra.mxu0 0
  %510 = vmatpush.bf16.msra.mxu0 %v147
  %511 = vmatpush.bf16.msra.mxu0 %v146
  %512 = vmatmul.bf16.gmra.mxu0 %v502
  %v513 = vpop.f32.mrf.mxu0
  %v514 = vadd.f32 0.0, %v513
  %v515 = vpop.f32.mrf.mxu0
  %516 = vdwg.mxu0
  %v517 = vadd.f32 %v498, %v514
  %v518 = vld [vmem:[#allocation5] sm:$0x3]
  %v519 = vxor.u32 %v517, 2147483648
  %v520 = vmul.f32 %v519, 1.442695
  %v521 = vpow.pop %v520
  %v522 = vadd.f32 %v521, 1.0
  %v523 = vrcp.pop %v522
  %v524 = vmul.f32 %v522, %v523
  %v525 = vsub.f32 1.0, %v524
  %v526 = vmul.f32 %v523, %v525
  %v527 = vadd.f32 %v523, %v526
  %vm528 = vweird.f32 %v522
  %vm529 = vweird.f32 %v523
  %vm530 = vmor %vm528, %vm529
  %v531 = vsel %vm530, %v523, %v527
  %v532 = vand.u32 2147483647, %v522
  %vm533 = vcmp.eq.f32.partialorder %v532, 8.507059e+37
  %v534 = vand.u32 %v522, 2147483648
  %v535 = vor.u32 1.1754944e-38, %v534
  %v536 = vsel %vm533, %v535, %v531
  %v537 = vmul.f32 1.0, %v536
  %v538 = vtanh.pop %v517
  %540 = vrot.lane.b32.xlu0 %v518, 32
  %v541 = vpop.permute.xlu0 %540
  %v543 = vmul.f32 %v537, %v541
  %545 = vrot.lane.b32.xlu0 %v538, 64
  %v546 = vpop.permute.xlu0 %545
  %v548 = vmul.f32 %v537, %v546
  %550 = vrot.lane.b32.xlu0 %v548, 32
  %v551 = vpop.permute.xlu0 %550
  %v553 = vadd.f32 %v543, %v551
  %v554 = vtanh.pop %v553
  %556 = vrot.lane.b32.xlu0 %v554, 64
  %v557 = vpop.permute.xlu0 %556
  %v559 = vmul.f32 %v537, %v557
  %561 = vrot.lane.b32.xlu0 %v559, 32
  %v562 = vpop.permute.xlu0 %561
  %564 = vst.msk [vmem:[#allocation4] sm:$0x3] %vm130, %v562
  %566 = vrot.lane.b32.xlu0 %v553, 96
  %v567 = vpop.permute.xlu0 %566
  %569 = vst.msk [vmem:[#allocation5] sm:$0x3] %vm130, %v567
  %v570 = vld [vmem:[%s116] sm:$0x3]
  %v571 = vld [vmem:[#allocation6] sm:$0x3]
  %v572 = vpack.c.bf16 %v571, %v571
  %v574 = vsel %vm150, %v572, 0
  %576 = vmatpush.bf16.msra.mxu0 0
  %577 = vmatpush.bf16.msra.mxu0 0
  %578 = vmatpush.bf16.msra.mxu0 0
  %579 = vmatpush.bf16.msra.mxu0 0
  %580 = vmatpush.bf16.msra.mxu0 0
  %581 = vmatpush.bf16.msra.mxu0 0
  %582 = vmatpush.bf16.msra.mxu0 %v232
  %583 = vmatpush.bf16.msra.mxu0 %v231
  %584 = vmatmul.bf16.gmra.mxu0 %v574
  %v585 = vpop.f32.mrf.mxu0
  %v586 = vadd.f32 0.0, %v585
  %v587 = vpop.f32.mrf.mxu0
  %588 = vdwg.mxu0
  %v589 = vadd.f32 %v570, %v586
  %v590 = vld [vmem:[#allocation7] sm:$0x3]
  %v591 = vxor.u32 %v589, 2147483648
  %v592 = vmul.f32 %v591, 1.442695
  %v593 = vpow.pop %v592
  %v594 = vadd.f32 %v593, 1.0
  %v595 = vrcp.pop %v594
  %v596 = vmul.f32 %v594, %v595
  %v597 = vsub.f32 1.0, %v596
  %v598 = vmul.f32 %v595, %v597
  %v599 = vadd.f32 %v595, %v598
  %vm600 = vweird.f32 %v594
  %vm601 = vweird.f32 %v595
  %vm602 = vmor %vm600, %vm601
  %v603 = vsel %vm602, %v595, %v599
  %v604 = vand.u32 2147483647, %v594
  %vm605 = vcmp.eq.f32.partialorder %v604, 8.507059e+37
  %v606 = vand.u32 %v594, 2147483648
  %v607 = vor.u32 1.1754944e-38, %v606
  %v608 = vsel %vm605, %v607, %v603
  %v609 = vmul.f32 1.0, %v608
  %v610 = vtanh.pop %v589
  %612 = vrot.lane.b32.xlu0 %v590, 32
  %v613 = vpop.permute.xlu0 %612
  %v615 = vmul.f32 %v609, %v613
  %617 = vrot.lane.b32.xlu0 %v610, 64
  %v618 = vpop.permute.xlu0 %617
  %v620 = vmul.f32 %v609, %v618
  %622 = vrot.lane.b32.xlu0 %v620, 32
  %v623 = vpop.permute.xlu0 %622
  %v625 = vadd.f32 %v615, %v623
  %v626 = vtanh.pop %v625
  %628 = vrot.lane.b32.xlu0 %v626, 64
  %v629 = vpop.permute.xlu0 %628
  %v631 = vmul.f32 %v609, %v629
  %633 = vrot.lane.b32.xlu0 %v631, 32
  %v634 = vpop.permute.xlu0 %633
  %636 = vst.msk [vmem:[#allocation6] sm:$0x3] %vm130, %v634
  %638 = vrot.lane.b32.xlu0 %v625, 96
  %v639 = vpop.permute.xlu0 %638
  %641 = vst.msk [vmem:[#allocation7] sm:$0x3] %vm130, %v639
  %v642 = vpack.c.bf16 %v559, %v559
  %v644 = vrot.slane %v642, 3
  %v647 = vsel %vm307, %v642, %v644
  %649 = vrot.lane.b32.xlu0 %v647, 32
  %v650 = vpop.permute.xlu0 %649
  %s652 = scalar_lea.vmem %s7, 2
  %653 = vst.msk [vmem:[%s652] sm:$0x1] %vm315, %v650
  %v654 = vpack.c.bf16 %v631, %v631
  %v656 = vrot.slane %v654, 3
  %v659 = vsel %vm307, %v654, %v656
  %661 = vrot.lane.b32.xlu0 %v659, 64
  %v662 = vpop.permute.xlu0 %661
  %s664 = scalar_lea.vmem %s7, 5
  %665 = vst.msk [vmem:[%s664] sm:$0x1] %vm328, %v662
  %v666 = vld [vmem:[%s71] sm:$0x3]
  %v667 = vld [vmem:[#allocation4] sm:$0x3]
  %v668 = vpack.c.bf16 %v667, %v667
  %v670 = vsel %vm150, %v668, 0
  %672 = vmatpush.bf16.msra.mxu0 0
  %673 = vmatpush.bf16.msra.mxu0 0
  %674 = vmatpush.bf16.msra.mxu0 0
  %675 = vmatpush.bf16.msra.mxu0 0
  %676 = vmatpush.bf16.msra.mxu0 0
  %677 = vmatpush.bf16.msra.mxu0 0
  %678 = vmatpush.bf16.msra.mxu0 %v147
  %679 = vmatpush.bf16.msra.mxu0 %v146
  %680 = vmatmul.bf16.gmra.mxu0 %v670
  %v681 = vpop.f32.mrf.mxu0
  %v682 = vadd.f32 0.0, %v681
  %v683 = vpop.f32.mrf.mxu0
  %684 = vdwg.mxu0
  %v685 = vadd.f32 %v666, %v682
  %v686 = vld [vmem:[#allocation5] sm:$0x3]
  %v687 = vxor.u32 %v685, 2147483648
  %v688 = vmul.f32 %v687, 1.442695
  %v689 = vpow.pop %v688
  %v690 = vadd.f32 %v689, 1.0
  %v691 = vrcp.pop %v690
  %v692 = vmul.f32 %v690, %v691
  %v693 = vsub.f32 1.0, %v692
  %v694 = vmul.f32 %v691, %v693
  %v695 = vadd.f32 %v691, %v694
  %vm696 = vweird.f32 %v690
  %vm697 = vweird.f32 %v691
  %vm698 = vmor %vm696, %vm697
  %v699 = vsel %vm698, %v691, %v695
  %v700 = vand.u32 2147483647, %v690
  %vm701 = vcmp.eq.f32.partialorder %v700, 8.507059e+37
  %v702 = vand.u32 %v690, 2147483648
  %v703 = vor.u32 1.1754944e-38, %v702
  %v704 = vsel %vm701, %v703, %v699
  %v705 = vmul.f32 1.0, %v704
  %v706 = vtanh.pop %v685
  %708 = vrot.lane.b32.xlu0 %v686, 32
  %v709 = vpop.permute.xlu0 %708
  %v711 = vmul.f32 %v705, %v709
  %713 = vrot.lane.b32.xlu0 %v706, 64
  %v714 = vpop.permute.xlu0 %713
  %v716 = vmul.f32 %v705, %v714
  %718 = vrot.lane.b32.xlu0 %v716, 32
  %v719 = vpop.permute.xlu0 %718
  %v721 = vadd.f32 %v711, %v719
  %v722 = vtanh.pop %v721
  %724 = vrot.lane.b32.xlu0 %v722, 64
  %v725 = vpop.permute.xlu0 %724
  %v727 = vmul.f32 %v705, %v725
  %729 = vrot.lane.b32.xlu0 %v727, 32
  %v730 = vpop.permute.xlu0 %729
  %732 = vst.msk [vmem:[#allocation4] sm:$0x3] %vm130, %v730
  %734 = vrot.lane.b32.xlu0 %v721, 96
  %v735 = vpop.permute.xlu0 %734
  %737 = vst.msk [vmem:[#allocation5] sm:$0x3] %vm130, %v735
  %v738 = vld [vmem:[%s114] sm:$0x3]
  %v739 = vld [vmem:[#allocation6] sm:$0x3]
  %v740 = vpack.c.bf16 %v739, %v739
  %v742 = vsel %vm150, %v740, 0
  %744 = vmatpush.bf16.msra.mxu0 0
  %745 = vmatpush.bf16.msra.mxu0 0
  %746 = vmatpush.bf16.msra.mxu0 0
  %747 = vmatpush.bf16.msra.mxu0 0
  %748 = vmatpush.bf16.msra.mxu0 0
  %749 = vmatpush.bf16.msra.mxu0 0
  %750 = vmatpush.bf16.msra.mxu0 %v232
  %751 = vmatpush.bf16.msra.mxu0 %v231
  %752 = vmatmul.bf16.gmra.mxu0 %v742
  %v753 = vpop.f32.mrf.mxu0
  %v754 = vadd.f32 0.0, %v753
  %v755 = vpop.f32.mrf.mxu0
  %756 = vdwg.mxu0
  %v757 = vadd.f32 %v738, %v754
  %v758 = vld [vmem:[#allocation7] sm:$0x3]
  %v759 = vxor.u32 %v757, 2147483648
  %v760 = vmul.f32 %v759, 1.442695
  %v761 = vpow.pop %v760
  %v762 = vadd.f32 %v761, 1.0
  %v763 = vrcp.pop %v762
  %v764 = vmul.f32 %v762, %v763
  %v765 = vsub.f32 1.0, %v764
  %v766 = vmul.f32 %v763, %v765
  %v767 = vadd.f32 %v763, %v766
  %vm768 = vweird.f32 %v762
  %vm769 = vweird.f32 %v763
  %vm770 = vmor %vm768, %vm769
  %v771 = vsel %vm770, %v763, %v767
  %v772 = vand.u32 2147483647, %v762
  %vm773 = vcmp.eq.f32.partialorder %v772, 8.507059e+37
  %v774 = vand.u32 %v762, 2147483648
  %v775 = vor.u32 1.1754944e-38, %v774
  %v776 = vsel %vm773, %v775, %v771
  %v777 = vmul.f32 1.0, %v776
  %v778 = vtanh.pop %v757
  %780 = vrot.lane.b32.xlu0 %v758, 32
  %v781 = vpop.permute.xlu0 %780
  %v783 = vmul.f32 %v777, %v781
  %785 = vrot.lane.b32.xlu0 %v778, 64
  %v786 = vpop.permute.xlu0 %785
  %v788 = vmul.f32 %v777, %v786
  %790 = vrot.lane.b32.xlu0 %v788, 32
  %v791 = vpop.permute.xlu0 %790
  %v793 = vadd.f32 %v783, %v791
  %v794 = vtanh.pop %v793
  %796 = vrot.lane.b32.xlu0 %v794, 64
  %v797 = vpop.permute.xlu0 %796
  %v799 = vmul.f32 %v777, %v797
  %801 = vrot.lane.b32.xlu0 %v799, 32
  %v802 = vpop.permute.xlu0 %801
  %804 = vst.msk [vmem:[#allocation6] sm:$0x3] %vm130, %v802
  %806 = vrot.lane.b32.xlu0 %v793, 96
  %v807 = vpop.permute.xlu0 %806
  %809 = vst.msk [vmem:[#allocation7] sm:$0x3] %vm130, %v807
  %v810 = vpack.c.bf16 %v727, %v727
  %v812 = vrot.slane %v810, 3
  %v815 = vsel %vm307, %v810, %v812
  %817 = vrot.lane.b32.xlu0 %v815, 32
  %v818 = vpop.permute.xlu0 %817
  %s820 = scalar_lea.vmem %s7, 3
  %821 = vst.msk [vmem:[%s820] sm:$0x1] %vm315, %v818
  %v822 = vpack.c.bf16 %v799, %v799
  %v824 = vrot.slane %v822, 3
  %v827 = vsel %vm307, %v822, %v824
  %829 = vrot.lane.b32.xlu0 %v827, 64
  %v830 = vpop.permute.xlu0 %829
  %s832 = scalar_lea.vmem %s7, 4
  %833 = vst.msk [vmem:[%s832] sm:$0x1] %vm328, %v830
  %v834 = vld [vmem:[%s73] sm:$0x3]
  %v835 = vld [vmem:[#allocation4] sm:$0x3]
  %v836 = vpack.c.bf16 %v835, %v835
  %v838 = vsel %vm150, %v836, 0
  %840 = vmatpush.bf16.msra.mxu0 0
  %841 = vmatpush.bf16.msra.mxu0 0
  %842 = vmatpush.bf16.msra.mxu0 0
  %843 = vmatpush.bf16.msra.mxu0 0
  %844 = vmatpush.bf16.msra.mxu0 0
  %845 = vmatpush.bf16.msra.mxu0 0
  %846 = vmatpush.bf16.msra.mxu0 %v147
  %847 = vmatpush.bf16.msra.mxu0 %v146
  %848 = vmatmul.bf16.gmra.mxu0 %v838
  %v849 = vpop.f32.mrf.mxu0
  %v850 = vadd.f32 0.0, %v849
  %v851 = vpop.f32.mrf.mxu0
  %852 = vdwg.mxu0
  %v853 = vadd.f32 %v834, %v850
  %v854 = vld [vmem:[#allocation5] sm:$0x3]
  %v855 = vxor.u32 %v853, 2147483648
  %v856 = vmul.f32 %v855, 1.442695
  %v857 = vpow.pop %v856
  %v858 = vadd.f32 %v857, 1.0
  %v859 = vrcp.pop %v858
  %v860 = vmul.f32 %v858, %v859
  %v861 = vsub.f32 1.0, %v860
  %v862 = vmul.f32 %v859, %v861
  %v863 = vadd.f32 %v859, %v862
  %vm864 = vweird.f32 %v858
  %vm865 = vweird.f32 %v859
  %vm866 = vmor %vm864, %vm865
  %v867 = vsel %vm866, %v859, %v863
  %v868 = vand.u32 2147483647, %v858
  %vm869 = vcmp.eq.f32.partialorder %v868, 8.507059e+37
  %v870 = vand.u32 %v858, 2147483648
  %v871 = vor.u32 1.1754944e-38, %v870
  %v872 = vsel %vm869, %v871, %v867
  %v873 = vmul.f32 1.0, %v872
  %v874 = vtanh.pop %v853
  %876 = vrot.lane.b32.xlu0 %v854, 32
  %v877 = vpop.permute.xlu0 %876
  %v879 = vmul.f32 %v873, %v877
  %881 = vrot.lane.b32.xlu0 %v874, 64
  %v882 = vpop.permute.xlu0 %881
  %v884 = vmul.f32 %v873, %v882
  %886 = vrot.lane.b32.xlu0 %v884, 32
  %v887 = vpop.permute.xlu0 %886
  %v889 = vadd.f32 %v879, %v887
  %v890 = vtanh.pop %v889
  %892 = vrot.lane.b32.xlu0 %v890, 64
  %v893 = vpop.permute.xlu0 %892
  %v895 = vmul.f32 %v873, %v893
  %897 = vrot.lane.b32.xlu0 %v895, 32
  %v898 = vpop.permute.xlu0 %897
  %900 = vst.msk [vmem:[#allocation4] sm:$0x3] %vm130, %v898
  %902 = vrot.lane.b32.xlu0 %v889, 96
  %v903 = vpop.permute.xlu0 %902
  %905 = vst.msk [vmem:[#allocation5] sm:$0x3] %vm130, %v903
  %v906 = vld [vmem:[%s112] sm:$0x3]
  %v907 = vld [vmem:[#allocation6] sm:$0x3]
  %v908 = vpack.c.bf16 %v907, %v907
  %v910 = vsel %vm150, %v908, 0
  %912 = vmatpush.bf16.msra.mxu0 0
  %913 = vmatpush.bf16.msra.mxu0 0
  %914 = vmatpush.bf16.msra.mxu0 0
  %915 = vmatpush.bf16.msra.mxu0 0
  %916 = vmatpush.bf16.msra.mxu0 0
  %917 = vmatpush.bf16.msra.mxu0 0
  %918 = vmatpush.bf16.msra.mxu0 %v232
  %919 = vmatpush.bf16.msra.mxu0 %v231
  %920 = vmatmul.bf16.gmra.mxu0 %v910
  %v921 = vpop.f32.mrf.mxu0
  %v922 = vadd.f32 0.0, %v921
  %v923 = vpop.f32.mrf.mxu0
  %924 = vdwg.mxu0
  %v925 = vadd.f32 %v906, %v922
  %v926 = vld [vmem:[#allocation7] sm:$0x3]
  %v927 = vxor.u32 %v925, 2147483648
  %v928 = vmul.f32 %v927, 1.442695
  %v929 = vpow.pop %v928
  %v930 = vadd.f32 %v929, 1.0
  %v931 = vrcp.pop %v930
  %v932 = vmul.f32 %v930, %v931
  %v933 = vsub.f32 1.0, %v932
  %v934 = vmul.f32 %v931, %v933
  %v935 = vadd.f32 %v931, %v934
  %vm936 = vweird.f32 %v930
  %vm937 = vweird.f32 %v931
  %vm938 = vmor %vm936, %vm937
  %v939 = vsel %vm938, %v931, %v935
  %v940 = vand.u32 2147483647, %v930
  %vm941 = vcmp.eq.f32.partialorder %v940, 8.507059e+37
  %v942 = vand.u32 %v930, 2147483648
  %v943 = vor.u32 1.1754944e-38, %v942
  %v944 = vsel %vm941, %v943, %v939
  %v945 = vmul.f32 1.0, %v944
  %v946 = vtanh.pop %v925
  %948 = vrot.lane.b32.xlu0 %v926, 32
  %v949 = vpop.permute.xlu0 %948
  %v951 = vmul.f32 %v945, %v949
  %953 = vrot.lane.b32.xlu0 %v946, 64
  %v954 = vpop.permute.xlu0 %953
  %v956 = vmul.f32 %v945, %v954
  %958 = vrot.lane.b32.xlu0 %v956, 32
  %v959 = vpop.permute.xlu0 %958
  %v961 = vadd.f32 %v951, %v959
  %v962 = vtanh.pop %v961
  %964 = vrot.lane.b32.xlu0 %v962, 64
  %v965 = vpop.permute.xlu0 %964
  %v967 = vmul.f32 %v945, %v965
  %969 = vrot.lane.b32.xlu0 %v967, 32
  %v970 = vpop.permute.xlu0 %969
  %972 = vst.msk [vmem:[#allocation6] sm:$0x3] %vm130, %v970
  %974 = vrot.lane.b32.xlu0 %v961, 96
  %v975 = vpop.permute.xlu0 %974
  %977 = vst.msk [vmem:[#allocation7] sm:$0x3] %vm130, %v975
  %v978 = vpack.c.bf16 %v895, %v895
  %v980 = vrot.slane %v978, 3
  %v983 = vsel %vm307, %v978, %v980
  %985 = vrot.lane.b32.xlu0 %v983, 32
  %v986 = vpop.permute.xlu0 %985
  %988 = vst.msk [vmem:[%s832] sm:$0x1] %vm315, %v986
  %v989 = vpack.c.bf16 %v967, %v967
  %v991 = vrot.slane %v989, 3
  %v994 = vsel %vm307, %v989, %v991
  %996 = vrot.lane.b32.xlu0 %v994, 64
  %v997 = vpop.permute.xlu0 %996
  %999 = vst.msk [vmem:[%s820] sm:$0x1] %vm328, %v997
  %v1000 = vld [vmem:[%s75] sm:$0x3]
  %v1001 = vld [vmem:[#allocation4] sm:$0x3]
  %v1002 = vpack.c.bf16 %v1001, %v1001
  %v1004 = vsel %vm150, %v1002, 0
  %1006 = vmatpush.bf16.msra.mxu0 0
  %1007 = vmatpush.bf16.msra.mxu0 0
  %1008 = vmatpush.bf16.msra.mxu0 0
  %1009 = vmatpush.bf16.msra.mxu0 0
  %1010 = vmatpush.bf16.msra.mxu0 0
  %1011 = vmatpush.bf16.msra.mxu0 0
  %1012 = vmatpush.bf16.msra.mxu0 %v147
  %1013 = vmatpush.bf16.msra.mxu0 %v146
  %1014 = vmatmul.bf16.gmra.mxu0 %v1004
  %v1015 = vpop.f32.mrf.mxu0
  %v1016 = vadd.f32 0.0, %v1015
  %v1017 = vpop.f32.mrf.mxu0
  %1018 = vdwg.mxu0
  %v1019 = vadd.f32 %v1000, %v1016
  %v1020 = vld [vmem:[#allocation5] sm:$0x3]
  %v1021 = vxor.u32 %v1019, 2147483648
  %v1022 = vmul.f32 %v1021, 1.442695
  %v1023 = vpow.pop %v1022
  %v1024 = vadd.f32 %v1023, 1.0
  %v1025 = vrcp.pop %v1024
  %v1026 = vmul.f32 %v1024, %v1025
  %v1027 = vsub.f32 1.0, %v1026
  %v1028 = vmul.f32 %v1025, %v1027
  %v1029 = vadd.f32 %v1025, %v1028
  %vm1030 = vweird.f32 %v1024
  %vm1031 = vweird.f32 %v1025
  %vm1032 = vmor %vm1030, %vm1031
  %v1033 = vsel %vm1032, %v1025, %v1029
  %v1034 = vand.u32 2147483647, %v1024
  %vm1035 = vcmp.eq.f32.partialorder %v1034, 8.507059e+37
  %v1036 = vand.u32 %v1024, 2147483648
  %v1037 = vor.u32 1.1754944e-38, %v1036
  %v1038 = vsel %vm1035, %v1037, %v1033
  %v1039 = vmul.f32 1.0, %v1038
  %v1040 = vtanh.pop %v1019
  %1042 = vrot.lane.b32.xlu0 %v1020, 32
  %v1043 = vpop.permute.xlu0 %1042
  %v1045 = vmul.f32 %v1039, %v1043
  %1047 = vrot.lane.b32.xlu0 %v1040, 64
  %v1048 = vpop.permute.xlu0 %1047
  %v1050 = vmul.f32 %v1039, %v1048
  %1052 = vrot.lane.b32.xlu0 %v1050, 32
  %v1053 = vpop.permute.xlu0 %1052
  %v1055 = vadd.f32 %v1045, %v1053
  %v1056 = vtanh.pop %v1055
  %1058 = vrot.lane.b32.xlu0 %v1056, 64
  %v1059 = vpop.permute.xlu0 %1058
  %v1061 = vmul.f32 %v1039, %v1059
  %1063 = vrot.lane.b32.xlu0 %v1061, 32
  %v1064 = vpop.permute.xlu0 %1063
  %1066 = vst.msk [vmem:[#allocation4] sm:$0x3] %vm130, %v1064
  %1068 = vrot.lane.b32.xlu0 %v1055, 96
  %v1069 = vpop.permute.xlu0 %1068
  %1071 = vst.msk [vmem:[#allocation5] sm:$0x3] %vm130, %v1069
  %v1072 = vld [vmem:[%s110] sm:$0x3]
  %v1073 = vld [vmem:[#allocation6] sm:$0x3]
  %v1074 = vpack.c.bf16 %v1073, %v1073
  %v1076 = vsel %vm150, %v1074, 0
  %1078 = vmatpush.bf16.msra.mxu0 0
  %1079 = vmatpush.bf16.msra.mxu0 0
  %1080 = vmatpush.bf16.msra.mxu0 0
  %1081 = vmatpush.bf16.msra.mxu0 0
  %1082 = vmatpush.bf16.msra.mxu0 0
  %1083 = vmatpush.bf16.msra.mxu0 0
  %1084 = vmatpush.bf16.msra.mxu0 %v232
  %1085 = vmatpush.bf16.msra.mxu0 %v231
  %1086 = vmatmul.bf16.gmra.mxu0 %v1076
  %v1087 = vpop.f32.mrf.mxu0
  %v1088 = vadd.f32 0.0, %v1087
  %v1089 = vpop.f32.mrf.mxu0
  %1090 = vdwg.mxu0
  %v1091 = vadd.f32 %v1072, %v1088
  %v1092 = vld [vmem:[#allocation7] sm:$0x3]
  %v1093 = vxor.u32 %v1091, 2147483648
  %v1094 = vmul.f32 %v1093, 1.442695
  %v1095 = vpow.pop %v1094
  %v1096 = vadd.f32 %v1095, 1.0
  %v1097 = vrcp.pop %v1096
  %v1098 = vmul.f32 %v1096, %v1097
  %v1099 = vsub.f32 1.0, %v1098
  %v1100 = vmul.f32 %v1097, %v1099
  %v1101 = vadd.f32 %v1097, %v1100
  %vm1102 = vweird.f32 %v1096
  %vm1103 = vweird.f32 %v1097
  %vm1104 = vmor %vm1102, %vm1103
  %v1105 = vsel %vm1104, %v1097, %v1101
  %v1106 = vand.u32 2147483647, %v1096
  %vm1107 = vcmp.eq.f32.partialorder %v1106, 8.507059e+37
  %v1108 = vand.u32 %v1096, 2147483648
  %v1109 = vor.u32 1.1754944e-38, %v1108
  %v1110 = vsel %vm1107, %v1109, %v1105
  %v1111 = vmul.f32 1.0, %v1110
  %v1112 = vtanh.pop %v1091
  %1114 = vrot.lane.b32.xlu0 %v1092, 32
  %v1115 = vpop.permute.xlu0 %1114
  %v1117 = vmul.f32 %v1111, %v1115
  %1119 = vrot.lane.b32.xlu0 %v1112, 64
  %v1120 = vpop.permute.xlu0 %1119
  %v1122 = vmul.f32 %v1111, %v1120
  %1124 = vrot.lane.b32.xlu0 %v1122, 32
  %v1125 = vpop.permute.xlu0 %1124
  %v1127 = vadd.f32 %v1117, %v1125
  %v1128 = vtanh.pop %v1127
  %1130 = vrot.lane.b32.xlu0 %v1128, 64
  %v1131 = vpop.permute.xlu0 %1130
  %v1133 = vmul.f32 %v1111, %v1131
  %1135 = vrot.lane.b32.xlu0 %v1133, 32
  %v1136 = vpop.permute.xlu0 %1135
  %1138 = vst.msk [vmem:[#allocation6] sm:$0x3] %vm130, %v1136
  %1140 = vrot.lane.b32.xlu0 %v1127, 96
  %v1141 = vpop.permute.xlu0 %1140
  %1143 = vst.msk [vmem:[#allocation7] sm:$0x3] %vm130, %v1141
  %v1144 = vpack.c.bf16 %v1061, %v1061
  %v1146 = vrot.slane %v1144, 3
  %v1149 = vsel %vm307, %v1144, %v1146
  %1151 = vrot.lane.b32.xlu0 %v1149, 32
  %v1152 = vpop.permute.xlu0 %1151
  %1154 = vst.msk [vmem:[%s664] sm:$0x1] %vm315, %v1152
  %v1155 = vpack.c.bf16 %v1133, %v1133
  %v1157 = vrot.slane %v1155, 3
  %v1160 = vsel %vm307, %v1155, %v1157
  %1162 = vrot.lane.b32.xlu0 %v1160, 64
  %v1163 = vpop.permute.xlu0 %1162
  %1165 = vst.msk [vmem:[%s652] sm:$0x1] %vm328, %v1163
  %v1166 = vld [vmem:[%s77] sm:$0x3]
  %v1167 = vld [vmem:[#allocation4] sm:$0x3]
  %v1168 = vpack.c.bf16 %v1167, %v1167
  %v1170 = vsel %vm150, %v1168, 0
  %1172 = vmatpush.bf16.msra.mxu0 0
  %1173 = vmatpush.bf16.msra.mxu0 0
  %1174 = vmatpush.bf16.msra.mxu0 0
  %1175 = vmatpush.bf16.msra.mxu0 0
  %1176 = vmatpush.bf16.msra.mxu0 0
  %1177 = vmatpush.bf16.msra.mxu0 0
  %1178 = vmatpush.bf16.msra.mxu0 %v147
  %1179 = vmatpush.bf16.msra.mxu0 %v146
  %1180 = vmatmul.bf16.gmra.mxu0 %v1170
  %v1181 = vpop.f32.mrf.mxu0
  %v1182 = vadd.f32 0.0, %v1181
  %v1183 = vpop.f32.mrf.mxu0
  %1184 = vdwg.mxu0
  %v1185 = vadd.f32 %v1166, %v1182
  %v1186 = vld [vmem:[#allocation5] sm:$0x3]
  %v1187 = vxor.u32 %v1185, 2147483648
  %v1188 = vmul.f32 %v1187, 1.442695
  %v1189 = vpow.pop %v1188
  %v1190 = vadd.f32 %v1189, 1.0
  %v1191 = vrcp.pop %v1190
  %v1192 = vmul.f32 %v1190, %v1191
  %v1193 = vsub.f32 1.0, %v1192
  %v1194 = vmul.f32 %v1191, %v1193
  %v1195 = vadd.f32 %v1191, %v1194
  %vm1196 = vweird.f32 %v1190
  %vm1197 = vweird.f32 %v1191
  %vm1198 = vmor %vm1196, %vm1197
  %v1199 = vsel %vm1198, %v1191, %v1195
  %v1200 = vand.u32 2147483647, %v1190
  %vm1201 = vcmp.eq.f32.partialorder %v1200, 8.507059e+37
  %v1202 = vand.u32 %v1190, 2147483648
  %v1203 = vor.u32 1.1754944e-38, %v1202
  %v1204 = vsel %vm1201, %v1203, %v1199
  %v1205 = vmul.f32 1.0, %v1204
  %v1206 = vtanh.pop %v1185
  %1208 = vrot.lane.b32.xlu0 %v1186, 32
  %v1209 = vpop.permute.xlu0 %1208
  %v1211 = vmul.f32 %v1205, %v1209
  %1213 = vrot.lane.b32.xlu0 %v1206, 64
  %v1214 = vpop.permute.xlu0 %1213
  %v1216 = vmul.f32 %v1205, %v1214
  %1218 = vrot.lane.b32.xlu0 %v1216, 32
  %v1219 = vpop.permute.xlu0 %1218
  %v1221 = vadd.f32 %v1211, %v1219
  %v1222 = vtanh.pop %v1221
  %1224 = vrot.lane.b32.xlu0 %v1222, 64
  %v1225 = vpop.permute.xlu0 %1224
  %v1227 = vmul.f32 %v1205, %v1225
  %1229 = vrot.lane.b32.xlu0 %v1227, 32
  %v1230 = vpop.permute.xlu0 %1229
  %1232 = vst.msk [vmem:[#allocation4] sm:$0x3] %vm130, %v1230
  %1234 = vrot.lane.b32.xlu0 %v1221, 96
  %v1235 = vpop.permute.xlu0 %1234
  %1237 = vst.msk [vmem:[#allocation5] sm:$0x3] %vm130, %v1235
  %v1238 = vld [vmem:[%s108] sm:$0x3]
  %v1239 = vld [vmem:[#allocation6] sm:$0x3]
  %v1240 = vpack.c.bf16 %v1239, %v1239
  %v1242 = vsel %vm150, %v1240, 0
  %1244 = vmatpush.bf16.msra.mxu0 0
  %1245 = vmatpush.bf16.msra.mxu0 0
  %1246 = vmatpush.bf16.msra.mxu0 0
  %1247 = vmatpush.bf16.msra.mxu0 0
  %1248 = vmatpush.bf16.msra.mxu0 0
  %1249 = vmatpush.bf16.msra.mxu0 0
  %1250 = vmatpush.bf16.msra.mxu0 %v232
  %1251 = vmatpush.bf16.msra.mxu0 %v231
  %1252 = vmatmul.bf16.gmra.mxu0 %v1242
  %v1253 = vpop.f32.mrf.mxu0
  %v1254 = vadd.f32 0.0, %v1253
  %v1255 = vpop.f32.mrf.mxu0
  %1256 = vdwg.mxu0
  %v1257 = vadd.f32 %v1238, %v1254
  %v1258 = vld [vmem:[#allocation7] sm:$0x3]
  %v1259 = vxor.u32 %v1257, 2147483648
  %v1260 = vmul.f32 %v1259, 1.442695
  %v1261 = vpow.pop %v1260
  %v1262 = vadd.f32 %v1261, 1.0
  %v1263 = vrcp.pop %v1262
  %v1264 = vmul.f32 %v1262, %v1263
  %v1265 = vsub.f32 1.0, %v1264
  %v1266 = vmul.f32 %v1263, %v1265
  %v1267 = vadd.f32 %v1263, %v1266
  %vm1268 = vweird.f32 %v1262
  %vm1269 = vweird.f32 %v1263
  %vm1270 = vmor %vm1268, %vm1269
  %v1271 = vsel %vm1270, %v1263, %v1267
  %v1272 = vand.u32 2147483647, %v1262
  %vm1273 = vcmp.eq.f32.partialorder %v1272, 8.507059e+37
  %v1274 = vand.u32 %v1262, 2147483648
  %v1275 = vor.u32 1.1754944e-38, %v1274
  %v1276 = vsel %vm1273, %v1275, %v1271
  %v1277 = vmul.f32 1.0, %v1276
  %v1278 = vtanh.pop %v1257
  %1280 = vrot.lane.b32.xlu0 %v1258, 32
  %v1281 = vpop.permute.xlu0 %1280
  %v1283 = vmul.f32 %v1277, %v1281
  %1285 = vrot.lane.b32.xlu0 %v1278, 64
  %v1286 = vpop.permute.xlu0 %1285
  %v1288 = vmul.f32 %v1277, %v1286
  %1290 = vrot.lane.b32.xlu0 %v1288, 32
  %v1291 = vpop.permute.xlu0 %1290
  %v1293 = vadd.f32 %v1283, %v1291
  %v1294 = vtanh.pop %v1293
  %1296 = vrot.lane.b32.xlu0 %v1294, 64
  %v1297 = vpop.permute.xlu0 %1296
  %v1299 = vmul.f32 %v1277, %v1297
  %1301 = vrot.lane.b32.xlu0 %v1299, 32
  %v1302 = vpop.permute.xlu0 %1301
  %1304 = vst.msk [vmem:[#allocation6] sm:$0x3] %vm130, %v1302
  %1306 = vrot.lane.b32.xlu0 %v1293, 96
  %v1307 = vpop.permute.xlu0 %1306
  %1309 = vst.msk [vmem:[#allocation7] sm:$0x3] %vm130, %v1307
  %v1310 = vpack.c.bf16 %v1227, %v1227
  %v1312 = vrot.slane %v1310, 3
  %v1315 = vsel %vm307, %v1310, %v1312
  %1317 = vrot.lane.b32.xlu0 %v1315, 32
  %v1318 = vpop.permute.xlu0 %1317
  %1320 = vst.msk [vmem:[%s496] sm:$0x1] %vm315, %v1318
  %v1321 = vpack.c.bf16 %v1299, %v1299
  %v1323 = vrot.slane %v1321, 3
  %v1326 = vsel %vm307, %v1321, %v1323
  %1328 = vrot.lane.b32.xlu0 %v1326, 64
  %v1329 = vpop.permute.xlu0 %1328
  %1331 = vst.msk [vmem:[%s484] sm:$0x1] %vm328, %v1329
  %v1332 = vld [vmem:[%s79] sm:$0x3]
  %v1333 = vld [vmem:[#allocation4] sm:$0x3]
  %v1334 = vpack.c.bf16 %v1333, %v1333
  %v1336 = vsel %vm150, %v1334, 0
  %1338 = vmatpush.bf16.msra.mxu0 0
  %1339 = vmatpush.bf16.msra.mxu0 0
  %1340 = vmatpush.bf16.msra.mxu0 0
  %1341 = vmatpush.bf16.msra.mxu0 0
  %1342 = vmatpush.bf16.msra.mxu0 0
  %1343 = vmatpush.bf16.msra.mxu0 0
  %1344 = vmatpush.bf16.msra.mxu0 %v147
  %1345 = vmatpush.bf16.msra.mxu0 %v146
  %1346 = vmatmul.bf16.gmra.mxu0 %v1336
  %v1347 = vpop.f32.mrf.mxu0
  %v1348 = vadd.f32 0.0, %v1347
  %v1349 = vpop.f32.mrf.mxu0
  %1350 = vdwg.mxu0
  %v1351 = vadd.f32 %v1332, %v1348
  %v1352 = vld [vmem:[#allocation5] sm:$0x3]
  %v1353 = vxor.u32 %v1351, 2147483648
  %v1354 = vmul.f32 %v1353, 1.442695
  %v1355 = vpow.pop %v1354
  %v1356 = vadd.f32 %v1355, 1.0
  %v1357 = vrcp.pop %v1356
  %v1358 = vmul.f32 %v1356, %v1357
  %v1359 = vsub.f32 1.0, %v1358
  %v1360 = vmul.f32 %v1357, %v1359
  %v1361 = vadd.f32 %v1357, %v1360
  %vm1362 = vweird.f32 %v1356
  %vm1363 = vweird.f32 %v1357
  %vm1364 = vmor %vm1362, %vm1363
  %v1365 = vsel %vm1364, %v1357, %v1361
  %v1366 = vand.u32 2147483647, %v1356
  %vm1367 = vcmp.eq.f32.partialorder %v1366, 8.507059e+37
  %v1368 = vand.u32 %v1356, 2147483648
  %v1369 = vor.u32 1.1754944e-38, %v1368
  %v1370 = vsel %vm1367, %v1369, %v1365
  %v1371 = vmul.f32 1.0, %v1370
  %v1372 = vtanh.pop %v1351
  %1374 = vrot.lane.b32.xlu0 %v1352, 32
  %v1375 = vpop.permute.xlu0 %1374
  %v1377 = vmul.f32 %v1371, %v1375
  %1379 = vrot.lane.b32.xlu0 %v1372, 64
  %v1380 = vpop.permute.xlu0 %1379
  %v1382 = vmul.f32 %v1371, %v1380
  %1384 = vrot.lane.b32.xlu0 %v1382, 32
  %v1385 = vpop.permute.xlu0 %1384
  %v1387 = vadd.f32 %v1377, %v1385
  %v1388 = vtanh.pop %v1387
  %1390 = vrot.lane.b32.xlu0 %v1388, 64
  %v1391 = vpop.permute.xlu0 %1390
  %v1393 = vmul.f32 %v1371, %v1391
  %1395 = vrot.lane.b32.xlu0 %v1393, 32
  %v1396 = vpop.permute.xlu0 %1395
  %1398 = vst.msk [vmem:[#allocation4] sm:$0x3] %vm130, %v1396
  %1400 = vrot.lane.b32.xlu0 %v1387, 96
  %v1401 = vpop.permute.xlu0 %1400
  %1403 = vst.msk [vmem:[#allocation5] sm:$0x3] %vm130, %v1401
  %v1404 = vld [vmem:[#allocation3] sm:$0x3]
  %v1405 = vld [vmem:[#allocation6] sm:$0x3]
  %v1406 = vpack.c.bf16 %v1405, %v1405
  %v1408 = vsel %vm150, %v1406, 0
  %1410 = vmatpush.bf16.msra.mxu0 0
  %1411 = vmatpush.bf16.msra.mxu0 0
  %1412 = vmatpush.bf16.msra.mxu0 0
  %1413 = vmatpush.bf16.msra.mxu0 0
  %1414 = vmatpush.bf16.msra.mxu0 0
  %1415 = vmatpush.bf16.msra.mxu0 0
  %1416 = vmatpush.bf16.msra.mxu0 %v232
  %1417 = vmatpush.bf16.msra.mxu0 %v231
  %1418 = vmatmul.bf16.gmra.mxu0 %v1408
  %v1419 = vpop.f32.mrf.mxu0
  %v1420 = vadd.f32 0.0, %v1419
  %v1421 = vpop.f32.mrf.mxu0
  %1422 = vdwg.mxu0
  %v1423 = vadd.f32 %v1404, %v1420
  %v1424 = vld [vmem:[#allocation7] sm:$0x3]
  %v1425 = vxor.u32 %v1423, 2147483648
  %v1426 = vmul.f32 %v1425, 1.442695
  %v1427 = vpow.pop %v1426
  %v1428 = vadd.f32 %v1427, 1.0
  %v1429 = vrcp.pop %v1428
  %v1430 = vmul.f32 %v1428, %v1429
  %v1431 = vsub.f32 1.0, %v1430
  %v1432 = vmul.f32 %v1429, %v1431
  %v1433 = vadd.f32 %v1429, %v1432
  %vm1434 = vweird.f32 %v1428
  %vm1435 = vweird.f32 %v1429
  %vm1436 = vmor %vm1434, %vm1435
  %v1437 = vsel %vm1436, %v1429, %v1433
  %v1438 = vand.u32 2147483647, %v1428
  %vm1439 = vcmp.eq.f32.partialorder %v1438, 8.507059e+37
  %v1440 = vand.u32 %v1428, 2147483648
  %v1441 = vor.u32 1.1754944e-38, %v1440
  %v1442 = vsel %vm1439, %v1441, %v1437
  %v1443 = vmul.f32 1.0, %v1442
  %v1444 = vtanh.pop %v1423
  %1446 = vrot.lane.b32.xlu0 %v1424, 32
  %v1447 = vpop.permute.xlu0 %1446
  %v1449 = vmul.f32 %v1443, %v1447
  %1451 = vrot.lane.b32.xlu0 %v1444, 64
  %v1452 = vpop.permute.xlu0 %1451
  %v1454 = vmul.f32 %v1443, %v1452
  %1456 = vrot.lane.b32.xlu0 %v1454, 32
  %v1457 = vpop.permute.xlu0 %1456
  %v1459 = vadd.f32 %v1449, %v1457
  %v1460 = vtanh.pop %v1459
  %1462 = vrot.lane.b32.xlu0 %v1460, 64
  %v1463 = vpop.permute.xlu0 %1462
  %v1465 = vmul.f32 %v1443, %v1463
  %1467 = vrot.lane.b32.xlu0 %v1465, 32
  %v1468 = vpop.permute.xlu0 %1467
  %1470 = vst.msk [vmem:[#allocation6] sm:$0x3] %vm130, %v1468
  %1472 = vrot.lane.b32.xlu0 %v1459, 96
  %v1473 = vpop.permute.xlu0 %1472
  %1475 = vst.msk [vmem:[#allocation7] sm:$0x3] %vm130, %v1473
  %v1476 = vpack.c.bf16 %v1393, %v1393
  %v1478 = vrot.slane %v1476, 3
  %v1481 = vsel %vm307, %v1476, %v1478
  %1483 = vrot.lane.b32.xlu0 %v1481, 32
  %v1484 = vpop.permute.xlu0 %1483
  %1486 = vst.msk [vmem:[%s327] sm:$0x1] %vm315, %v1484
  %v1487 = vpack.c.bf16 %v1465, %v1465
  %v1489 = vrot.slane %v1487, 3
  %v1492 = vsel %vm307, %v1487, %v1489
  %1494 = vrot.lane.b32.xlu0 %v1492, 64
  %v1495 = vpop.permute.xlu0 %1494
  %1497 = vst.msk [vmem:[%s7] sm:$0x1] %vm328, %v1495
  %v1498 = vld [vmem:[#allocation4] sm:$0x3]
  %1499 = vst.msk [vmem:[%s8] sm:$0x3] %vm130, %v1498
  %v1500 = vld [vmem:[#allocation6] sm:$0x3]
  %1502 = vrot.lane.b32.xlu0 %v1500, 32
  %v1503 = vpop.permute.xlu0 %1502
  %vm1505 = vcmask 517376
  %1506 = vst.msk [vmem:[%s8] sm:$0x3] %vm1505, %v1503
  // Predicated region
  $region30: #{lstm_classifier_forward.2} parent=0 // pred_check
    _
  $region31: #{lstm_classifier_forward.2} parent=0 // pred_check_branch
    %1508 = sbr.rel (0) target = $region33
  $region32: #{lstm_classifier_forward.2} parent=0 // pred_region
    _
  $region33: #{lstm_classifier_forward.2} parent=0 // pred_fallthru
    _
  // Predicated region
  $region34: #{lstm_classifier_forward.2} parent=0 // pred_check
    _
  $region35: #{lstm_classifier_forward.2} parent=0 // pred_check_branch
    %1510 = sbr.rel (0) target = $region37
  $region36: #{lstm_classifier_forward.2} parent=0 // pred_region
    _
  $region37: #{lstm_classifier_forward.2} parent=0 // pred_fallthru
    _
  // Predicated region
  $region38: #{lstm_classifier_forward.2} parent=0 // pred_check
    _
  $region39: #{lstm_classifier_forward.2} parent=0 // pred_check_branch
    %1512 = sbr.rel (0) target = $region41
  $region40: #{lstm_classifier_forward.2} parent=0 // pred_region
    _
  $region41: #{lstm_classifier_forward.2} parent=0 // pred_fallthru
    _
  // Predicated region
  $region42: #{lstm_classifier_forward.2} parent=0 // pred_check
    _
  $region43: #{lstm_classifier_forward.2} parent=0 // pred_check_branch
    %1514 = sbr.rel (0) target = $region45
  $region44: #{lstm_classifier_forward.2} parent=0 // pred_region
    _
  $region45: #{lstm_classifier_forward.2} parent=0 // pred_fallthru
    _

</llo_original>
